<compile_context>
chip_gen: v6e
topology: v6e:2x2x1
jax: 0.10.0
libtpu: 0.0.40
codegen_flags: <defaults>
</compile_context>

<pallas_src>
import functools

import jax
import jax.numpy as jnp
from jax.experimental import pallas as pl
from jax.experimental.pallas import tpu as pltpu

EPS = 1e-5            # nn.GroupNorm / nn.LayerNorm default eps
NUM_GROUPS = 32       # nn.GroupNorm(32, in_channels)


def _gelu(x):
    # TODO(synk): Mlp activation assumed GELU (tanh approx, EUP-friendly); switch to
    # approximate=False if the original Mlp uses exact-erf nn.GELU.
    return jax.nn.gelu(x, approximate=True)


# ---------------------------------------------------------------------------
# In-kernel helpers (shared by the fused and fallback kernels)
# ---------------------------------------------------------------------------
def _chunked_moments(x_ref, hw, chunk, n_chunks, unroll):
    """One traversal of x_ref -> per-row E[x], E[x^2], max over the HW axis."""
    R, C = x_ref.shape[0], x_ref.shape[1]

    def body(ci, carry):
        s, s2, mx = carry
        off = pl.multiple_of(ci * chunk, chunk)
        xc = x_ref[:, :, pl.ds(off, chunk)].astype(jnp.float32)   # (R, C, chunk)
        s = s + jnp.sum(xc, axis=-1)
        s2 = s2 + jnp.sum(xc * xc, axis=-1)
        mx = jnp.maximum(mx, jnp.max(xc, axis=-1))
        return s, s2, mx

    init = (jnp.zeros((R, C), jnp.float32),
            jnp.zeros((R, C), jnp.float32),
            jnp.full((R, C), -jnp.inf, jnp.float32))
    s, s2, mx = jax.lax.fori_loop(0, n_chunks, body, init, unroll=unroll)
    inv = 1.0 / float(hw)
    return s * inv, s2 * inv, mx


def _chunked_apply(x_ref, y_ref, scale, shift, chunk, n_chunks, apply_dtype, unroll):
    """y = relu(x * scale + shift), re-loading x chunk-by-chunk over HW."""
    sc = scale.astype(apply_dtype)[:, :, None]
    sh = shift.astype(apply_dtype)[:, :, None]

    def body(ci, carry):
        off = pl.multiple_of(ci * chunk, chunk)
        xc = x_ref[:, :, pl.ds(off, chunk)].astype(apply_dtype)
        y_ref[:, :, pl.ds(off, chunk)] = jnp.maximum(xc * sc + sh, 0).astype(y_ref.dtype)
        return carry

    jax.lax.fori_loop(0, n_chunks, body, 0, unroll=unroll)


def _gn_coeffs(mu_c, ex2_c, gn_w, gn_b, adiv, at):
    """Per-channel GroupNorm affine (a, b) from channel moments.

    Group aggregation / broadcast-back done as two small matmuls (MXU is idle);
    1/channels_per_group is folded into `adiv`.
    """
    R = mu_c.shape[0]
    stats = jnp.concatenate([mu_c, ex2_c], axis=0)                       # (2R, C)
    stats_g = jnp.dot(stats, adiv, preferred_element_type=jnp.float32)   # (2R, G)
    stats_f = jnp.dot(stats_g, at, preferred_element_type=jnp.float32)   # (2R, C)
    mu = stats_f[:R]
    # NOTE: E[x^2]-E[x]^2 (clamped >= 0).  A two-pass (x-mu)^2 form would need
    # a third HBM traversal of x, which dominates the cost of this HBM-bound op.
    var = jnp.maximum(stats_f[R:] - mu * mu, 0.0)
    a = gn_w * jax.lax.rsqrt(var + EPS)
    b = gn_b - mu * a
    return a, b


# ---------------------------------------------------------------------------
# Fully-fused kernel: grid over B, one (L, C, HW) token-group per step.
# Reads x once (chunked), writes y once (chunked).
# ---------------------------------------------------------------------------
def fused_kernel(x_ref, cvec_ref, lvec_ref, adiv_ref, at_ref,
                 t_w1_ref, t_b1_ref, t_w2_ref, c_w1_ref, c_b1_ref, c_w2_ref,
                 y_ref, *, hw, chunk, n_chunks, apply_dtype, unroll):
    L, C = x_ref.shape[0], x_ref.shape[1]

    # pass 1: channel moments (avg pool, E[x^2], max pool) in one traversal
    mu_c, ex2_c, v_max = _chunked_moments(x_ref, hw, chunk, n_chunks, unroll)

    cv = cvec_ref[...]          # (5, C): gn_w, gn_b, ln_c_w, ln_c_b, c_b2
    lv = lvec_ref[...]          # (3, L): ln_t_w, ln_t_b, t_b2
    a, b = _gn_coeffs(mu_c, ex2_c, cv[0:1], cv[1:2], adiv_ref[...], at_ref[...])

    def layernorm(v, w, bias):
        m = jnp.mean(v, axis=-1, keepdims=True)
        s = jnp.mean((v - m) ** 2, axis=-1, keepdims=True)
        return (v - m) * jax.lax.rsqrt(s + EPS) * w + bias

    def mlp(h, w1, b1, w2, b2):
        h = jnp.dot(h, w1, preferred_element_type=jnp.float32) + b1
        return jnp.dot(_gelu(h), w2, preferred_element_type=jnp.float32) + b2

    # tokenwise + channelwise attention on pooled tokens, avg & max stacked
    vt = jnp.concatenate([mu_c.T, v_max.T], axis=0)                  # (2C, L) [avg; max]
    vt = vt + mlp(layernorm(vt, lv[0:1], lv[1:2]),
                  t_w1_ref[...], t_b1_ref[...], t_w2_ref[...], lv[2:3])
    v2 = jnp.concatenate([vt[:C].T, vt[C:].T], axis=0)               # (2L, C) [avg; max]
    v2 = v2 + mlp(layernorm(v2, cv[2:3], cv[3:4]),
                  c_w1_ref[...], c_b1_ref[...], c_w2_ref[...], cv[4:5])
    w = jax.nn.sigmoid(v2[:L] + v2[L:])                              # (L, C)

    # pass 2: fused GN + ReLU + channel scale (w > 0 so relu commutes with *w)
    _chunked_apply(x_ref, y_ref, a * w, b * w, chunk, n_chunks, apply_dtype, unroll)


# ---------------------------------------------------------------------------
# Fallback kernel A: per-channel GN affine coefficients + avg/max pools only,
# packed into one lane-dense (tb, 4C) output.  Grid over cdiv(N, tb).
# ---------------------------------------------------------------------------
def gn_stats_pool_kernel(x_ref, cvec_ref, adiv_ref, at_ref, out_ref,
                         *, hw, chunk, n_chunks, unroll):
    C = x_ref.shape[1]
    mu_c, ex2_c, v_max = _chunked_moments(x_ref, hw, chunk, n_chunks, unroll)
    cv = cvec_ref[...]
    a, b = _gn_coeffs(mu_c, ex2_c, cv[0:1], cv[1:2], adiv_ref[...], at_ref[...])
    out_ref[:, 0 * C:1 * C] = a
    out_ref[:, 1 * C:2 * C] = b
    out_ref[:, 2 * C:3 * C] = mu_c
    out_ref[:, 3 * C:4 * C] = v_max


# ---------------------------------------------------------------------------
# Fallback kernel C: fused GN-affine + ReLU + channel scale in one pass
# (s = a*w, t = b*w precomputed in the wrapper).
# ---------------------------------------------------------------------------
def scale_relu_kernel(x_ref, s_ref, t_ref, y_ref, *, chunk, n_chunks, apply_dtype, unroll):
    _chunked_apply(x_ref, y_ref, s_ref[...], t_ref[...], chunk, n_chunks,
                   apply_dtype, unroll)


# ---------------------------------------------------------------------------
# Wrapper helpers
# ---------------------------------------------------------------------------
def _vmem_capacity_bytes():
    try:
        return int(pltpu.get_tpu_info().vmem_capacity_bytes)
    except Exception:
        return 64 << 20            # conservative default (v7x per-TensorCore)


def _bf16_valu():
    # v5e has no bf16 VALU; v6e/v7x do.
    try:
        kind = jax.devices()[0].device_kind.lower()
    except Exception:
        return True
    return not ("v5 lite" in kind or "v5lite" in kind or "v5e" in kind)


def _pick_chunk(rows, hw):
    """Largest {1024,512,256,128}-lane chunk dividing hw with a small f32 temp."""
    if hw % 128 != 0:
        return hw                  # odd spatial size: single full-width chunk
    for cand in (1024, 512, 256, 128):
        if hw % cand == 0 and rows * cand * 4 <= (2 << 20):
            return cand
    return 128


def _pick_tb(n, per_sample_bytes, budget):
    """Rows per fallback block; multiple of 8 (or == n) so 2-D blocks tile cleanly."""
    if n <= 8:
        return n
    tb = int(max(1, min(n, budget // max(per_sample_bytes, 1))))
    tb = max(8, (tb // 8) * 8)
    return min(tb, n)


def _attn_weights_jax(v_avg, v_max, p):
    # Tiny (B, L, C) work — cheaper in plain XLA than a dedicated launch.
    def ln(v, w, b):
        m = v.mean(-1, keepdims=True)
        s = ((v - m) ** 2).mean(-1, keepdims=True)
        return (v - m) * jax.lax.rsqrt(s + EPS) * w + b

    def mlp(v, w1, b1, w2, b2):
        return _gelu(v @ w1 + b1) @ w2 + b2

    def attn(v):                                           # (B, L, C)
        vt = jnp.swapaxes(v, 1, 2)
        h = mlp(ln(vt, p["ln_t_w"], p["ln_t_b"]),
                p["t_w1"], p["t_b1"], p["t_w2"], p["t_b2"])
        v = v + jnp.swapaxes(h, 1, 2)
        h = mlp(ln(v, p["ln_c_w"], p["ln_c_b"]),
                p["c_w1"], p["c_b1"], p["c_w2"], p["c_b2"])
        return v + h

    return jax.nn.sigmoid(attn(v_avg) + attn(v_max))


# ---------------------------------------------------------------------------
# Wrapper
# ---------------------------------------------------------------------------
def tokenwise_channel_attn_block(x, params, n_tokens, *, block_bytes_budget=None):
    N, C, H, W = x.shape
    L = n_tokens
    assert N % L == 0 and C % NUM_GROUPS == 0
    B = N // L
    HW = H * W
    G = NUM_GROUPS
    cpg = C // G
    itemsize = jnp.dtype(x.dtype).itemsize

    # --- generation-aware VMEM budgets (v5e/v6e: 128 MiB/core, v7x: 64 MiB/core) ---
    vmem_cap = _vmem_capacity_bytes()
    if vmem_cap >= (100 << 20):
        vmem_ceiling = 100 << 20
        default_budget = 14 << 20
    else:
        vmem_ceiling = max(40 << 20, min(52 << 20, vmem_cap * 4 // 5))
        default_budget = 5 << 20
    if block_bytes_budget is None:
        block_bytes_budget = default_budget

    # apply-pass dtype: bf16 on bf16-VALU parts when x is bf16, else f32
    apply_dtype = (jnp.bfloat16
                   if (x.dtype == jnp.bfloat16 and _bf16_valu()) else jnp.float32)

    # --- parameters, packed / hoisted once (no per-step transposes / divides) ---
    f32 = jnp.float32
    A = params["group_mat"].astype(f32)                    # (C, G) one-hot
    adiv = A / float(cpg)                                  # aggregation (includes 1/cpg)
    at = A.T                                               # broadcast-back
    cvec = jnp.stack([params["gn_w"], params["gn_b"], params["ln_c_w"],
                      params["ln_c_b"], params["c_b2"]], axis=0).astype(f32)   # (5, C)
    lvec = jnp.stack([params["ln_t_w"], params["ln_t_b"], params["t_b2"]],
                     axis=0).astype(f32)                                       # (3, L)
    thid = params["t_w1"].shape[1]
    chid = params["c_w1"].shape[1]
    t_w1 = params["t_w1"].astype(f32)
    t_b1 = params["t_b1"].reshape(1, thid).astype(f32)
    t_w2 = params["t_w2"].astype(f32)
    c_w1 = params["c_w1"].astype(f32)
    c_b1 = params["c_b1"].reshape(1, chid).astype(f32)
    c_w2 = params["c_w2"].astype(f32)

    fused_params = (cvec, lvec, adiv, at, t_w1, t_b1, t_w2, c_w1, c_b1, c_w2)
    fused_param_specs = [pl.BlockSpec(p.shape, lambda i: (0, 0)) for p in fused_params]

    # ---------------- primary path: one fused kernel, grid over B ----------------
    block_bytes = L * C * HW * itemsize
    chunk = _pick_chunk(L * C, HW)
    n_chunks = HW // chunk
    unroll = n_chunks <= 8
    # 2x in + 2x out pipelined blocks + f32 chunk temporaries + params/headroom
    fused_resident = 4 * block_bytes + 3 * L * C * chunk * 4 + (6 << 20)

    if block_bytes <= block_bytes_budget and fused_resident <= vmem_ceiling:
        x4 = x.reshape(B, L, C, HW)
        vmem_limit = int(min(vmem_ceiling, max(32 << 20, fused_resident)))
        kernel = functools.partial(fused_kernel, hw=HW, chunk=chunk,
                                   n_chunks=n_chunks, apply_dtype=apply_dtype,
                                   unroll=unroll)
        cost = pl.CostEstimate(
            flops=int(8 * N * C * HW),
            transcendentals=int(B * (2 * C * thid + 2 * L * chid + 2 * L * C)),
            bytes_accessed=int(2 * N * C * HW * itemsize))
        y = pl.pallas_call(
            kernel,
            grid=(B,),
            in_specs=[pl.BlockSpec((pl.Squeezed(), L, C, HW),
                                   lambda i: (i, 0, 0, 0))] + fused_param_specs,
            out_specs=pl.BlockSpec((pl.Squeezed(), L, C, HW),
                                   lambda i: (i, 0, 0, 0)),
            out_shape=jax.ShapeDtypeStruct((B, L, C, HW), x.dtype),
            compiler_params=pltpu.CompilerParams(
                dimension_semantics=("parallel",),
                vmem_limit_bytes=vmem_limit),
            cost_estimate=cost,
        )(x4, *fused_params)
        return y.reshape(N, C, H, W)

    # ---------------- fallback path: coeffs+pools -> XLA attn -> fused scale -----
    x3 = x.reshape(N, C, HW)
    per_sample_bytes = C * HW * itemsize
    tb = _pick_tb(N, per_sample_bytes, block_bytes_budget)
    nsteps = pl.cdiv(N, tb)                                # masked last block if needed
    chunk_fb = _pick_chunk(tb * C, HW)
    n_chunks_fb = HW // chunk_fb
    unroll_fb = n_chunks_fb <= 8
    fb_resident = 4 * tb * per_sample_bytes + 3 * tb * C * chunk_fb * 4 + (6 << 20)
    vmem_limit = int(min(vmem_ceiling, max(32 << 20, fb_resident)))
    cparams = pltpu.CompilerParams(dimension_semantics=("parallel",),
                                   vmem_limit_bytes=vmem_limit)

    stats_kernel = functools.partial(gn_stats_pool_kernel, hw=HW, chunk=chunk_fb,
                                     n_chunks=n_chunks_fb, unroll=unroll_fb)
    packed = pl.pallas_call(
        stats_kernel,
        grid=(nsteps,),
        in_specs=[pl.BlockSpec((tb, C, HW), lambda i: (i, 0, 0)),
                  pl.BlockSpec(cvec.shape, lambda i: (0, 0)),
                  pl.BlockSpec(adiv.shape, lambda i: (0, 0)),
                  pl.BlockSpec(at.shape, lambda i: (0, 0))],
        out_specs=pl.BlockSpec((tb, 4 * C), lambda i: (i, 0)),
        out_shape=jax.ShapeDtypeStruct((N, 4 * C), jnp.float32),
        compiler_params=cparams,
        cost_estimate=pl.CostEstimate(
            flops=int(4 * N * C * HW), transcendentals=0,
            bytes_accessed=int(N * C * HW * itemsize + N * 4 * C * 4)),
    )(x3, cvec, adiv, at)

    a = packed[:, 0 * C:1 * C]
    b = packed[:, 1 * C:2 * C]
    v_avg = packed[:, 2 * C:3 * C].reshape(B, L, C)
    v_max = packed[:, 3 * C:4 * C].reshape(B, L, C)

    w = _attn_weights_jax(v_avg, v_max, params).reshape(N, C)
    s = a * w                                              # fold GN affine with channel weight
    t = b * w

    apply_kernel = functools.partial(scale_relu_kernel, chunk=chunk_fb,
                                     n_chunks=n_chunks_fb, apply_dtype=apply_dtype,
                                     unroll=unroll_fb)
    y = pl.pallas_call(
        apply_kernel,
        grid=(nsteps,),
        in_specs=[pl.BlockSpec((tb, C, HW), lambda i: (i, 0, 0)),
                  pl.BlockSpec((tb, C), lambda i: (i, 0)),
                  pl.BlockSpec((tb, C), lambda i: (i, 0))],
        out_specs=pl.BlockSpec((tb, C, HW), lambda i: (i, 0, 0)),
        out_shape=jax.ShapeDtypeStruct((N, C, HW), x.dtype),
        compiler_params=cparams,
        cost_estimate=pl.CostEstimate(
            flops=int(3 * N * C * HW), transcendentals=0,
            bytes_accessed=int(2 * N * C * HW * itemsize)),
    )(x3, s, t)
    return y.reshape(N, C, H, W)


# ---------------------------------------------------------------------------
# Deterministic parameter init (shapes from the module __init__)
# ---------------------------------------------------------------------------
def make_group_mat(C, G):
    cpg = C // G
    c = jnp.arange(C)
    g = jnp.arange(G)
    return (c[:, None] // cpg == g[None, :]).astype(jnp.float32)


def init_params(key, n_tokens, in_channels, mlp_ratio=(1.0, 2.0)):
    L, C = n_tokens, in_channels
    thid = int(L * mlp_ratio[0])
    chid = int(C * mlp_ratio[1])
    f32 = jnp.float32
    ks = jax.random.split(key, 12)
    return dict(
        gn_w=1.0 + 0.1 * jax.random.normal(ks[0], (C,), f32),
        gn_b=0.1 * jax.random.normal(ks[1], (C,), f32),
        ln_t_w=1.0 + 0.1 * jax.random.normal(ks[2], (L,), f32),
        ln_t_b=0.1 * jax.random.normal(ks[3], (L,), f32),
        t_w1=0.2 * jax.random.normal(ks[4], (L, thid), f32),     # fc1 in (x @ W) layout
        t_b1=0.05 * jax.random.normal(ks[5], (thid,), f32),
        t_w2=0.2 * jax.random.normal(ks[6], (thid, L), f32),     # fc2
        t_b2=0.05 * jax.random.normal(ks[7], (L,), f32),
        ln_c_w=1.0 + 0.1 * jax.random.normal(ks[8], (C,), f32),
        ln_c_b=0.1 * jax.random.normal(ks[9], (C,), f32),
        c_w1=0.1 * jax.random.normal(ks[10], (C, chid), f32),
        c_b1=jnp.zeros((chid,), f32),
        c_w2=0.1 * jax.random.normal(ks[11], (chid, C), f32),
        c_b2=jnp.zeros((C,), f32),
        group_mat=make_group_mat(C, NUM_GROUPS),
    )


# ---------------------------------------------------------------------------
# Pure-JAX reference (same semantics as the PyTorch forward) for validation
# ---------------------------------------------------------------------------
def reference_forward(x, p, n_tokens):
    N, C, H, W = x.shape
    L = n_tokens
    B = N // L
    xr = x.reshape(N, NUM_GROUPS, -1)
    mu = xr.mean(-1, keepdims=True)
    var = ((xr - mu) ** 2).mean(-1, keepdims=True)
    xn = ((xr - mu) * jax.lax.rsqrt(var + EPS)).reshape(N, C, H, W)
    out = jnp.maximum(xn * p["gn_w"][None, :, None, None]
                      + p["gn_b"][None, :, None, None], 0.0)

    def ln(v, w, b):
        m = v.mean(-1, keepdims=True)
        s = ((v - m) ** 2).mean(-1, keepdims=True)
        return (v - m) * jax.lax.rsqrt(s + EPS) * w + b

    def mlp(v, w1, b1, w2, b2):
        return _gelu(v @ w1 + b1) @ w2 + b2

    def attn(v):                                           # (B, L, C)
        vt = jnp.swapaxes(v, 1, 2)
        h = mlp(ln(vt, p["ln_t_w"], p["ln_t_b"]),
                p["t_w1"], p["t_b1"], p["t_w2"], p["t_b2"])
        v = v + jnp.swapaxes(h, 1, 2)
        h = mlp(ln(v, p["ln_c_w"], p["ln_c_b"]),
                p["c_w1"], p["c_b1"], p["c_w2"], p["c_b2"])
        return v + h

    v_avg = x.mean(axis=(2, 3)).reshape(B, L, C)
    v_max = x.max(axis=(2, 3)).reshape(B, L, C)
    w = jax.nn.sigmoid(attn(v_avg) + attn(v_max)).reshape(N, C, 1, 1)
    return out * w


if __name__ == "__main__":
    key = jax.random.PRNGKey(0)
    kx, kp = jax.random.split(key)

    # n_tokens=8, in_channels=64 (divisible by the 32 GN groups), HW=256 (lane-dense).
    B, L, C, H, W = 2, 8, 64, 16, 16
    N = B * L                               # torch forward expects batch = B * n_tokens
    x = jax.random.normal(kx, (N, C, H, W), jnp.float32)
    params = init_params(kp, L, C)

    # Primary fully-fused path (grid over B, read x once / write y once).
    fwd_fused = jax.jit(functools.partial(tokenwise_channel_attn_block, n_tokens=L))
    y_fused = jax.block_until_ready(fwd_fused(x, params))

    # Fallback path (coeffs+pools kernel -> XLA attn -> fused scale), forced with
    # a small per-block VMEM budget.
    fwd_split = jax.jit(functools.partial(tokenwise_channel_attn_block, n_tokens=L,
                                          block_bytes_budget=340 * 1024))
    y_split = jax.block_until_ready(fwd_split(x, params))

    y_ref = reference_forward(x, params, L)
    err_f = float(jnp.max(jnp.abs(y_fused - y_ref)))
    err_s = float(jnp.max(jnp.abs(y_split - y_ref)))
    assert jnp.allclose(y_fused, y_ref, atol=1e-4, rtol=1e-4), f"fused max abs err {err_f}"
    assert jnp.allclose(y_split, y_ref, atol=1e-4, rtol=1e-4), f"split max abs err {err_s}"

    # Non-lane-dense spatial size (HW = 100): stays on the fused 2-pass path with
    # a single full-width chunk.
    x_odd = jax.random.normal(kx, (N, C, 10, 10), jnp.float32)
    y_odd = jax.block_until_ready(fwd_fused(x_odd, params))
    y_odd_ref = reference_forward(x_odd, params, L)
    err_o = float(jnp.max(jnp.abs(y_odd - y_odd_ref)))
    assert jnp.allclose(y_odd, y_odd_ref, atol=1e-4, rtol=1e-4), f"odd-HW max abs err {err_o}"

    # Fallback with N not a multiple of tb: exercises the cdiv grid / masked last
    # block (B=3, L=4 -> N=12, tb=8 -> 2 steps, second partially out of bounds).
    L2 = 4
    params2 = init_params(kp, L2, C)
    x2 = jax.random.normal(kx, (3 * L2, C, H, W), jnp.float32)
    fwd_partial = jax.jit(functools.partial(tokenwise_channel_attn_block, n_tokens=L2,
                                            block_bytes_budget=340 * 1024))
    y_partial = jax.block_until_ready(fwd_partial(x2, params2))
    y_partial_ref = reference_forward(x2, params2, L2)
    err_p = float(jnp.max(jnp.abs(y_partial - y_partial_ref)))
    assert jnp.allclose(y_partial, y_partial_ref, atol=1e-4, rtol=1e-4), \
        f"partial-block max abs err {err_p}"

    print("KERNEL_OK")
</pallas_src>

<mosaic_0001>
module attributes {stable_mosaic.version = 11 : i64} {
  func.func @fused_kernel(%arg0: i32, %arg1: memref<1x8x64x256xf32, #tpu.memory_space<vmem>>, %arg2: memref<5x64xf32, #tpu.memory_space<vmem>>, %arg3: memref<3x8xf32, #tpu.memory_space<vmem>>, %arg4: memref<64x32xf32, #tpu.memory_space<vmem>>, %arg5: memref<32x64xf32, #tpu.memory_space<vmem>>, %arg6: memref<8x8xf32, #tpu.memory_space<vmem>>, %arg7: memref<1x8xf32, #tpu.memory_space<vmem>>, %arg8: memref<8x8xf32, #tpu.memory_space<vmem>>, %arg9: memref<64x128xf32, #tpu.memory_space<vmem>>, %arg10: memref<1x128xf32, #tpu.memory_space<vmem>>, %arg11: memref<128x64xf32, #tpu.memory_space<vmem>>, %arg12: memref<1x8x64x256xf32, #tpu.memory_space<vmem>>) attributes {dimension_semantics = [#tpu.dimension_semantics<parallel>], iteration_bounds = array<i64: 2>, scalar_prefetch = 0 : i64, scratch_operands = 0 : i64, tpu.core_type = #tpu.core_type<tc>, window_params = [{transform_indices = @transform_0, window_bounds = array<i64: 1, 8, 64, 256>}, {pipeline_mode = #tpu.pipeline_mode<synchronous>, transform_indices = @transform_1, window_bounds = array<i64: 5, 64>}, {pipeline_mode = #tpu.pipeline_mode<synchronous>, transform_indices = @transform_2, window_bounds = array<i64: 3, 8>}, {pipeline_mode = #tpu.pipeline_mode<synchronous>, transform_indices = @transform_3, window_bounds = array<i64: 64, 32>}, {pipeline_mode = #tpu.pipeline_mode<synchronous>, transform_indices = @transform_4, window_bounds = array<i64: 32, 64>}, {pipeline_mode = #tpu.pipeline_mode<synchronous>, transform_indices = @transform_5, window_bounds = array<i64: 8, 8>}, {pipeline_mode = #tpu.pipeline_mode<synchronous>, transform_indices = @transform_6, window_bounds = array<i64: 1, 8>}, {pipeline_mode = #tpu.pipeline_mode<synchronous>, transform_indices = @transform_7, window_bounds = array<i64: 8, 8>}, {pipeline_mode = #tpu.pipeline_mode<synchronous>, transform_indices = @transform_8, window_bounds = array<i64: 64, 128>}, {pipeline_mode = #tpu.pipeline_mode<synchronous>, transform_indices = @transform_9, window_bounds = array<i64: 1, 128>}, {pipeline_mode = #tpu.pipeline_mode<synchronous>, transform_indices = @transform_10, window_bounds = array<i64: 128, 64>}, {transform_indices = @transform_11, window_bounds = array<i64: 1, 8, 64, 256>}]} {
    %cst = arith.constant 0.000000e+00 : f32
    %0 = vector.broadcast %cst : f32 to vector<8x64xf32>
    %cst_0 = arith.constant 0.000000e+00 : f32
    %1 = vector.broadcast %cst_0 : f32 to vector<8x64xf32>
    %cst_1 = arith.constant 0xFF800000 : f32
    %2 = vector.broadcast %cst_1 : f32 to vector<8x64xf32>
    %c0_i32 = arith.constant 0 : i32
    %c256_i32 = arith.constant 256 : i32
    %3 = arith.muli %c0_i32, %c256_i32 : i32
    %4 = tpu.assume_multiple %3, 256 : i32
    %c0 = arith.constant 0 : index
    %c0_2 = arith.constant 0 : index
    %c0_3 = arith.constant 0 : index
    %5 = arith.index_cast %4 : i32 to index
    %6 = vector.load %arg1[%c0, %c0_2, %c0_3, %5] : memref<1x8x64x256xf32, #tpu.memory_space<vmem>>, vector<1x8x64x256xf32>
    %7 = vector.shape_cast %6 : vector<1x8x64x256xf32> to vector<8x64x256xf32>
    %cst_4 = arith.constant dense<0.000000e+00> : vector<8x64xf32>
    %8 = vector.multi_reduction <add>, %7, %cst_4 [2] : vector<8x64x256xf32> to vector<8x64xf32>
    %9 = arith.addf %0, %8 : vector<8x64xf32>
    %10 = arith.mulf %7, %7 : vector<8x64x256xf32>
    %cst_5 = arith.constant dense<0.000000e+00> : vector<8x64xf32>
    %11 = vector.multi_reduction <add>, %10, %cst_5 [2] : vector<8x64x256xf32> to vector<8x64xf32>
    %12 = arith.addf %1, %11 : vector<8x64xf32>
    %cst_6 = arith.constant dense<0xFF800000> : vector<8x64xf32>
    %13 = vector.multi_reduction <maximumf>, %7, %cst_6 [2] : vector<8x64x256xf32> to vector<8x64xf32>
    %14 = arith.maximumf %2, %13 : vector<8x64xf32>
    %c1_i32 = arith.constant 1 : i32
    %cst_7 = arith.constant 3.906250e-03 : f32
    %15 = vector.broadcast %cst_7 : f32 to vector<8x64xf32>
    %16 = arith.mulf %9, %15 : vector<8x64xf32>
    %cst_8 = arith.constant 3.906250e-03 : f32
    %17 = vector.broadcast %cst_8 : f32 to vector<8x64xf32>
    %18 = arith.mulf %12, %17 : vector<8x64xf32>
    %c0_9 = arith.constant 0 : index
    %c0_10 = arith.constant 0 : index
    %19 = vector.load %arg2[%c0_9, %c0_10] : memref<5x64xf32, #tpu.memory_space<vmem>>, vector<5x64xf32>
    %c0_11 = arith.constant 0 : index
    %c0_12 = arith.constant 0 : index
    %20 = vector.load %arg3[%c0_11, %c0_12] : memref<3x8xf32, #tpu.memory_space<vmem>>, vector<3x8xf32>
    %21 = vector.extract_strided_slice %19 {offsets = [0, 0], sizes = [1, 64], strides = [1, 1]} : vector<5x64xf32> to vector<1x64xf32>
    %22 = vector.extract_strided_slice %19 {offsets = [1, 0], sizes = [1, 64], strides = [1, 1]} : vector<5x64xf32> to vector<1x64xf32>
    %c0_13 = arith.constant 0 : index
    %c0_14 = arith.constant 0 : index
    %23 = vector.load %arg4[%c0_13, %c0_14] : memref<64x32xf32, #tpu.memory_space<vmem>>, vector<64x32xf32>
    %c0_15 = arith.constant 0 : index
    %c0_16 = arith.constant 0 : index
    %24 = vector.load %arg5[%c0_15, %c0_16] : memref<32x64xf32, #tpu.memory_space<vmem>>, vector<32x64xf32>
    %25 = tpu.concatenate %16, %18 in 0 : vector<8x64xf32>, vector<8x64xf32> -> vector<16x64xf32>
    %cst_17 = arith.constant dense<0.000000e+00> : vector<16x32xf32>
    %26 = tpu.matmul %25, %23, %cst_17 {dimension_numbers = #tpu.dot_dimension_numbers<[1], [0], [0], [1], [0, 0, 1, 1], [], []>} : vector<16x64xf32>, vector<64x32xf32>, vector<16x32xf32> -> vector<16x32xf32>
    %cst_18 = arith.constant dense<0.000000e+00> : vector<16x64xf32>
    %27 = tpu.matmul %26, %24, %cst_18 {dimension_numbers = #tpu.dot_dimension_numbers<[1], [0], [0], [1], [0, 0, 1, 1], [], []>} : vector<16x32xf32>, vector<32x64xf32>, vector<16x64xf32> -> vector<16x64xf32>
    %28 = vector.extract_strided_slice %27 {offsets = [0, 0], sizes = [8, 64], strides = [1, 1]} : vector<16x64xf32> to vector<8x64xf32>
    %29 = vector.extract_strided_slice %27 {offsets = [8, 0], sizes = [8, 64], strides = [1, 1]} : vector<16x64xf32> to vector<8x64xf32>
    %30 = arith.mulf %28, %28 : vector<8x64xf32>
    %31 = arith.subf %29, %30 : vector<8x64xf32>
    %cst_19 = arith.constant 0.000000e+00 : f32
    %32 = vector.broadcast %cst_19 : f32 to vector<8x64xf32>
    %33 = arith.maximumf %31, %32 : vector<8x64xf32>
    %cst_20 = arith.constant 9.99999974E-6 : f32
    %34 = vector.broadcast %cst_20 : f32 to vector<8x64xf32>
    %35 = arith.addf %33, %34 : vector<8x64xf32>
    %36 = math.rsqrt %35 : vector<8x64xf32>
    %37 = vector.broadcast %21 : vector<1x64xf32> to vector<8x64xf32>
    %38 = arith.mulf %37, %36 : vector<8x64xf32>
    %39 = arith.mulf %28, %38 : vector<8x64xf32>
    %40 = vector.broadcast %22 : vector<1x64xf32> to vector<8x64xf32>
    %41 = arith.subf %40, %39 : vector<8x64xf32>
    %42 = tpu.transpose %16, [1, 0] : vector<8x64xf32> -> vector<64x8xf32>
    %43 = tpu.transpose %14, [1, 0] : vector<8x64xf32> -> vector<64x8xf32>
    %44 = tpu.concatenate %42, %43 in 0 : vector<64x8xf32>, vector<64x8xf32> -> vector<128x8xf32>
    %45 = vector.extract_strided_slice %20 {offsets = [0, 0], sizes = [1, 8], strides = [1, 1]} : vector<3x8xf32> to vector<1x8xf32>
    %46 = vector.extract_strided_slice %20 {offsets = [1, 0], sizes = [1, 8], strides = [1, 1]} : vector<3x8xf32> to vector<1x8xf32>
    %cst_21 = arith.constant dense<0.000000e+00> : vector<128xf32>
    %47 = vector.multi_reduction <add>, %44, %cst_21 [1] : vector<128x8xf32> to vector<128xf32>
    %48 = vector.shape_cast %47 : vector<128xf32> to vector<128x1xf32>
    %cst_22 = arith.constant 8.000000e+00 : f32
    %49 = vector.broadcast %cst_22 : f32 to vector<128x1xf32>
    %50 = arith.divf %48, %49 : vector<128x1xf32>
    %51 = vector.broadcast %50 : vector<128x1xf32> to vector<128x8xf32>
    %52 = arith.subf %44, %51 : vector<128x8xf32>
    %53 = arith.mulf %52, %52 : vector<128x8xf32>
    %cst_23 = arith.constant dense<0.000000e+00> : vector<128xf32>
    %54 = vector.multi_reduction <add>, %53, %cst_23 [1] : vector<128x8xf32> to vector<128xf32>
    %55 = vector.shape_cast %54 : vector<128xf32> to vector<128x1xf32>
    %cst_24 = arith.constant 8.000000e+00 : f32
    %56 = vector.broadcast %cst_24 : f32 to vector<128x1xf32>
    %57 = arith.divf %55, %56 : vector<128x1xf32>
    %58 = vector.broadcast %50 : vector<128x1xf32> to vector<128x8xf32>
    %59 = arith.subf %44, %58 : vector<128x8xf32>
    %cst_25 = arith.constant 9.99999974E-6 : f32
    %60 = vector.broadcast %cst_25 : f32 to vector<128x1xf32>
    %61 = arith.addf %57, %60 : vector<128x1xf32>
    %62 = math.rsqrt %61 : vector<128x1xf32>
    %63 = vector.broadcast %62 : vector<128x1xf32> to vector<128x8xf32>
    %64 = arith.mulf %59, %63 : vector<128x8xf32>
    %65 = vector.broadcast %45 : vector<1x8xf32> to vector<128x8xf32>
    %66 = arith.mulf %64, %65 : vector<128x8xf32>
    %67 = vector.broadcast %46 : vector<1x8xf32> to vector<128x8xf32>
    %68 = arith.addf %66, %67 : vector<128x8xf32>
    %c0_26 = arith.constant 0 : index
    %c0_27 = arith.constant 0 : index
    %69 = vector.load %arg6[%c0_26, %c0_27] : memref<8x8xf32, #tpu.memory_space<vmem>>, vector<8x8xf32>
    %c0_28 = arith.constant 0 : index
    %c0_29 = arith.constant 0 : index
    %70 = vector.load %arg7[%c0_28, %c0_29] : memref<1x8xf32, #tpu.memory_space<vmem>>, vector<1x8xf32>
    %c0_30 = arith.constant 0 : index
    %c0_31 = arith.constant 0 : index
    %71 = vector.load %arg8[%c0_30, %c0_31] : memref<8x8xf32, #tpu.memory_space<vmem>>, vector<8x8xf32>
    %72 = vector.extract_strided_slice %20 {offsets = [2, 0], sizes = [1, 8], strides = [1, 1]} : vector<3x8xf32> to vector<1x8xf32>
    %cst_32 = arith.constant dense<0.000000e+00> : vector<128x8xf32>
    %73 = tpu.matmul %68, %69, %cst_32 {dimension_numbers = #tpu.dot_dimension_numbers<[1], [0], [0], [1], [0, 0, 1, 1], [], []>} : vector<128x8xf32>, vector<8x8xf32>, vector<128x8xf32> -> vector<128x8xf32>
    %74 = vector.broadcast %70 : vector<1x8xf32> to vector<128x8xf32>
    %75 = arith.addf %73, %74 : vector<128x8xf32>
    %76 = arith.mulf %75, %75 : vector<128x8xf32>
    %77 = arith.mulf %75, %76 : vector<128x8xf32>
    %cst_33 = arith.constant 4.471500e-02 : f32
    %78 = vector.broadcast %cst_33 : f32 to vector<128x8xf32>
    %79 = arith.mulf %78, %77 : vector<128x8xf32>
    %80 = arith.addf %75, %79 : vector<128x8xf32>
    %cst_34 = arith.constant 0.797884583 : f32
    %81 = vector.broadcast %cst_34 : f32 to vector<128x8xf32>
    %82 = arith.mulf %81, %80 : vector<128x8xf32>
    %83 = math.tanh %82 : vector<128x8xf32>
    %cst_35 = arith.constant 1.000000e+00 : f32
    %84 = vector.broadcast %cst_35 : f32 to vector<128x8xf32>
    %85 = arith.addf %84, %83 : vector<128x8xf32>
    %cst_36 = arith.constant 5.000000e-01 : f32
    %86 = vector.broadcast %cst_36 : f32 to vector<128x8xf32>
    %87 = arith.mulf %86, %85 : vector<128x8xf32>
    %88 = arith.mulf %75, %87 : vector<128x8xf32>
    %cst_37 = arith.constant dense<0.000000e+00> : vector<128x8xf32>
    %89 = tpu.matmul %88, %71, %cst_37 {dimension_numbers = #tpu.dot_dimension_numbers<[1], [0], [0], [1], [0, 0, 1, 1], [], []>} : vector<128x8xf32>, vector<8x8xf32>, vector<128x8xf32> -> vector<128x8xf32>
    %90 = vector.broadcast %72 : vector<1x8xf32> to vector<128x8xf32>
    %91 = arith.addf %89, %90 : vector<128x8xf32>
    %92 = arith.addf %44, %91 : vector<128x8xf32>
    %93 = vector.extract_strided_slice %92 {offsets = [0, 0], sizes = [64, 8], strides = [1, 1]} : vector<128x8xf32> to vector<64x8xf32>
    %94 = tpu.transpose %93, [1, 0] : vector<64x8xf32> -> vector<8x64xf32>
    %95 = vector.extract_strided_slice %92 {offsets = [64, 0], sizes = [64, 8], strides = [1, 1]} : vector<128x8xf32> to vector<64x8xf32>
    %96 = tpu.transpose %95, [1, 0] : vector<64x8xf32> -> vector<8x64xf32>
    %97 = tpu.concatenate %94, %96 in 0 : vector<8x64xf32>, vector<8x64xf32> -> vector<16x64xf32>
    %98 = vector.extract_strided_slice %19 {offsets = [2, 0], sizes = [1, 64], strides = [1, 1]} : vector<5x64xf32> to vector<1x64xf32>
    %99 = vector.extract_strided_slice %19 {offsets = [3, 0], sizes = [1, 64], strides = [1, 1]} : vector<5x64xf32> to vector<1x64xf32>
    %cst_38 = arith.constant dense<0.000000e+00> : vector<16xf32>
    %100 = vector.multi_reduction <add>, %97, %cst_38 [1] : vector<16x64xf32> to vector<16xf32>
    %101 = vector.shape_cast %100 : vector<16xf32> to vector<16x1xf32>
    %cst_39 = arith.constant 6.400000e+01 : f32
    %102 = vector.broadcast %cst_39 : f32 to vector<16x1xf32>
    %103 = arith.divf %101, %102 : vector<16x1xf32>
    %104 = vector.broadcast %103 : vector<16x1xf32> to vector<16x64xf32>
    %105 = arith.subf %97, %104 : vector<16x64xf32>
    %106 = arith.mulf %105, %105 : vector<16x64xf32>
    %cst_40 = arith.constant dense<0.000000e+00> : vector<16xf32>
    %107 = vector.multi_reduction <add>, %106, %cst_40 [1] : vector<16x64xf32> to vector<16xf32>
    %108 = vector.shape_cast %107 : vector<16xf32> to vector<16x1xf32>
    %cst_41 = arith.constant 6.400000e+01 : f32
    %109 = vector.broadcast %cst_41 : f32 to vector<16x1xf32>
    %110 = arith.divf %108, %109 : vector<16x1xf32>
    %111 = vector.broadcast %103 : vector<16x1xf32> to vector<16x64xf32>
    %112 = arith.subf %97, %111 : vector<16x64xf32>
    %cst_42 = arith.constant 9.99999974E-6 : f32
    %113 = vector.broadcast %cst_42 : f32 to vector<16x1xf32>
    %114 = arith.addf %110, %113 : vector<16x1xf32>
    %115 = math.rsqrt %114 : vector<16x1xf32>
    %116 = vector.broadcast %115 : vector<16x1xf32> to vector<16x64xf32>
    %117 = arith.mulf %112, %116 : vector<16x64xf32>
    %118 = vector.broadcast %98 : vector<1x64xf32> to vector<16x64xf32>
    %119 = arith.mulf %117, %118 : vector<16x64xf32>
    %120 = vector.broadcast %99 : vector<1x64xf32> to vector<16x64xf32>
    %121 = arith.addf %119, %120 : vector<16x64xf32>
    %c0_43 = arith.constant 0 : index
    %c0_44 = arith.constant 0 : index
    %122 = vector.load %arg9[%c0_43, %c0_44] : memref<64x128xf32, #tpu.memory_space<vmem>>, vector<64x128xf32>
    %c0_45 = arith.constant 0 : index
    %c0_46 = arith.constant 0 : index
    %123 = vector.load %arg10[%c0_45, %c0_46] : memref<1x128xf32, #tpu.memory_space<vmem>>, vector<1x128xf32>
    %c0_47 = arith.constant 0 : index
    %c0_48 = arith.constant 0 : index
    %124 = vector.load %arg11[%c0_47, %c0_48] : memref<128x64xf32, #tpu.memory_space<vmem>>, vector<128x64xf32>
    %125 = vector.extract_strided_slice %19 {offsets = [4, 0], sizes = [1, 64], strides = [1, 1]} : vector<5x64xf32> to vector<1x64xf32>
    %cst_49 = arith.constant dense<0.000000e+00> : vector<16x128xf32>
    %126 = tpu.matmul %121, %122, %cst_49 {dimension_numbers = #tpu.dot_dimension_numbers<[1], [0], [0], [1], [0, 0, 1, 1], [], []>} : vector<16x64xf32>, vector<64x128xf32>, vector<16x128xf32> -> vector<16x128xf32>
    %127 = vector.broadcast %123 : vector<1x128xf32> to vector<16x128xf32>
    %128 = arith.addf %126, %127 : vector<16x128xf32>
    %129 = arith.mulf %128, %128 : vector<16x128xf32>
    %130 = arith.mulf %128, %129 : vector<16x128xf32>
    %cst_50 = arith.constant 4.471500e-02 : f32
    %131 = vector.broadcast %cst_50 : f32 to vector<16x128xf32>
    %132 = arith.mulf %131, %130 : vector<16x128xf32>
    %133 = arith.addf %128, %132 : vector<16x128xf32>
    %cst_51 = arith.constant 0.797884583 : f32
    %134 = vector.broadcast %cst_51 : f32 to vector<16x128xf32>
    %135 = arith.mulf %134, %133 : vector<16x128xf32>
    %136 = math.tanh %135 : vector<16x128xf32>
    %cst_52 = arith.constant 1.000000e+00 : f32
    %137 = vector.broadcast %cst_52 : f32 to vector<16x128xf32>
    %138 = arith.addf %137, %136 : vector<16x128xf32>
    %cst_53 = arith.constant 5.000000e-01 : f32
    %139 = vector.broadcast %cst_53 : f32 to vector<16x128xf32>
    %140 = arith.mulf %139, %138 : vector<16x128xf32>
    %141 = arith.mulf %128, %140 : vector<16x128xf32>
    %cst_54 = arith.constant dense<0.000000e+00> : vector<16x64xf32>
    %142 = tpu.matmul %141, %124, %cst_54 {dimension_numbers = #tpu.dot_dimension_numbers<[1], [0], [0], [1], [0, 0, 1, 1], [], []>} : vector<16x128xf32>, vector<128x64xf32>, vector<16x64xf32> -> vector<16x64xf32>
    %143 = vector.broadcast %125 : vector<1x64xf32> to vector<16x64xf32>
    %144 = arith.addf %142, %143 : vector<16x64xf32>
    %145 = arith.addf %97, %144 : vector<16x64xf32>
    %146 = vector.extract_strided_slice %145 {offsets = [0, 0], sizes = [8, 64], strides = [1, 1]} : vector<16x64xf32> to vector<8x64xf32>
    %147 = vector.extract_strided_slice %145 {offsets = [8, 0], sizes = [8, 64], strides = [1, 1]} : vector<16x64xf32> to vector<8x64xf32>
    %148 = arith.addf %146, %147 : vector<8x64xf32>
    %149 = arith.negf %148 : vector<8x64xf32>
    %150 = math.exp %149 : vector<8x64xf32>
    %cst_55 = arith.constant 1.000000e+00 : f32
    %151 = vector.broadcast %cst_55 : f32 to vector<8x64xf32>
    %152 = arith.addf %151, %150 : vector<8x64xf32>
    %153 = arith.divf %151, %152 : vector<8x64xf32>
    %154 = arith.mulf %38, %153 : vector<8x64xf32>
    %155 = arith.mulf %41, %153 : vector<8x64xf32>
    %156 = vector.shape_cast %154 : vector<8x64xf32> to vector<8x64x1xf32>
    %157 = vector.shape_cast %155 : vector<8x64xf32> to vector<8x64x1xf32>
    %c0_i32_56 = arith.constant 0 : i32
    %c256_i32_57 = arith.constant 256 : i32
    %158 = arith.muli %c0_i32_56, %c256_i32_57 : i32
    %159 = tpu.assume_multiple %158, 256 : i32
    %c0_58 = arith.constant 0 : index
    %c0_59 = arith.constant 0 : index
    %c0_60 = arith.constant 0 : index
    %160 = arith.index_cast %159 : i32 to index
    %161 = vector.load %arg1[%c0_58, %c0_59, %c0_60, %160] : memref<1x8x64x256xf32, #tpu.memory_space<vmem>>, vector<1x8x64x256xf32>
    %162 = vector.shape_cast %161 : vector<1x8x64x256xf32> to vector<8x64x256xf32>
    %163 = vector.broadcast %156 : vector<8x64x1xf32> to vector<8x64x256xf32>
    %164 = arith.mulf %162, %163 : vector<8x64x256xf32>
    %165 = vector.broadcast %157 : vector<8x64x1xf32> to vector<8x64x256xf32>
    %166 = arith.addf %164, %165 : vector<8x64x256xf32>
    %cst_61 = arith.constant 0.000000e+00 : f32
    %167 = vector.broadcast %cst_61 : f32 to vector<8x64x256xf32>
    %168 = arith.maximumf %166, %167 : vector<8x64x256xf32>
    %c0_62 = arith.constant 0 : index
    %c0_63 = arith.constant 0 : index
    %c0_64 = arith.constant 0 : index
    %169 = arith.index_cast %159 : i32 to index
    %170 = vector.load %arg12[%c0_62, %c0_63, %c0_64, %169] : memref<1x8x64x256xf32, #tpu.memory_space<vmem>>, vector<1x8x64x256xf32>
    %171 = vector.shape_cast %170 : vector<1x8x64x256xf32> to vector<8x64x256xf32>
    %172 = vector.shape_cast %168 : vector<8x64x256xf32> to vector<1x8x64x256xf32>
    tpu.vector_store %arg12[%c0_62, %c0_63, %c0_64, %169], %172 {strides = array<i32>} : memref<1x8x64x256xf32, #tpu.memory_space<vmem>>, vector<1x8x64x256xf32>,
    %c1_i32_65 = arith.constant 1 : i32
    return
  }
  func.func @transform_0(%arg0: i32) -> (i32, i32, i32, i32) {
    %c0_i32 = arith.constant 0 : i32
    %c0_i32_0 = arith.constant 0 : i32
    %c0_i32_1 = arith.constant 0 : i32
    %c0_i32_2 = arith.constant 0 : i32
    return %arg0, %c0_i32, %c0_i32_0, %c0_i32_1 : i32, i32, i32, i32
  }
  func.func @transform_1(%arg0: i32) -> (i32, i32) {
    %c0_i32 = arith.constant 0 : i32
    %c0_i32_0 = arith.constant 0 : i32
    %c0_i32_1 = arith.constant 0 : i32
    return %c0_i32, %c0_i32_0 : i32, i32
  }
  func.func @transform_2(%arg0: i32) -> (i32, i32) {
    %c0_i32 = arith.constant 0 : i32
    %c0_i32_0 = arith.constant 0 : i32
    %c0_i32_1 = arith.constant 0 : i32
    return %c0_i32, %c0_i32_0 : i32, i32
  }
  func.func @transform_3(%arg0: i32) -> (i32, i32) {
    %c0_i32 = arith.constant 0 : i32
    %c0_i32_0 = arith.constant 0 : i32
    %c0_i32_1 = arith.constant 0 : i32
    return %c0_i32, %c0_i32_0 : i32, i32
  }
  func.func @transform_4(%arg0: i32) -> (i32, i32) {
    %c0_i32 = arith.constant 0 : i32
    %c0_i32_0 = arith.constant 0 : i32
    %c0_i32_1 = arith.constant 0 : i32
    return %c0_i32, %c0_i32_0 : i32, i32
  }
  func.func @transform_5(%arg0: i32) -> (i32, i32) {
    %c0_i32 = arith.constant 0 : i32
    %c0_i32_0 = arith.constant 0 : i32
    %c0_i32_1 = arith.constant 0 : i32
    return %c0_i32, %c0_i32_0 : i32, i32
  }
  func.func @transform_6(%arg0: i32) -> (i32, i32) {
    %c0_i32 = arith.constant 0 : i32
    %c0_i32_0 = arith.constant 0 : i32
    %c0_i32_1 = arith.constant 0 : i32
    return %c0_i32, %c0_i32_0 : i32, i32
  }
  func.func @transform_7(%arg0: i32) -> (i32, i32) {
    %c0_i32 = arith.constant 0 : i32
    %c0_i32_0 = arith.constant 0 : i32
    %c0_i32_1 = arith.constant 0 : i32
    return %c0_i32, %c0_i32_0 : i32, i32
  }
  func.func @transform_8(%arg0: i32) -> (i32, i32) {
    %c0_i32 = arith.constant 0 : i32
    %c0_i32_0 = arith.constant 0 : i32
    %c0_i32_1 = arith.constant 0 : i32
    return %c0_i32, %c0_i32_0 : i32, i32
  }
  func.func @transform_9(%arg0: i32) -> (i32, i32) {
    %c0_i32 = arith.constant 0 : i32
    %c0_i32_0 = arith.constant 0 : i32
    %c0_i32_1 = arith.constant 0 : i32
    return %c0_i32, %c0_i32_0 : i32, i32
  }
  func.func @transform_10(%arg0: i32) -> (i32, i32) {
    %c0_i32 = arith.constant 0 : i32
    %c0_i32_0 = arith.constant 0 : i32
    %c0_i32_1 = arith.constant 0 : i32
    return %c0_i32, %c0_i32_0 : i32, i32
  }
  func.func @transform_11(%arg0: i32) -> (i32, i32, i32, i32) {
    %c0_i32 = arith.constant 0 : i32
    %c0_i32_0 = arith.constant 0 : i32
    %c0_i32_1 = arith.constant 0 : i32
    %c0_i32_2 = arith.constant 0 : i32
    return %arg0, %c0_i32, %c0_i32_0, %c0_i32_1 : i32, i32, i32, i32
  }
}

</mosaic_0001>

<llo_original>
// kernel: tokenwise_channel_attn_block.1
$region0: #{tokenwise_channel_attn_block.1}
  #allocation0 [shape = 'u32[]', space=smem, size = 0x4, offset = 0x4, fixed_abs, tag = 'smem constant byte address 0x4 - core index']
  #allocation1 [shape = 'u32[144,128]{1,0:T(1,128)}', space=vmem, size = 0x12000, scoped, tag = 'internal scratch']
  %s0 = inlined_call_operand.vmem [shape: f32[2,8,64,256], index: 0, kind: input, shape index: {}]
  %s1 = inlined_call_operand.vmem [shape: f32[5,64], index: 1, kind: input, shape index: {}]
  %s2 = inlined_call_operand.vmem [shape: f32[3,8], index: 2, kind: input, shape index: {}]
  %s3 = inlined_call_operand.vmem [shape: f32[64,32], index: 3, kind: input, shape index: {}]
  %s4 = inlined_call_operand.vmem [shape: f32[32,64], index: 4, kind: input, shape index: {}]
  %s5 = inlined_call_operand.vmem [shape: f32[8,8], index: 5, kind: input, shape index: {}]
  %s6 = inlined_call_operand.vmem [shape: f32[1,8], index: 6, kind: input, shape index: {}]
  %s7 = inlined_call_operand.vmem [shape: f32[8,8], index: 7, kind: input, shape index: {}]
  %s8 = inlined_call_operand.vmem [shape: f32[64,128], index: 8, kind: input, shape index: {}]
  %s9 = inlined_call_operand.vmem [shape: f32[1,128], index: 9, kind: input, shape index: {}]
  %s10 = inlined_call_operand.vmem [shape: f32[128,64], index: 10, kind: input, shape index: {}]
  %s11 = inlined_call_operand.vmem [shape: f32[2,8,64,256], index: 11, kind: output, shape index: {}]
  %s12 = sld [smem:[#allocation0]]
  $region77: #{tokenwise_channel_attn_block.1} parent=0
    _
  %s14 = ssub.s32 1, %s12
  %s15 = scalar_select 0, %s14, %s12
  loop: start=0, step=1, limit=4
  $region2: #{tokenwise_channel_attn_block.1} parent=0 // loop_pre_header
    _
  $region3: #{tokenwise_channel_attn_block.1} parent=0 // loop_header
    %s17 = sphi 0, %s21
    %p18 = scmp.ge.s32.totalorder %s17, 4
    %s27 = sphi 0, %s29
    %s30 = sphi 0, %s27
    %s31 = sphi 0, %s30
    %s47 = sphi 0, %s31
    %s51 = sphi 0, %s51
    %s53 = sphi 0, %s51
    %s54 = sphi 0, %s53
    %s68 = sphi 0, %s54
    %s72 = sphi 0, %s72
    %s74 = sphi 0, %s72
    %s75 = sphi 0, %s74
    %s89 = sphi 0, %s75
    %s93 = sphi 0, %s93
    %s95 = sphi 0, %s93
    %s96 = sphi 0, %s95
    %s110 = sphi 0, %s96
    %s114 = sphi 0, %s114
    %s116 = sphi 0, %s114
    %s117 = sphi 0, %s116
    %s131 = sphi 0, %s117
    %s135 = sphi 0, %s135
    %s137 = sphi 0, %s135
    %s138 = sphi 0, %s137
    %s152 = sphi 0, %s138
    %s156 = sphi 0, %s156
    %s158 = sphi 0, %s156
    %s159 = sphi 0, %s158
    %s173 = sphi 0, %s159
    %s177 = sphi 0, %s177
    %s179 = sphi 0, %s177
    %s180 = sphi 0, %s179
    %s194 = sphi 0, %s180
    %s198 = sphi 0, %s198
    %s200 = sphi 0, %s198
    %s201 = sphi 0, %s200
    %s215 = sphi 0, %s201
    %s219 = sphi 0, %s219
    %s221 = sphi 0, %s219
    %s222 = sphi 0, %s221
    %s236 = sphi 0, %s222
    %s240 = sphi 0, %s240
    %s242 = sphi 0, %s240
    %s243 = sphi 0, %s242
    %s257 = sphi 0, %s243
    %s263 = sphi 0, %s265
    %s266 = sphi 0, %s263
    %s267 = sphi 0, %s266
    %s283 = sphi 0, %s267
  $region4: #{tokenwise_channel_attn_block.1} parent=0 // loop_header_branch
    %20 = sbr.rel (%p18) target = $region8
  $region5: #{tokenwise_channel_attn_block.1} parent=0 // loop_body
    %s22 = ssub.s32 %s17, 1
    %s23 = ssub.s32 %s17, 2
    %s24 = sadd.s32 %s17, 1
    %s25 = ssub.s32 %s17, %s24
    %p26 = scmp.eq.s32.totalorder %s25, 0
    %s28 = sadd.s32 %s27, 1
    %s29 = scalar_select %p26, %s27, %s28
    %p32 = pneg %p26
    %p33 = scmp.eq.s32.totalorder %s17, 1
    %p34 = por %p32, %p33
    %p35 = scmp.ne.s32.totalorder %s27, %s30
    %p36 = scmp.eq.s32.totalorder %s17, 0
    %p37 = por %p35, %p36
    %p38 = scmp.ne.s32.totalorder %s27, %s30
    %p39 = scmp.eq.s32.totalorder %s22, 1
    %p40 = por %p38, %p39
    %p41 = scmp.ne.s32.totalorder %s30, %s31
    %p42 = scmp.eq.s32.totalorder %s22, 0
    %p43 = por %p41, %p42
    %p44 = scmp.ne.s32.totalorder %s30, %s31
    %p45 = scmp.eq.s32.totalorder %s23, 1
    %p46 = por %p44, %p45
    %p48 = scmp.ne.s32.totalorder %s31, %s47
    %p49 = scmp.eq.s32.totalorder %s23, 0
    %p50 = por %p48, %p49
    %s52 = sadd.s32 %s51, 1
    %p55 = scmp.eq.s32.totalorder %s17, 1
    %p56 = scmp.ne.s32.totalorder %s51, %s53
    %p57 = scmp.eq.s32.totalorder %s17, 0
    %p58 = por %p56, %p57
    %p59 = scmp.ne.s32.totalorder %s51, %s53
    %p60 = scmp.eq.s32.totalorder %s22, 1
    %p61 = por %p59, %p60
    %p62 = scmp.ne.s32.totalorder %s53, %s54
    %p63 = scmp.eq.s32.totalorder %s22, 0
    %p64 = por %p62, %p63
    %p65 = scmp.ne.s32.totalorder %s53, %s54
    %p66 = scmp.eq.s32.totalorder %s23, 1
    %p67 = por %p65, %p66
    %p69 = scmp.ne.s32.totalorder %s54, %s68
    %p70 = scmp.eq.s32.totalorder %s23, 0
    %p71 = por %p69, %p70
    %s73 = sadd.s32 %s72, 1
    %p76 = scmp.eq.s32.totalorder %s17, 1
    %p77 = scmp.ne.s32.totalorder %s72, %s74
    %p78 = scmp.eq.s32.totalorder %s17, 0
    %p79 = por %p77, %p78
    %p80 = scmp.ne.s32.totalorder %s72, %s74
    %p81 = scmp.eq.s32.totalorder %s22, 1
    %p82 = por %p80, %p81
    %p83 = scmp.ne.s32.totalorder %s74, %s75
    %p84 = scmp.eq.s32.totalorder %s22, 0
    %p85 = por %p83, %p84
    %p86 = scmp.ne.s32.totalorder %s74, %s75
    %p87 = scmp.eq.s32.totalorder %s23, 1
    %p88 = por %p86, %p87
    %p90 = scmp.ne.s32.totalorder %s75, %s89
    %p91 = scmp.eq.s32.totalorder %s23, 0
    %p92 = por %p90, %p91
    %s94 = sadd.s32 %s93, 1
    %p97 = scmp.eq.s32.totalorder %s17, 1
    %p98 = scmp.ne.s32.totalorder %s93, %s95
    %p99 = scmp.eq.s32.totalorder %s17, 0
    %p100 = por %p98, %p99
    %p101 = scmp.ne.s32.totalorder %s93, %s95
    %p102 = scmp.eq.s32.totalorder %s22, 1
    %p103 = por %p101, %p102
    %p104 = scmp.ne.s32.totalorder %s95, %s96
    %p105 = scmp.eq.s32.totalorder %s22, 0
    %p106 = por %p104, %p105
    %p107 = scmp.ne.s32.totalorder %s95, %s96
    %p108 = scmp.eq.s32.totalorder %s23, 1
    %p109 = por %p107, %p108
    %p111 = scmp.ne.s32.totalorder %s96, %s110
    %p112 = scmp.eq.s32.totalorder %s23, 0
    %p113 = por %p111, %p112
    %s115 = sadd.s32 %s114, 1
    %p118 = scmp.eq.s32.totalorder %s17, 1
    %p119 = scmp.ne.s32.totalorder %s114, %s116
    %p120 = scmp.eq.s32.totalorder %s17, 0
    %p121 = por %p119, %p120
    %p122 = scmp.ne.s32.totalorder %s114, %s116
    %p123 = scmp.eq.s32.totalorder %s22, 1
    %p124 = por %p122, %p123
    %p125 = scmp.ne.s32.totalorder %s116, %s117
    %p126 = scmp.eq.s32.totalorder %s22, 0
    %p127 = por %p125, %p126
    %p128 = scmp.ne.s32.totalorder %s116, %s117
    %p129 = scmp.eq.s32.totalorder %s23, 1
    %p130 = por %p128, %p129
    %p132 = scmp.ne.s32.totalorder %s117, %s131
    %p133 = scmp.eq.s32.totalorder %s23, 0
    %p134 = por %p132, %p133
    %s136 = sadd.s32 %s135, 1
    %p139 = scmp.eq.s32.totalorder %s17, 1
    %p140 = scmp.ne.s32.totalorder %s135, %s137
    %p141 = scmp.eq.s32.totalorder %s17, 0
    %p142 = por %p140, %p141
    %p143 = scmp.ne.s32.totalorder %s135, %s137
    %p144 = scmp.eq.s32.totalorder %s22, 1
    %p145 = por %p143, %p144
    %p146 = scmp.ne.s32.totalorder %s137, %s138
    %p147 = scmp.eq.s32.totalorder %s22, 0
    %p148 = por %p146, %p147
    %p149 = scmp.ne.s32.totalorder %s137, %s138
    %p150 = scmp.eq.s32.totalorder %s23, 1
    %p151 = por %p149, %p150
    %p153 = scmp.ne.s32.totalorder %s138, %s152
    %p154 = scmp.eq.s32.totalorder %s23, 0
    %p155 = por %p153, %p154
    %s157 = sadd.s32 %s156, 1
    %p160 = scmp.eq.s32.totalorder %s17, 1
    %p161 = scmp.ne.s32.totalorder %s156, %s158
    %p162 = scmp.eq.s32.totalorder %s17, 0
    %p163 = por %p161, %p162
    %p164 = scmp.ne.s32.totalorder %s156, %s158
    %p165 = scmp.eq.s32.totalorder %s22, 1
    %p166 = por %p164, %p165
    %p167 = scmp.ne.s32.totalorder %s158, %s159
    %p168 = scmp.eq.s32.totalorder %s22, 0
    %p169 = por %p167, %p168
    %p170 = scmp.ne.s32.totalorder %s158, %s159
    %p171 = scmp.eq.s32.totalorder %s23, 1
    %p172 = por %p170, %p171
    %p174 = scmp.ne.s32.totalorder %s159, %s173
    %p175 = scmp.eq.s32.totalorder %s23, 0
    %p176 = por %p174, %p175
    %s178 = sadd.s32 %s177, 1
    %p181 = scmp.eq.s32.totalorder %s17, 1
    %p182 = scmp.ne.s32.totalorder %s177, %s179
    %p183 = scmp.eq.s32.totalorder %s17, 0
    %p184 = por %p182, %p183
    %p185 = scmp.ne.s32.totalorder %s177, %s179
    %p186 = scmp.eq.s32.totalorder %s22, 1
    %p187 = por %p185, %p186
    %p188 = scmp.ne.s32.totalorder %s179, %s180
    %p189 = scmp.eq.s32.totalorder %s22, 0
    %p190 = por %p188, %p189
    %p191 = scmp.ne.s32.totalorder %s179, %s180
    %p192 = scmp.eq.s32.totalorder %s23, 1
    %p193 = por %p191, %p192
    %p195 = scmp.ne.s32.totalorder %s180, %s194
    %p196 = scmp.eq.s32.totalorder %s23, 0
    %p197 = por %p195, %p196
    %s199 = sadd.s32 %s198, 1
    %p202 = scmp.eq.s32.totalorder %s17, 1
    %p203 = scmp.ne.s32.totalorder %s198, %s200
    %p204 = scmp.eq.s32.totalorder %s17, 0
    %p205 = por %p203, %p204
    %p206 = scmp.ne.s32.totalorder %s198, %s200
    %p207 = scmp.eq.s32.totalorder %s22, 1
    %p208 = por %p206, %p207
    %p209 = scmp.ne.s32.totalorder %s200, %s201
    %p210 = scmp.eq.s32.totalorder %s22, 0
    %p211 = por %p209, %p210
    %p212 = scmp.ne.s32.totalorder %s200, %s201
    %p213 = scmp.eq.s32.totalorder %s23, 1
    %p214 = por %p212, %p213
    %p216 = scmp.ne.s32.totalorder %s201, %s215
    %p217 = scmp.eq.s32.totalorder %s23, 0
    %p218 = por %p216, %p217
    %s220 = sadd.s32 %s219, 1
    %p223 = scmp.eq.s32.totalorder %s17, 1
    %p224 = scmp.ne.s32.totalorder %s219, %s221
    %p225 = scmp.eq.s32.totalorder %s17, 0
    %p226 = por %p224, %p225
    %p227 = scmp.ne.s32.totalorder %s219, %s221
    %p228 = scmp.eq.s32.totalorder %s22, 1
    %p229 = por %p227, %p228
    %p230 = scmp.ne.s32.totalorder %s221, %s222
    %p231 = scmp.eq.s32.totalorder %s22, 0
    %p232 = por %p230, %p231
    %p233 = scmp.ne.s32.totalorder %s221, %s222
    %p234 = scmp.eq.s32.totalorder %s23, 1
    %p235 = por %p233, %p234
    %p237 = scmp.ne.s32.totalorder %s222, %s236
    %p238 = scmp.eq.s32.totalorder %s23, 0
    %p239 = por %p237, %p238
    %s241 = sadd.s32 %s240, 1
    %p244 = scmp.eq.s32.totalorder %s17, 1
    %p245 = scmp.ne.s32.totalorder %s240, %s242
    %p246 = scmp.eq.s32.totalorder %s17, 0
    %p247 = por %p245, %p246
    %p248 = scmp.ne.s32.totalorder %s240, %s242
    %p249 = scmp.eq.s32.totalorder %s22, 1
    %p250 = por %p248, %p249
    %p251 = scmp.ne.s32.totalorder %s242, %s243
    %p252 = scmp.eq.s32.totalorder %s22, 0
    %p253 = por %p251, %p252
    %p254 = scmp.ne.s32.totalorder %s242, %s243
    %p255 = scmp.eq.s32.totalorder %s23, 1
    %p256 = por %p254, %p255
    %p258 = scmp.ne.s32.totalorder %s243, %s257
    %p259 = scmp.eq.s32.totalorder %s23, 0
    %p260 = por %p258, %p259
    %s261 = ssub.s32 %s17, %s24
    %p262 = scmp.eq.s32.totalorder %s261, 0
    %s264 = sadd.s32 %s263, 1
    %s265 = scalar_select %p262, %s263, %s264
    %p268 = pneg %p262
    %p269 = scmp.eq.s32.totalorder %s17, 1
    %p270 = por %p268, %p269
    %p271 = scmp.ne.s32.totalorder %s263, %s266
    %p272 = scmp.eq.s32.totalorder %s17, 0
    %p273 = por %p271, %p272
    %p274 = scmp.ne.s32.totalorder %s263, %s266
    %p275 = scmp.eq.s32.totalorder %s22, 1
    %p276 = por %p274, %p275
    %p277 = scmp.ne.s32.totalorder %s266, %s267
    %p278 = scmp.eq.s32.totalorder %s22, 0
    %p279 = por %p277, %p278
    %p280 = scmp.ne.s32.totalorder %s266, %s267
    %p281 = scmp.eq.s32.totalorder %s23, 1
    %p282 = por %p280, %p281
    %p284 = scmp.ne.s32.totalorder %s267, %s283
    %p285 = scmp.eq.s32.totalorder %s23, 0
    %p286 = por %p284, %p285
    %p287 = scmp.le.s32.totalorder 1, %s17
    %p288 = scmp.lt.s32.totalorder %s17, 3
    %p289 = pnand %p287, %p288
    %p290 = pneg %p289
    // Predicated region
    $region9: #{tokenwise_channel_attn_block.1} parent=5 // pred_check
      _
    $region10: #{tokenwise_channel_attn_block.1} parent=5 // pred_check_branch
      %292 = sbr.rel (%p289) target = $region12
    $region11: #{tokenwise_channel_attn_block.1} parent=5 // pred_region
      %s293 = ssub.s32 %s17, 1
      // Predicated region
      $region13: #{tokenwise_channel_attn_block.1} parent=11 // pred_check
        %p294 = pneg %p64
      $region14: #{tokenwise_channel_attn_block.1} parent=11 // pred_check_branch
        %296 = sbr.rel (%p294) target = $region16
      $region15: #{tokenwise_channel_attn_block.1} parent=11 // pred_region
        _
      $region16: #{tokenwise_channel_attn_block.1} parent=11 // pred_fallthru
        _
      // Predicated region
      $region17: #{tokenwise_channel_attn_block.1} parent=11 // pred_check
        %p297 = pneg %p85
      $region18: #{tokenwise_channel_attn_block.1} parent=11 // pred_check_branch
        %299 = sbr.rel (%p297) target = $region20
      $region19: #{tokenwise_channel_attn_block.1} parent=11 // pred_region
        _
      $region20: #{tokenwise_channel_attn_block.1} parent=11 // pred_fallthru
        _
      // Predicated region
      $region21: #{tokenwise_channel_attn_block.1} parent=11 // pred_check
        %p300 = pneg %p106
      $region22: #{tokenwise_channel_attn_block.1} parent=11 // pred_check_branch
        %302 = sbr.rel (%p300) target = $region24
      $region23: #{tokenwise_channel_attn_block.1} parent=11 // pred_region
        _
      $region24: #{tokenwise_channel_attn_block.1} parent=11 // pred_fallthru
        _
      // Predicated region
      $region25: #{tokenwise_channel_attn_block.1} parent=11 // pred_check
        %p303 = pneg %p127
      $region26: #{tokenwise_channel_attn_block.1} parent=11 // pred_check_branch
        %305 = sbr.rel (%p303) target = $region28
      $region27: #{tokenwise_channel_attn_block.1} parent=11 // pred_region
        _
      $region28: #{tokenwise_channel_attn_block.1} parent=11 // pred_fallthru
        _
      // Predicated region
      $region29: #{tokenwise_channel_attn_block.1} parent=11 // pred_check
        %p306 = pneg %p148
      $region30: #{tokenwise_channel_attn_block.1} parent=11 // pred_check_branch
        %308 = sbr.rel (%p306) target = $region32
      $region31: #{tokenwise_channel_attn_block.1} parent=11 // pred_region
        _
      $region32: #{tokenwise_channel_attn_block.1} parent=11 // pred_fallthru
        _
      // Predicated region
      $region33: #{tokenwise_channel_attn_block.1} parent=11 // pred_check
        %p309 = pneg %p169
      $region34: #{tokenwise_channel_attn_block.1} parent=11 // pred_check_branch
        %311 = sbr.rel (%p309) target = $region36
      $region35: #{tokenwise_channel_attn_block.1} parent=11 // pred_region
        _
      $region36: #{tokenwise_channel_attn_block.1} parent=11 // pred_fallthru
        _
      // Predicated region
      $region37: #{tokenwise_channel_attn_block.1} parent=11 // pred_check
        %p312 = pneg %p190
      $region38: #{tokenwise_channel_attn_block.1} parent=11 // pred_check_branch
        %314 = sbr.rel (%p312) target = $region40
      $region39: #{tokenwise_channel_attn_block.1} parent=11 // pred_region
        _
      $region40: #{tokenwise_channel_attn_block.1} parent=11 // pred_fallthru
        _
      // Predicated region
      $region41: #{tokenwise_channel_attn_block.1} parent=11 // pred_check
        %p315 = pneg %p211
      $region42: #{tokenwise_channel_attn_block.1} parent=11 // pred_check_branch
        %317 = sbr.rel (%p315) target = $region44
      $region43: #{tokenwise_channel_attn_block.1} parent=11 // pred_region
        _
      $region44: #{tokenwise_channel_attn_block.1} parent=11 // pred_fallthru
        _
      // Predicated region
      $region45: #{tokenwise_channel_attn_block.1} parent=11 // pred_check
        %p318 = pneg %p232
      $region46: #{tokenwise_channel_attn_block.1} parent=11 // pred_check_branch
        %320 = sbr.rel (%p318) target = $region48
      $region47: #{tokenwise_channel_attn_block.1} parent=11 // pred_region
        _
      $region48: #{tokenwise_channel_attn_block.1} parent=11 // pred_fallthru
        _
      // Predicated region
      $region49: #{tokenwise_channel_attn_block.1} parent=11 // pred_check
        %p321 = pneg %p253
      $region50: #{tokenwise_channel_attn_block.1} parent=11 // pred_check_branch
        %323 = sbr.rel (%p321) target = $region52
      $region51: #{tokenwise_channel_attn_block.1} parent=11 // pred_region
        _
      $region52: #{tokenwise_channel_attn_block.1} parent=11 // pred_fallthru
        _
    $region12: #{tokenwise_channel_attn_block.1} parent=5 // pred_fallthru
      _
    %p324 = scmp.lt.s32.totalorder %s17, 2
    // Predicated region
    $region53: #{tokenwise_channel_attn_block.1} parent=5 // pred_check
      %p325 = pneg %p324
    $region54: #{tokenwise_channel_attn_block.1} parent=5 // pred_check_branch
      %327 = sbr.rel (%p325) target = $region56
    $region55: #{tokenwise_channel_attn_block.1} parent=5 // pred_region
      // Predicated region
      $region57: #{tokenwise_channel_attn_block.1} parent=55 // pred_check
        %p328 = pneg %p37
      $region58: #{tokenwise_channel_attn_block.1} parent=55 // pred_check_branch
        %330 = sbr.rel (%p328) target = $region60
      $region59: #{tokenwise_channel_attn_block.1} parent=55 // pred_region
        %p331 = scmp.lt.s32.totalorder %s17, 1
        %s332 = scalar_select %p331, %s17, 1
        %s333 = smul.addr %s332, 128
        %s334 = smul.addr %s333, 8
        %s335 = scalar_lea.vmem %s0, %s334
      $region60: #{tokenwise_channel_attn_block.1} parent=55 // pred_fallthru
        _
    $region56: #{tokenwise_channel_attn_block.1} parent=5 // pred_fallthru
      _
    %p336 = scmp.le.s32.totalorder 1, %s17
    %p337 = scmp.lt.s32.totalorder %s17, 3
    %p338 = pnand %p336, %p337
    %p339 = pneg %p338
    // Predicated region
    $region61: #{tokenwise_channel_attn_block.1} parent=5 // pred_check
      _
    $region62: #{tokenwise_channel_attn_block.1} parent=5 // pred_check_branch
      %341 = sbr.rel (%p338) target = $region64
    $region63: #{tokenwise_channel_attn_block.1} parent=5 // pred_region
      %s342 = ssub.s32 %s17, 1
      %p343 = scmp.lt.s32.totalorder %s22, 1
      %s344 = scalar_select %p343, %s22, 1
      %s345 = smul.addr %s344, 128
      %s346 = smul.addr %s345, 8
      %s347 = scalar_lea.vmem %s0, %s346
      %p348 = pneg %p43
      %p349 = pneg %p40
      %p350 = pneg %p64
      %p351 = pneg %p61
      %p352 = pneg %p85
      %p353 = pneg %p82
      %p354 = pneg %p106
      %p355 = pneg %p103
      %p356 = pneg %p127
      %p357 = pneg %p124
      %p358 = pneg %p148
      %p359 = pneg %p145
      %p360 = pneg %p169
      %p361 = pneg %p166
      %p362 = pneg %p190
      %p363 = pneg %p187
      %p364 = pneg %p211
      %p365 = pneg %p208
      %p366 = pneg %p232
      %p367 = pneg %p229
      %p368 = pneg %p253
      %p369 = pneg %p250
      %p370 = pneg %p279
      %p371 = pneg %p276
      %p372 = scmp.lt.s32.totalorder %s22, 1
      %s373 = scalar_select %p372, %s22, 1
      %s374 = smul.addr %s373, 128
      %s375 = smul.addr %s374, 8
      %s376 = scalar_lea.vmem %s11, %s375
      %p377 = scmp.lt.s32.totalorder %s22, 1
      %s378 = scalar_select %p377, %s22, 1
      %s379 = smul.addr %s378, 128
      %s380 = smul.addr %s379, 8
      %s381 = scalar_lea.vmem %s0, %s380
      %p382 = scmp.lt.s32.totalorder %s22, 1
      %s383 = scalar_select %p382, %s22, 1
      %s384 = smul.addr %s383, 128
      %s385 = smul.addr %s384, 8
      %s386 = scalar_lea.vmem %s11, %s385
      %v387 = vld [vmem:[%s381] sm:$0xff]
      %v388 = vld [vmem:[%s381 + $0x8] sm:$0xff]
      %v389 = vld [vmem:[%s381 + $0x10] sm:$0xff]
      %v390 = vld [vmem:[%s381 + $0x18] sm:$0xff]
      %v391 = vld [vmem:[%s381 + $0x20] sm:$0xff]
      %v392 = vld [vmem:[%s381 + $0x28] sm:$0xff]
      %v393 = vld [vmem:[%s381 + $0x30] sm:$0xff]
      %v394 = vld [vmem:[%s381 + $0x38] sm:$0xff]
      %v395 = vld [vmem:[%s381 + $0x40] sm:$0xff]
      %v396 = vld [vmem:[%s381 + $0x48] sm:$0xff]
      %v397 = vld [vmem:[%s381 + $0x50] sm:$0xff]
      %v398 = vld [vmem:[%s381 + $0x58] sm:$0xff]
      %v399 = vld [vmem:[%s381 + $0x60] sm:$0xff]
      %v400 = vld [vmem:[%s381 + $0x68] sm:$0xff]
      %v401 = vld [vmem:[%s381 + $0x70] sm:$0xff]
      %v402 = vld [vmem:[%s381 + $0x78] sm:$0xff]
      %v403 = vld [vmem:[%s381 + $0x80] sm:$0xff]
      %v404 = vld [vmem:[%s381 + $0x88] sm:$0xff]
      %v405 = vld [vmem:[%s381 + $0x90] sm:$0xff]
      %v406 = vld [vmem:[%s381 + $0x98] sm:$0xff]
      %v407 = vld [vmem:[%s381 + $0xa0] sm:$0xff]
      %v408 = vld [vmem:[%s381 + $0xa8] sm:$0xff]
      %v409 = vld [vmem:[%s381 + $0xb0] sm:$0xff]
      %v410 = vld [vmem:[%s381 + $0xb8] sm:$0xff]
      %v411 = vld [vmem:[%s381 + $0xc0] sm:$0xff]
      %v412 = vld [vmem:[%s381 + $0xc8] sm:$0xff]
      %v413 = vld [vmem:[%s381 + $0xd0] sm:$0xff]
      %v414 = vld [vmem:[%s381 + $0xd8] sm:$0xff]
      %v415 = vld [vmem:[%s381 + $0xe0] sm:$0xff]
      %v416 = vld [vmem:[%s381 + $0xe8] sm:$0xff]
      %v417 = vld [vmem:[%s381 + $0xf0] sm:$0xff]
      %v418 = vld [vmem:[%s381 + $0xf8] sm:$0xff]
      %v419 = vld [vmem:[%s381 + $0x100] sm:$0xff]
      %v420 = vld [vmem:[%s381 + $0x108] sm:$0xff]
      %v421 = vld [vmem:[%s381 + $0x110] sm:$0xff]
      %v422 = vld [vmem:[%s381 + $0x118] sm:$0xff]
      %v423 = vld [vmem:[%s381 + $0x120] sm:$0xff]
      %v424 = vld [vmem:[%s381 + $0x128] sm:$0xff]
      %v425 = vld [vmem:[%s381 + $0x130] sm:$0xff]
      %v426 = vld [vmem:[%s381 + $0x138] sm:$0xff]
      %v427 = vld [vmem:[%s381 + $0x140] sm:$0xff]
      %v428 = vld [vmem:[%s381 + $0x148] sm:$0xff]
      %v429 = vld [vmem:[%s381 + $0x150] sm:$0xff]
      %v430 = vld [vmem:[%s381 + $0x158] sm:$0xff]
      %v431 = vld [vmem:[%s381 + $0x160] sm:$0xff]
      %v432 = vld [vmem:[%s381 + $0x168] sm:$0xff]
      %v433 = vld [vmem:[%s381 + $0x170] sm:$0xff]
      %v434 = vld [vmem:[%s381 + $0x178] sm:$0xff]
      %v435 = vld [vmem:[%s381 + $0x180] sm:$0xff]
      %v436 = vld [vmem:[%s381 + $0x188] sm:$0xff]
      %v437 = vld [vmem:[%s381 + $0x190] sm:$0xff]
      %v438 = vld [vmem:[%s381 + $0x198] sm:$0xff]
      %v439 = vld [vmem:[%s381 + $0x1a0] sm:$0xff]
      %v440 = vld [vmem:[%s381 + $0x1a8] sm:$0xff]
      %v441 = vld [vmem:[%s381 + $0x1b0] sm:$0xff]
      %v442 = vld [vmem:[%s381 + $0x1b8] sm:$0xff]
      %v443 = vld [vmem:[%s381 + $0x1c0] sm:$0xff]
      %v444 = vld [vmem:[%s381 + $0x1c8] sm:$0xff]
      %v445 = vld [vmem:[%s381 + $0x1d0] sm:$0xff]
      %v446 = vld [vmem:[%s381 + $0x1d8] sm:$0xff]
      %v447 = vld [vmem:[%s381 + $0x1e0] sm:$0xff]
      %v448 = vld [vmem:[%s381 + $0x1e8] sm:$0xff]
      %v449 = vld [vmem:[%s381 + $0x1f0] sm:$0xff]
      %v450 = vld [vmem:[%s381 + $0x1f8] sm:$0xff]
      %v451 = vld [vmem:[%s381 + $0x200] sm:$0xff]
      %v452 = vld [vmem:[%s381 + $0x208] sm:$0xff]
      %v453 = vld [vmem:[%s381 + $0x210] sm:$0xff]
      %v454 = vld [vmem:[%s381 + $0x218] sm:$0xff]
      %v455 = vld [vmem:[%s381 + $0x220] sm:$0xff]
      %v456 = vld [vmem:[%s381 + $0x228] sm:$0xff]
      %v457 = vld [vmem:[%s381 + $0x230] sm:$0xff]
      %v458 = vld [vmem:[%s381 + $0x238] sm:$0xff]
      %v459 = vld [vmem:[%s381 + $0x240] sm:$0xff]
      %v460 = vld [vmem:[%s381 + $0x248] sm:$0xff]
      %v461 = vld [vmem:[%s381 + $0x250] sm:$0xff]
      %v462 = vld [vmem:[%s381 + $0x258] sm:$0xff]
      %v463 = vld [vmem:[%s381 + $0x260] sm:$0xff]
      %v464 = vld [vmem:[%s381 + $0x268] sm:$0xff]
      %v465 = vld [vmem:[%s381 + $0x270] sm:$0xff]
      %v466 = vld [vmem:[%s381 + $0x278] sm:$0xff]
      %v467 = vld [vmem:[%s381 + $0x280] sm:$0xff]
      %v468 = vld [vmem:[%s381 + $0x288] sm:$0xff]
      %v469 = vld [vmem:[%s381 + $0x290] sm:$0xff]
      %v470 = vld [vmem:[%s381 + $0x298] sm:$0xff]
      %v471 = vld [vmem:[%s381 + $0x2a0] sm:$0xff]
      %v472 = vld [vmem:[%s381 + $0x2a8] sm:$0xff]
      %v473 = vld [vmem:[%s381 + $0x2b0] sm:$0xff]
      %v474 = vld [vmem:[%s381 + $0x2b8] sm:$0xff]
      %v475 = vld [vmem:[%s381 + $0x2c0] sm:$0xff]
      %v476 = vld [vmem:[%s381 + $0x2c8] sm:$0xff]
      %v477 = vld [vmem:[%s381 + $0x2d0] sm:$0xff]
      %v478 = vld [vmem:[%s381 + $0x2d8] sm:$0xff]
      %v479 = vld [vmem:[%s381 + $0x2e0] sm:$0xff]
      %v480 = vld [vmem:[%s381 + $0x2e8] sm:$0xff]
      %v481 = vld [vmem:[%s381 + $0x2f0] sm:$0xff]
      %v482 = vld [vmem:[%s381 + $0x2f8] sm:$0xff]
      %v483 = vld [vmem:[%s381 + $0x300] sm:$0xff]
      %v484 = vld [vmem:[%s381 + $0x308] sm:$0xff]
      %v485 = vld [vmem:[%s381 + $0x310] sm:$0xff]
      %v486 = vld [vmem:[%s381 + $0x318] sm:$0xff]
      %v487 = vld [vmem:[%s381 + $0x320] sm:$0xff]
      %v488 = vld [vmem:[%s381 + $0x328] sm:$0xff]
      %v489 = vld [vmem:[%s381 + $0x330] sm:$0xff]
      %v490 = vld [vmem:[%s381 + $0x338] sm:$0xff]
      %v491 = vld [vmem:[%s381 + $0x340] sm:$0xff]
      %v492 = vld [vmem:[%s381 + $0x348] sm:$0xff]
      %v493 = vld [vmem:[%s381 + $0x350] sm:$0xff]
      %v494 = vld [vmem:[%s381 + $0x358] sm:$0xff]
      %v495 = vld [vmem:[%s381 + $0x360] sm:$0xff]
      %v496 = vld [vmem:[%s381 + $0x368] sm:$0xff]
      %v497 = vld [vmem:[%s381 + $0x370] sm:$0xff]
      %v498 = vld [vmem:[%s381 + $0x378] sm:$0xff]
      %v499 = vld [vmem:[%s381 + $0x380] sm:$0xff]
      %v500 = vld [vmem:[%s381 + $0x388] sm:$0xff]
      %v501 = vld [vmem:[%s381 + $0x390] sm:$0xff]
      %v502 = vld [vmem:[%s381 + $0x398] sm:$0xff]
      %v503 = vld [vmem:[%s381 + $0x3a0] sm:$0xff]
      %v504 = vld [vmem:[%s381 + $0x3a8] sm:$0xff]
      %v505 = vld [vmem:[%s381 + $0x3b0] sm:$0xff]
      %v506 = vld [vmem:[%s381 + $0x3b8] sm:$0xff]
      %v507 = vld [vmem:[%s381 + $0x3c0] sm:$0xff]
      %v508 = vld [vmem:[%s381 + $0x3c8] sm:$0xff]
      %v509 = vld [vmem:[%s381 + $0x3d0] sm:$0xff]
      %v510 = vld [vmem:[%s381 + $0x3d8] sm:$0xff]
      %v511 = vld [vmem:[%s381 + $0x3e0] sm:$0xff]
      %v512 = vld [vmem:[%s381 + $0x3e8] sm:$0xff]
      %v513 = vld [vmem:[%s381 + $0x3f0] sm:$0xff]
      %v514 = vld [vmem:[%s381 + $0x3f8] sm:$0xff]
      %v515 = vadd.f32 %v387, %v388
      %516 = vadd.xlane.f32.xlu0 %v515
      %v517 = vpop.xlane.xlu0 %516
      %v518 = vadd.f32 %v389, %v390
      %519 = vadd.xlane.f32.xlu0 %v518
      %v520 = vpop.xlane.xlu0 %519
      %v521 = vadd.f32 %v391, %v392
      %522 = vadd.xlane.f32.xlu0 %v521
      %v523 = vpop.xlane.xlu0 %522
      %v524 = vadd.f32 %v393, %v394
      %525 = vadd.xlane.f32.xlu0 %v524
      %v526 = vpop.xlane.xlu0 %525
      %v527 = vadd.f32 %v395, %v396
      %528 = vadd.xlane.f32.xlu0 %v527
      %v529 = vpop.xlane.xlu0 %528
      %v530 = vadd.f32 %v397, %v398
      %531 = vadd.xlane.f32.xlu0 %v530
      %v532 = vpop.xlane.xlu0 %531
      %v533 = vadd.f32 %v399, %v400
      %534 = vadd.xlane.f32.xlu0 %v533
      %v535 = vpop.xlane.xlu0 %534
      %v536 = vadd.f32 %v401, %v402
      %537 = vadd.xlane.f32.xlu0 %v536
      %v538 = vpop.xlane.xlu0 %537
      %v539 = vadd.f32 %v403, %v404
      %540 = vadd.xlane.f32.xlu0 %v539
      %v541 = vpop.xlane.xlu0 %540
      %v542 = vadd.f32 %v405, %v406
      %543 = vadd.xlane.f32.xlu0 %v542
      %v544 = vpop.xlane.xlu0 %543
      %v545 = vadd.f32 %v407, %v408
      %546 = vadd.xlane.f32.xlu0 %v545
      %v547 = vpop.xlane.xlu0 %546
      %v548 = vadd.f32 %v409, %v410
      %549 = vadd.xlane.f32.xlu0 %v548
      %v550 = vpop.xlane.xlu0 %549
      %v551 = vadd.f32 %v411, %v412
      %552 = vadd.xlane.f32.xlu0 %v551
      %v553 = vpop.xlane.xlu0 %552
      %v554 = vadd.f32 %v413, %v414
      %555 = vadd.xlane.f32.xlu0 %v554
      %v556 = vpop.xlane.xlu0 %555
      %v557 = vadd.f32 %v415, %v416
      %558 = vadd.xlane.f32.xlu0 %v557
      %v559 = vpop.xlane.xlu0 %558
      %v560 = vadd.f32 %v417, %v418
      %561 = vadd.xlane.f32.xlu0 %v560
      %v562 = vpop.xlane.xlu0 %561
      %v563 = vadd.f32 %v419, %v420
      %564 = vadd.xlane.f32.xlu0 %v563
      %v565 = vpop.xlane.xlu0 %564
      %v566 = vadd.f32 %v421, %v422
      %567 = vadd.xlane.f32.xlu0 %v566
      %v568 = vpop.xlane.xlu0 %567
      %v569 = vadd.f32 %v423, %v424
      %570 = vadd.xlane.f32.xlu0 %v569
      %v571 = vpop.xlane.xlu0 %570
      %v572 = vadd.f32 %v425, %v426
      %573 = vadd.xlane.f32.xlu0 %v572
      %v574 = vpop.xlane.xlu0 %573
      %v575 = vadd.f32 %v427, %v428
      %576 = vadd.xlane.f32.xlu0 %v575
      %v577 = vpop.xlane.xlu0 %576
      %v578 = vadd.f32 %v429, %v430
      %579 = vadd.xlane.f32.xlu0 %v578
      %v580 = vpop.xlane.xlu0 %579
      %v581 = vadd.f32 %v431, %v432
      %582 = vadd.xlane.f32.xlu0 %v581
      %v583 = vpop.xlane.xlu0 %582
      %v584 = vadd.f32 %v433, %v434
      %585 = vadd.xlane.f32.xlu0 %v584
      %v586 = vpop.xlane.xlu0 %585
      %v587 = vadd.f32 %v435, %v436
      %588 = vadd.xlane.f32.xlu0 %v587
      %v589 = vpop.xlane.xlu0 %588
      %v590 = vadd.f32 %v437, %v438
      %591 = vadd.xlane.f32.xlu0 %v590
      %v592 = vpop.xlane.xlu0 %591
      %v593 = vadd.f32 %v439, %v440
      %594 = vadd.xlane.f32.xlu0 %v593
      %v595 = vpop.xlane.xlu0 %594
      %v596 = vadd.f32 %v441, %v442
      %597 = vadd.xlane.f32.xlu0 %v596
      %v598 = vpop.xlane.xlu0 %597
      %v599 = vadd.f32 %v443, %v444
      %600 = vadd.xlane.f32.xlu0 %v599
      %v601 = vpop.xlane.xlu0 %600
      %v602 = vadd.f32 %v445, %v446
      %603 = vadd.xlane.f32.xlu0 %v602
      %v604 = vpop.xlane.xlu0 %603
      %v605 = vadd.f32 %v447, %v448
      %606 = vadd.xlane.f32.xlu0 %v605
      %v607 = vpop.xlane.xlu0 %606
      %v608 = vadd.f32 %v449, %v450
      %609 = vadd.xlane.f32.xlu0 %v608
      %v610 = vpop.xlane.xlu0 %609
      %v611 = vadd.f32 %v451, %v452
      %612 = vadd.xlane.f32.xlu0 %v611
      %v613 = vpop.xlane.xlu0 %612
      %v614 = vadd.f32 %v453, %v454
      %615 = vadd.xlane.f32.xlu0 %v614
      %v616 = vpop.xlane.xlu0 %615
      %v617 = vadd.f32 %v455, %v456
      %618 = vadd.xlane.f32.xlu0 %v617
      %v619 = vpop.xlane.xlu0 %618
      %v620 = vadd.f32 %v457, %v458
      %621 = vadd.xlane.f32.xlu0 %v620
      %v622 = vpop.xlane.xlu0 %621
      %v623 = vadd.f32 %v459, %v460
      %624 = vadd.xlane.f32.xlu0 %v623
      %v625 = vpop.xlane.xlu0 %624
      %v626 = vadd.f32 %v461, %v462
      %627 = vadd.xlane.f32.xlu0 %v626
      %v628 = vpop.xlane.xlu0 %627
      %v629 = vadd.f32 %v463, %v464
      %630 = vadd.xlane.f32.xlu0 %v629
      %v631 = vpop.xlane.xlu0 %630
      %v632 = vadd.f32 %v465, %v466
      %633 = vadd.xlane.f32.xlu0 %v632
      %v634 = vpop.xlane.xlu0 %633
      %v635 = vadd.f32 %v467, %v468
      %636 = vadd.xlane.f32.xlu0 %v635
      %v637 = vpop.xlane.xlu0 %636
      %v638 = vadd.f32 %v469, %v470
      %639 = vadd.xlane.f32.xlu0 %v638
      %v640 = vpop.xlane.xlu0 %639
      %v641 = vadd.f32 %v471, %v472
      %642 = vadd.xlane.f32.xlu0 %v641
      %v643 = vpop.xlane.xlu0 %642
      %v644 = vadd.f32 %v473, %v474
      %645 = vadd.xlane.f32.xlu0 %v644
      %v646 = vpop.xlane.xlu0 %645
      %v647 = vadd.f32 %v475, %v476
      %648 = vadd.xlane.f32.xlu0 %v647
      %v649 = vpop.xlane.xlu0 %648
      %v650 = vadd.f32 %v477, %v478
      %651 = vadd.xlane.f32.xlu0 %v650
      %v652 = vpop.xlane.xlu0 %651
      %v653 = vadd.f32 %v479, %v480
      %654 = vadd.xlane.f32.xlu0 %v653
      %v655 = vpop.xlane.xlu0 %654
      %v656 = vadd.f32 %v481, %v482
      %657 = vadd.xlane.f32.xlu0 %v656
      %v658 = vpop.xlane.xlu0 %657
      %v659 = vadd.f32 %v483, %v484
      %660 = vadd.xlane.f32.xlu0 %v659
      %v661 = vpop.xlane.xlu0 %660
      %v662 = vadd.f32 %v485, %v486
      %663 = vadd.xlane.f32.xlu0 %v662
      %v664 = vpop.xlane.xlu0 %663
      %v665 = vadd.f32 %v487, %v488
      %666 = vadd.xlane.f32.xlu0 %v665
      %v667 = vpop.xlane.xlu0 %666
      %v668 = vadd.f32 %v489, %v490
      %669 = vadd.xlane.f32.xlu0 %v668
      %v670 = vpop.xlane.xlu0 %669
      %v671 = vadd.f32 %v491, %v492
      %672 = vadd.xlane.f32.xlu0 %v671
      %v673 = vpop.xlane.xlu0 %672
      %v674 = vadd.f32 %v493, %v494
      %675 = vadd.xlane.f32.xlu0 %v674
      %v676 = vpop.xlane.xlu0 %675
      %v677 = vadd.f32 %v495, %v496
      %678 = vadd.xlane.f32.xlu0 %v677
      %v679 = vpop.xlane.xlu0 %678
      %v680 = vadd.f32 %v497, %v498
      %681 = vadd.xlane.f32.xlu0 %v680
      %v682 = vpop.xlane.xlu0 %681
      %v683 = vadd.f32 %v499, %v500
      %684 = vadd.xlane.f32.xlu0 %v683
      %v685 = vpop.xlane.xlu0 %684
      %v686 = vadd.f32 %v501, %v502
      %687 = vadd.xlane.f32.xlu0 %v686
      %v688 = vpop.xlane.xlu0 %687
      %v689 = vadd.f32 %v503, %v504
      %690 = vadd.xlane.f32.xlu0 %v689
      %v691 = vpop.xlane.xlu0 %690
      %v692 = vadd.f32 %v505, %v506
      %693 = vadd.xlane.f32.xlu0 %v692
      %v694 = vpop.xlane.xlu0 %693
      %v695 = vadd.f32 %v507, %v508
      %696 = vadd.xlane.f32.xlu0 %v695
      %v697 = vpop.xlane.xlu0 %696
      %v698 = vadd.f32 %v509, %v510
      %699 = vadd.xlane.f32.xlu0 %v698
      %v700 = vpop.xlane.xlu0 %699
      %v701 = vadd.f32 %v511, %v512
      %702 = vadd.xlane.f32.xlu0 %v701
      %v703 = vpop.xlane.xlu0 %702
      %v704 = vadd.f32 %v513, %v514
      %705 = vadd.xlane.f32.xlu0 %v704
      %v706 = vpop.xlane.xlu0 %705
      %v707 = vadd.f32 %v517, 0.0
      %v708 = vadd.f32 %v520, 0.0
      %v709 = vadd.f32 %v523, 0.0
      %v710 = vadd.f32 %v526, 0.0
      %v711 = vadd.f32 %v529, 0.0
      %v712 = vadd.f32 %v532, 0.0
      %v713 = vadd.f32 %v535, 0.0
      %v714 = vadd.f32 %v538, 0.0
      %v715 = vadd.f32 %v541, 0.0
      %v716 = vadd.f32 %v544, 0.0
      %v717 = vadd.f32 %v547, 0.0
      %v718 = vadd.f32 %v550, 0.0
      %v719 = vadd.f32 %v553, 0.0
      %v720 = vadd.f32 %v556, 0.0
      %v721 = vadd.f32 %v559, 0.0
      %v722 = vadd.f32 %v562, 0.0
      %v723 = vadd.f32 %v565, 0.0
      %v724 = vadd.f32 %v568, 0.0
      %v725 = vadd.f32 %v571, 0.0
      %v726 = vadd.f32 %v574, 0.0
      %v727 = vadd.f32 %v577, 0.0
      %v728 = vadd.f32 %v580, 0.0
      %v729 = vadd.f32 %v583, 0.0
      %v730 = vadd.f32 %v586, 0.0
      %v731 = vadd.f32 %v589, 0.0
      %v732 = vadd.f32 %v592, 0.0
      %v733 = vadd.f32 %v595, 0.0
      %v734 = vadd.f32 %v598, 0.0
      %v735 = vadd.f32 %v601, 0.0
      %v736 = vadd.f32 %v604, 0.0
      %v737 = vadd.f32 %v607, 0.0
      %v738 = vadd.f32 %v610, 0.0
      %v739 = vadd.f32 %v613, 0.0
      %v740 = vadd.f32 %v616, 0.0
      %v741 = vadd.f32 %v619, 0.0
      %v742 = vadd.f32 %v622, 0.0
      %v743 = vadd.f32 %v625, 0.0
      %v744 = vadd.f32 %v628, 0.0
      %v745 = vadd.f32 %v631, 0.0
      %v746 = vadd.f32 %v634, 0.0
      %v747 = vadd.f32 %v637, 0.0
      %v748 = vadd.f32 %v640, 0.0
      %v749 = vadd.f32 %v643, 0.0
      %v750 = vadd.f32 %v646, 0.0
      %v751 = vadd.f32 %v649, 0.0
      %v752 = vadd.f32 %v652, 0.0
      %v753 = vadd.f32 %v655, 0.0
      %v754 = vadd.f32 %v658, 0.0
      %v755 = vadd.f32 %v661, 0.0
      %v756 = vadd.f32 %v664, 0.0
      %v757 = vadd.f32 %v667, 0.0
      %v758 = vadd.f32 %v670, 0.0
      %v759 = vadd.f32 %v673, 0.0
      %v760 = vadd.f32 %v676, 0.0
      %v761 = vadd.f32 %v679, 0.0
      %v762 = vadd.f32 %v682, 0.0
      %v763 = vadd.f32 %v685, 0.0
      %v764 = vadd.f32 %v688, 0.0
      %v765 = vadd.f32 %v691, 0.0
      %v766 = vadd.f32 %v694, 0.0
      %v767 = vadd.f32 %v697, 0.0
      %v768 = vadd.f32 %v700, 0.0
      %v769 = vadd.f32 %v703, 0.0
      %v770 = vadd.f32 %v706, 0.0
      %v771 = vmul.f32 %v387, %v387
      %v772 = vmul.f32 %v388, %v388
      %v773 = vmul.f32 %v389, %v389
      %v774 = vmul.f32 %v390, %v390
      %v775 = vmul.f32 %v391, %v391
      %v776 = vmul.f32 %v392, %v392
      %v777 = vmul.f32 %v393, %v393
      %v778 = vmul.f32 %v394, %v394
      %v779 = vmul.f32 %v395, %v395
      %v780 = vmul.f32 %v396, %v396
      %v781 = vmul.f32 %v397, %v397
      %v782 = vmul.f32 %v398, %v398
      %v783 = vmul.f32 %v399, %v399
      %v784 = vmul.f32 %v400, %v400
      %v785 = vmul.f32 %v401, %v401
      %v786 = vmul.f32 %v402, %v402
      %v787 = vmul.f32 %v403, %v403
      %v788 = vmul.f32 %v404, %v404
      %v789 = vmul.f32 %v405, %v405
      %v790 = vmul.f32 %v406, %v406
      %v791 = vmul.f32 %v407, %v407
      %v792 = vmul.f32 %v408, %v408
      %v793 = vmul.f32 %v409, %v409
      %v794 = vmul.f32 %v410, %v410
      %v795 = vmul.f32 %v411, %v411
      %v796 = vmul.f32 %v412, %v412
      %v797 = vmul.f32 %v413, %v413
      %v798 = vmul.f32 %v414, %v414
      %v799 = vmul.f32 %v415, %v415
      %v800 = vmul.f32 %v416, %v416
      %v801 = vmul.f32 %v417, %v417
      %v802 = vmul.f32 %v418, %v418
      %v803 = vmul.f32 %v419, %v419
      %v804 = vmul.f32 %v420, %v420
      %v805 = vmul.f32 %v421, %v421
      %v806 = vmul.f32 %v422, %v422
      %v807 = vmul.f32 %v423, %v423
      %v808 = vmul.f32 %v424, %v424
      %v809 = vmul.f32 %v425, %v425
      %v810 = vmul.f32 %v426, %v426
      %v811 = vmul.f32 %v427, %v427
      %v812 = vmul.f32 %v428, %v428
      %v813 = vmul.f32 %v429, %v429
      %v814 = vmul.f32 %v430, %v430
      %v815 = vmul.f32 %v431, %v431
      %v816 = vmul.f32 %v432, %v432
      %v817 = vmul.f32 %v433, %v433
      %v818 = vmul.f32 %v434, %v434
      %v819 = vmul.f32 %v435, %v435
      %v820 = vmul.f32 %v436, %v436
      %v821 = vmul.f32 %v437, %v437
      %v822 = vmul.f32 %v438, %v438
      %v823 = vmul.f32 %v439, %v439
      %v824 = vmul.f32 %v440, %v440
      %v825 = vmul.f32 %v441, %v441
      %v826 = vmul.f32 %v442, %v442
      %v827 = vmul.f32 %v443, %v443
      %v828 = vmul.f32 %v444, %v444
      %v829 = vmul.f32 %v445, %v445
      %v830 = vmul.f32 %v446, %v446
      %v831 = vmul.f32 %v447, %v447
      %v832 = vmul.f32 %v448, %v448
      %v833 = vmul.f32 %v449, %v449
      %v834 = vmul.f32 %v450, %v450
      %v835 = vmul.f32 %v451, %v451
      %v836 = vmul.f32 %v452, %v452
      %v837 = vmul.f32 %v453, %v453
      %v838 = vmul.f32 %v454, %v454
      %v839 = vmul.f32 %v455, %v455
      %v840 = vmul.f32 %v456, %v456
      %v841 = vmul.f32 %v457, %v457
      %v842 = vmul.f32 %v458, %v458
      %v843 = vmul.f32 %v459, %v459
      %v844 = vmul.f32 %v460, %v460
      %v845 = vmul.f32 %v461, %v461
      %v846 = vmul.f32 %v462, %v462
      %v847 = vmul.f32 %v463, %v463
      %v848 = vmul.f32 %v464, %v464
      %v849 = vmul.f32 %v465, %v465
      %v850 = vmul.f32 %v466, %v466
      %v851 = vmul.f32 %v467, %v467
      %v852 = vmul.f32 %v468, %v468
      %v853 = vmul.f32 %v469, %v469
      %v854 = vmul.f32 %v470, %v470
      %v855 = vmul.f32 %v471, %v471
      %v856 = vmul.f32 %v472, %v472
      %v857 = vmul.f32 %v473, %v473
      %v858 = vmul.f32 %v474, %v474
      %v859 = vmul.f32 %v475, %v475
      %v860 = vmul.f32 %v476, %v476
      %v861 = vmul.f32 %v477, %v477
      %v862 = vmul.f32 %v478, %v478
      %v863 = vmul.f32 %v479, %v479
      %v864 = vmul.f32 %v480, %v480
      %v865 = vmul.f32 %v481, %v481
      %v866 = vmul.f32 %v482, %v482
      %v867 = vmul.f32 %v483, %v483
      %v868 = vmul.f32 %v484, %v484
      %v869 = vmul.f32 %v485, %v485
      %v870 = vmul.f32 %v486, %v486
      %v871 = vmul.f32 %v487, %v487
      %v872 = vmul.f32 %v488, %v488
      %v873 = vmul.f32 %v489, %v489
      %v874 = vmul.f32 %v490, %v490
      %v875 = vmul.f32 %v491, %v491
      %v876 = vmul.f32 %v492, %v492
      %v877 = vmul.f32 %v493, %v493
      %v878 = vmul.f32 %v494, %v494
      %v879 = vmul.f32 %v495, %v495
      %v880 = vmul.f32 %v496, %v496
      %v881 = vmul.f32 %v497, %v497
      %v882 = vmul.f32 %v498, %v498
      %v883 = vmul.f32 %v499, %v499
      %v884 = vmul.f32 %v500, %v500
      %v885 = vmul.f32 %v501, %v501
      %v886 = vmul.f32 %v502, %v502
      %v887 = vmul.f32 %v503, %v503
      %v888 = vmul.f32 %v504, %v504
      %v889 = vmul.f32 %v505, %v505
      %v890 = vmul.f32 %v506, %v506
      %v891 = vmul.f32 %v507, %v507
      %v892 = vmul.f32 %v508, %v508
      %v893 = vmul.f32 %v509, %v509
      %v894 = vmul.f32 %v510, %v510
      %v895 = vmul.f32 %v511, %v511
      %v896 = vmul.f32 %v512, %v512
      %v897 = vmul.f32 %v513, %v513
      %v898 = vmul.f32 %v514, %v514
      %v899 = vadd.f32 %v771, %v772
      %900 = vadd.xlane.f32.xlu0 %v899
      %v901 = vpop.xlane.xlu0 %900
      %v902 = vadd.f32 %v773, %v774
      %903 = vadd.xlane.f32.xlu0 %v902
      %v904 = vpop.xlane.xlu0 %903
      %v905 = vadd.f32 %v775, %v776
      %906 = vadd.xlane.f32.xlu0 %v905
      %v907 = vpop.xlane.xlu0 %906
      %v908 = vadd.f32 %v777, %v778
      %909 = vadd.xlane.f32.xlu0 %v908
      %v910 = vpop.xlane.xlu0 %909
      %v911 = vadd.f32 %v779, %v780
      %912 = vadd.xlane.f32.xlu0 %v911
      %v913 = vpop.xlane.xlu0 %912
      %v914 = vadd.f32 %v781, %v782
      %915 = vadd.xlane.f32.xlu0 %v914
      %v916 = vpop.xlane.xlu0 %915
      %v917 = vadd.f32 %v783, %v784
      %918 = vadd.xlane.f32.xlu0 %v917
      %v919 = vpop.xlane.xlu0 %918
      %v920 = vadd.f32 %v785, %v786
      %921 = vadd.xlane.f32.xlu0 %v920
      %v922 = vpop.xlane.xlu0 %921
      %v923 = vadd.f32 %v787, %v788
      %924 = vadd.xlane.f32.xlu0 %v923
      %v925 = vpop.xlane.xlu0 %924
      %v926 = vadd.f32 %v789, %v790
      %927 = vadd.xlane.f32.xlu0 %v926
      %v928 = vpop.xlane.xlu0 %927
      %v929 = vadd.f32 %v791, %v792
      %930 = vadd.xlane.f32.xlu0 %v929
      %v931 = vpop.xlane.xlu0 %930
      %v932 = vadd.f32 %v793, %v794
      %933 = vadd.xlane.f32.xlu0 %v932
      %v934 = vpop.xlane.xlu0 %933
      %v935 = vadd.f32 %v795, %v796
      %936 = vadd.xlane.f32.xlu0 %v935
      %v937 = vpop.xlane.xlu0 %936
      %v938 = vadd.f32 %v797, %v798
      %939 = vadd.xlane.f32.xlu0 %v938
      %v940 = vpop.xlane.xlu0 %939
      %v941 = vadd.f32 %v799, %v800
      %942 = vadd.xlane.f32.xlu0 %v941
      %v943 = vpop.xlane.xlu0 %942
      %v944 = vadd.f32 %v801, %v802
      %945 = vadd.xlane.f32.xlu0 %v944
      %v946 = vpop.xlane.xlu0 %945
      %v947 = vadd.f32 %v803, %v804
      %948 = vadd.xlane.f32.xlu0 %v947
      %v949 = vpop.xlane.xlu0 %948
      %v950 = vadd.f32 %v805, %v806
      %951 = vadd.xlane.f32.xlu0 %v950
      %v952 = vpop.xlane.xlu0 %951
      %v953 = vadd.f32 %v807, %v808
      %954 = vadd.xlane.f32.xlu0 %v953
      %v955 = vpop.xlane.xlu0 %954
      %v956 = vadd.f32 %v809, %v810
      %957 = vadd.xlane.f32.xlu0 %v956
      %v958 = vpop.xlane.xlu0 %957
      %v959 = vadd.f32 %v811, %v812
      %960 = vadd.xlane.f32.xlu0 %v959
      %v961 = vpop.xlane.xlu0 %960
      %v962 = vadd.f32 %v813, %v814
      %963 = vadd.xlane.f32.xlu0 %v962
      %v964 = vpop.xlane.xlu0 %963
      %v965 = vadd.f32 %v815, %v816
      %966 = vadd.xlane.f32.xlu0 %v965
      %v967 = vpop.xlane.xlu0 %966
      %v968 = vadd.f32 %v817, %v818
      %969 = vadd.xlane.f32.xlu0 %v968
      %v970 = vpop.xlane.xlu0 %969
      %v971 = vadd.f32 %v819, %v820
      %972 = vadd.xlane.f32.xlu0 %v971
      %v973 = vpop.xlane.xlu0 %972
      %v974 = vadd.f32 %v821, %v822
      %975 = vadd.xlane.f32.xlu0 %v974
      %v976 = vpop.xlane.xlu0 %975
      %v977 = vadd.f32 %v823, %v824
      %978 = vadd.xlane.f32.xlu0 %v977
      %v979 = vpop.xlane.xlu0 %978
      %v980 = vadd.f32 %v825, %v826
      %981 = vadd.xlane.f32.xlu0 %v980
      %v982 = vpop.xlane.xlu0 %981
      %v983 = vadd.f32 %v827, %v828
      %984 = vadd.xlane.f32.xlu0 %v983
      %v985 = vpop.xlane.xlu0 %984
      %v986 = vadd.f32 %v829, %v830
      %987 = vadd.xlane.f32.xlu0 %v986
      %v988 = vpop.xlane.xlu0 %987
      %v989 = vadd.f32 %v831, %v832
      %990 = vadd.xlane.f32.xlu0 %v989
      %v991 = vpop.xlane.xlu0 %990
      %v992 = vadd.f32 %v833, %v834
      %993 = vadd.xlane.f32.xlu0 %v992
      %v994 = vpop.xlane.xlu0 %993
      %v995 = vadd.f32 %v835, %v836
      %996 = vadd.xlane.f32.xlu0 %v995
      %v997 = vpop.xlane.xlu0 %996
      %v998 = vadd.f32 %v837, %v838
      %999 = vadd.xlane.f32.xlu0 %v998
      %v1000 = vpop.xlane.xlu0 %999
      %v1001 = vadd.f32 %v839, %v840
      %1002 = vadd.xlane.f32.xlu0 %v1001
      %v1003 = vpop.xlane.xlu0 %1002
      %v1004 = vadd.f32 %v841, %v842
      %1005 = vadd.xlane.f32.xlu0 %v1004
      %v1006 = vpop.xlane.xlu0 %1005
      %v1007 = vadd.f32 %v843, %v844
      %1008 = vadd.xlane.f32.xlu0 %v1007
      %v1009 = vpop.xlane.xlu0 %1008
      %v1010 = vadd.f32 %v845, %v846
      %1011 = vadd.xlane.f32.xlu0 %v1010
      %v1012 = vpop.xlane.xlu0 %1011
      %v1013 = vadd.f32 %v847, %v848
      %1014 = vadd.xlane.f32.xlu0 %v1013
      %v1015 = vpop.xlane.xlu0 %1014
      %v1016 = vadd.f32 %v849, %v850
      %1017 = vadd.xlane.f32.xlu0 %v1016
      %v1018 = vpop.xlane.xlu0 %1017
      %v1019 = vadd.f32 %v851, %v852
      %1020 = vadd.xlane.f32.xlu0 %v1019
      %v1021 = vpop.xlane.xlu0 %1020
      %v1022 = vadd.f32 %v853, %v854
      %1023 = vadd.xlane.f32.xlu0 %v1022
      %v1024 = vpop.xlane.xlu0 %1023
      %v1025 = vadd.f32 %v855, %v856
      %1026 = vadd.xlane.f32.xlu0 %v1025
      %v1027 = vpop.xlane.xlu0 %1026
      %v1028 = vadd.f32 %v857, %v858
      %1029 = vadd.xlane.f32.xlu0 %v1028
      %v1030 = vpop.xlane.xlu0 %1029
      %v1031 = vadd.f32 %v859, %v860
      %1032 = vadd.xlane.f32.xlu0 %v1031
      %v1033 = vpop.xlane.xlu0 %1032
      %v1034 = vadd.f32 %v861, %v862
      %1035 = vadd.xlane.f32.xlu0 %v1034
      %v1036 = vpop.xlane.xlu0 %1035
      %v1037 = vadd.f32 %v863, %v864
      %1038 = vadd.xlane.f32.xlu0 %v1037
      %v1039 = vpop.xlane.xlu0 %1038
      %v1040 = vadd.f32 %v865, %v866
      %1041 = vadd.xlane.f32.xlu0 %v1040
      %v1042 = vpop.xlane.xlu0 %1041
      %v1043 = vadd.f32 %v867, %v868
      %1044 = vadd.xlane.f32.xlu0 %v1043
      %v1045 = vpop.xlane.xlu0 %1044
      %v1046 = vadd.f32 %v869, %v870
      %1047 = vadd.xlane.f32.xlu0 %v1046
      %v1048 = vpop.xlane.xlu0 %1047
      %v1049 = vadd.f32 %v871, %v872
      %1050 = vadd.xlane.f32.xlu0 %v1049
      %v1051 = vpop.xlane.xlu0 %1050
      %v1052 = vadd.f32 %v873, %v874
      %1053 = vadd.xlane.f32.xlu0 %v1052
      %v1054 = vpop.xlane.xlu0 %1053
      %v1055 = vadd.f32 %v875, %v876
      %1056 = vadd.xlane.f32.xlu0 %v1055
      %v1057 = vpop.xlane.xlu0 %1056
      %v1058 = vadd.f32 %v877, %v878
      %1059 = vadd.xlane.f32.xlu0 %v1058
      %v1060 = vpop.xlane.xlu0 %1059
      %v1061 = vadd.f32 %v879, %v880
      %1062 = vadd.xlane.f32.xlu0 %v1061
      %v1063 = vpop.xlane.xlu0 %1062
      %v1064 = vadd.f32 %v881, %v882
      %1065 = vadd.xlane.f32.xlu0 %v1064
      %v1066 = vpop.xlane.xlu0 %1065
      %v1067 = vadd.f32 %v883, %v884
      %1068 = vadd.xlane.f32.xlu0 %v1067
      %v1069 = vpop.xlane.xlu0 %1068
      %v1070 = vadd.f32 %v885, %v886
      %1071 = vadd.xlane.f32.xlu0 %v1070
      %v1072 = vpop.xlane.xlu0 %1071
      %v1073 = vadd.f32 %v887, %v888
      %1074 = vadd.xlane.f32.xlu0 %v1073
      %v1075 = vpop.xlane.xlu0 %1074
      %v1076 = vadd.f32 %v889, %v890
      %1077 = vadd.xlane.f32.xlu0 %v1076
      %v1078 = vpop.xlane.xlu0 %1077
      %v1079 = vadd.f32 %v891, %v892
      %1080 = vadd.xlane.f32.xlu0 %v1079
      %v1081 = vpop.xlane.xlu0 %1080
      %v1082 = vadd.f32 %v893, %v894
      %1083 = vadd.xlane.f32.xlu0 %v1082
      %v1084 = vpop.xlane.xlu0 %1083
      %v1085 = vadd.f32 %v895, %v896
      %1086 = vadd.xlane.f32.xlu0 %v1085
      %v1087 = vpop.xlane.xlu0 %1086
      %v1088 = vadd.f32 %v897, %v898
      %1089 = vadd.xlane.f32.xlu0 %v1088
      %v1090 = vpop.xlane.xlu0 %1089
      %v1091 = vadd.f32 %v901, 0.0
      %v1092 = vadd.f32 %v904, 0.0
      %v1093 = vadd.f32 %v907, 0.0
      %v1094 = vadd.f32 %v910, 0.0
      %v1095 = vadd.f32 %v913, 0.0
      %v1096 = vadd.f32 %v916, 0.0
      %v1097 = vadd.f32 %v919, 0.0
      %v1098 = vadd.f32 %v922, 0.0
      %v1099 = vadd.f32 %v925, 0.0
      %v1100 = vadd.f32 %v928, 0.0
      %v1101 = vadd.f32 %v931, 0.0
      %v1102 = vadd.f32 %v934, 0.0
      %v1103 = vadd.f32 %v937, 0.0
      %v1104 = vadd.f32 %v940, 0.0
      %v1105 = vadd.f32 %v943, 0.0
      %v1106 = vadd.f32 %v946, 0.0
      %v1107 = vadd.f32 %v949, 0.0
      %v1108 = vadd.f32 %v952, 0.0
      %v1109 = vadd.f32 %v955, 0.0
      %v1110 = vadd.f32 %v958, 0.0
      %v1111 = vadd.f32 %v961, 0.0
      %v1112 = vadd.f32 %v964, 0.0
      %v1113 = vadd.f32 %v967, 0.0
      %v1114 = vadd.f32 %v970, 0.0
      %v1115 = vadd.f32 %v973, 0.0
      %v1116 = vadd.f32 %v976, 0.0
      %v1117 = vadd.f32 %v979, 0.0
      %v1118 = vadd.f32 %v982, 0.0
      %v1119 = vadd.f32 %v985, 0.0
      %v1120 = vadd.f32 %v988, 0.0
      %v1121 = vadd.f32 %v991, 0.0
      %v1122 = vadd.f32 %v994, 0.0
      %v1123 = vadd.f32 %v997, 0.0
      %v1124 = vadd.f32 %v1000, 0.0
      %v1125 = vadd.f32 %v1003, 0.0
      %v1126 = vadd.f32 %v1006, 0.0
      %v1127 = vadd.f32 %v1009, 0.0
      %v1128 = vadd.f32 %v1012, 0.0
      %v1129 = vadd.f32 %v1015, 0.0
      %v1130 = vadd.f32 %v1018, 0.0
      %v1131 = vadd.f32 %v1021, 0.0
      %v1132 = vadd.f32 %v1024, 0.0
      %v1133 = vadd.f32 %v1027, 0.0
      %v1134 = vadd.f32 %v1030, 0.0
      %v1135 = vadd.f32 %v1033, 0.0
      %v1136 = vadd.f32 %v1036, 0.0
      %v1137 = vadd.f32 %v1039, 0.0
      %v1138 = vadd.f32 %v1042, 0.0
      %v1139 = vadd.f32 %v1045, 0.0
      %v1140 = vadd.f32 %v1048, 0.0
      %v1141 = vadd.f32 %v1051, 0.0
      %v1142 = vadd.f32 %v1054, 0.0
      %v1143 = vadd.f32 %v1057, 0.0
      %v1144 = vadd.f32 %v1060, 0.0
      %v1145 = vadd.f32 %v1063, 0.0
      %v1146 = vadd.f32 %v1066, 0.0
      %v1147 = vadd.f32 %v1069, 0.0
      %v1148 = vadd.f32 %v1072, 0.0
      %v1149 = vadd.f32 %v1075, 0.0
      %v1150 = vadd.f32 %v1078, 0.0
      %v1151 = vadd.f32 %v1081, 0.0
      %v1152 = vadd.f32 %v1084, 0.0
      %v1153 = vadd.f32 %v1087, 0.0
      %v1154 = vadd.f32 %v1090, 0.0
      %v1155 = vmax.f32 %v387, %v388
      %1156 = vmax.xlane.f32.xlu0 %v1155
      %v1157 = vpop.xlane.xlu0 %1156
      %v1158 = vmax.f32 %v389, %v390
      %1159 = vmax.xlane.f32.xlu0 %v1158
      %v1160 = vpop.xlane.xlu0 %1159
      %v1161 = vmax.f32 %v391, %v392
      %1162 = vmax.xlane.f32.xlu0 %v1161
      %v1163 = vpop.xlane.xlu0 %1162
      %v1164 = vmax.f32 %v393, %v394
      %1165 = vmax.xlane.f32.xlu0 %v1164
      %v1166 = vpop.xlane.xlu0 %1165
      %v1167 = vmax.f32 %v395, %v396
      %1168 = vmax.xlane.f32.xlu0 %v1167
      %v1169 = vpop.xlane.xlu0 %1168
      %v1170 = vmax.f32 %v397, %v398
      %1171 = vmax.xlane.f32.xlu0 %v1170
      %v1172 = vpop.xlane.xlu0 %1171
      %v1173 = vmax.f32 %v399, %v400
      %1174 = vmax.xlane.f32.xlu0 %v1173
      %v1175 = vpop.xlane.xlu0 %1174
      %v1176 = vmax.f32 %v401, %v402
      %1177 = vmax.xlane.f32.xlu0 %v1176
      %v1178 = vpop.xlane.xlu0 %1177
      %v1179 = vmax.f32 %v403, %v404
      %1180 = vmax.xlane.f32.xlu0 %v1179
      %v1181 = vpop.xlane.xlu0 %1180
      %v1182 = vmax.f32 %v405, %v406
      %1183 = vmax.xlane.f32.xlu0 %v1182
      %v1184 = vpop.xlane.xlu0 %1183
      %v1185 = vmax.f32 %v407, %v408
      %1186 = vmax.xlane.f32.xlu0 %v1185
      %v1187 = vpop.xlane.xlu0 %1186
      %v1188 = vmax.f32 %v409, %v410
      %1189 = vmax.xlane.f32.xlu0 %v1188
      %v1190 = vpop.xlane.xlu0 %1189
      %v1191 = vmax.f32 %v411, %v412
      %1192 = vmax.xlane.f32.xlu0 %v1191
      %v1193 = vpop.xlane.xlu0 %1192
      %v1194 = vmax.f32 %v413, %v414
      %1195 = vmax.xlane.f32.xlu0 %v1194
      %v1196 = vpop.xlane.xlu0 %1195
      %v1197 = vmax.f32 %v415, %v416
      %1198 = vmax.xlane.f32.xlu0 %v1197
      %v1199 = vpop.xlane.xlu0 %1198
      %v1200 = vmax.f32 %v417, %v418
      %1201 = vmax.xlane.f32.xlu0 %v1200
      %v1202 = vpop.xlane.xlu0 %1201
      %v1203 = vmax.f32 %v419, %v420
      %1204 = vmax.xlane.f32.xlu0 %v1203
      %v1205 = vpop.xlane.xlu0 %1204
      %v1206 = vmax.f32 %v421, %v422
      %1207 = vmax.xlane.f32.xlu0 %v1206
      %v1208 = vpop.xlane.xlu0 %1207
      %v1209 = vmax.f32 %v423, %v424
      %1210 = vmax.xlane.f32.xlu0 %v1209
      %v1211 = vpop.xlane.xlu0 %1210
      %v1212 = vmax.f32 %v425, %v426
      %1213 = vmax.xlane.f32.xlu0 %v1212
      %v1214 = vpop.xlane.xlu0 %1213
      %v1215 = vmax.f32 %v427, %v428
      %1216 = vmax.xlane.f32.xlu0 %v1215
      %v1217 = vpop.xlane.xlu0 %1216
      %v1218 = vmax.f32 %v429, %v430
      %1219 = vmax.xlane.f32.xlu0 %v1218
      %v1220 = vpop.xlane.xlu0 %1219
      %v1221 = vmax.f32 %v431, %v432
      %1222 = vmax.xlane.f32.xlu0 %v1221
      %v1223 = vpop.xlane.xlu0 %1222
      %v1224 = vmax.f32 %v433, %v434
      %1225 = vmax.xlane.f32.xlu0 %v1224
      %v1226 = vpop.xlane.xlu0 %1225
      %v1227 = vmax.f32 %v435, %v436
      %1228 = vmax.xlane.f32.xlu0 %v1227
      %v1229 = vpop.xlane.xlu0 %1228
      %v1230 = vmax.f32 %v437, %v438
      %1231 = vmax.xlane.f32.xlu0 %v1230
      %v1232 = vpop.xlane.xlu0 %1231
      %v1233 = vmax.f32 %v439, %v440
      %1234 = vmax.xlane.f32.xlu0 %v1233
      %v1235 = vpop.xlane.xlu0 %1234
      %v1236 = vmax.f32 %v441, %v442
      %1237 = vmax.xlane.f32.xlu0 %v1236
      %v1238 = vpop.xlane.xlu0 %1237
      %v1239 = vmax.f32 %v443, %v444
      %1240 = vmax.xlane.f32.xlu0 %v1239
      %v1241 = vpop.xlane.xlu0 %1240
      %v1242 = vmax.f32 %v445, %v446
      %1243 = vmax.xlane.f32.xlu0 %v1242
      %v1244 = vpop.xlane.xlu0 %1243
      %v1245 = vmax.f32 %v447, %v448
      %1246 = vmax.xlane.f32.xlu0 %v1245
      %v1247 = vpop.xlane.xlu0 %1246
      %v1248 = vmax.f32 %v449, %v450
      %1249 = vmax.xlane.f32.xlu0 %v1248
      %v1250 = vpop.xlane.xlu0 %1249
      %v1251 = vmax.f32 %v451, %v452
      %1252 = vmax.xlane.f32.xlu0 %v1251
      %v1253 = vpop.xlane.xlu0 %1252
      %v1254 = vmax.f32 %v453, %v454
      %1255 = vmax.xlane.f32.xlu0 %v1254
      %v1256 = vpop.xlane.xlu0 %1255
      %v1257 = vmax.f32 %v455, %v456
      %1258 = vmax.xlane.f32.xlu0 %v1257
      %v1259 = vpop.xlane.xlu0 %1258
      %v1260 = vmax.f32 %v457, %v458
      %1261 = vmax.xlane.f32.xlu0 %v1260
      %v1262 = vpop.xlane.xlu0 %1261
      %v1263 = vmax.f32 %v459, %v460
      %1264 = vmax.xlane.f32.xlu0 %v1263
      %v1265 = vpop.xlane.xlu0 %1264
      %v1266 = vmax.f32 %v461, %v462
      %1267 = vmax.xlane.f32.xlu0 %v1266
      %v1268 = vpop.xlane.xlu0 %1267
      %v1269 = vmax.f32 %v463, %v464
      %1270 = vmax.xlane.f32.xlu0 %v1269
      %v1271 = vpop.xlane.xlu0 %1270
      %v1272 = vmax.f32 %v465, %v466
      %1273 = vmax.xlane.f32.xlu0 %v1272
      %v1274 = vpop.xlane.xlu0 %1273
      %v1275 = vmax.f32 %v467, %v468
      %1276 = vmax.xlane.f32.xlu0 %v1275
      %v1277 = vpop.xlane.xlu0 %1276
      %v1278 = vmax.f32 %v469, %v470
      %1279 = vmax.xlane.f32.xlu0 %v1278
      %v1280 = vpop.xlane.xlu0 %1279
      %v1281 = vmax.f32 %v471, %v472
      %1282 = vmax.xlane.f32.xlu0 %v1281
      %v1283 = vpop.xlane.xlu0 %1282
      %v1284 = vmax.f32 %v473, %v474
      %1285 = vmax.xlane.f32.xlu0 %v1284
      %v1286 = vpop.xlane.xlu0 %1285
      %v1287 = vmax.f32 %v475, %v476
      %1288 = vmax.xlane.f32.xlu0 %v1287
      %v1289 = vpop.xlane.xlu0 %1288
      %v1290 = vmax.f32 %v477, %v478
      %1291 = vmax.xlane.f32.xlu0 %v1290
      %v1292 = vpop.xlane.xlu0 %1291
      %v1293 = vmax.f32 %v479, %v480
      %1294 = vmax.xlane.f32.xlu0 %v1293
      %v1295 = vpop.xlane.xlu0 %1294
      %v1296 = vmax.f32 %v481, %v482
      %1297 = vmax.xlane.f32.xlu0 %v1296
      %v1298 = vpop.xlane.xlu0 %1297
      %v1299 = vmax.f32 %v483, %v484
      %1300 = vmax.xlane.f32.xlu0 %v1299
      %v1301 = vpop.xlane.xlu0 %1300
      %v1302 = vmax.f32 %v485, %v486
      %1303 = vmax.xlane.f32.xlu0 %v1302
      %v1304 = vpop.xlane.xlu0 %1303
      %v1305 = vmax.f32 %v487, %v488
      %1306 = vmax.xlane.f32.xlu0 %v1305
      %v1307 = vpop.xlane.xlu0 %1306
      %v1308 = vmax.f32 %v489, %v490
      %1309 = vmax.xlane.f32.xlu0 %v1308
      %v1310 = vpop.xlane.xlu0 %1309
      %v1311 = vmax.f32 %v491, %v492
      %1312 = vmax.xlane.f32.xlu0 %v1311
      %v1313 = vpop.xlane.xlu0 %1312
      %v1314 = vmax.f32 %v493, %v494
      %1315 = vmax.xlane.f32.xlu0 %v1314
      %v1316 = vpop.xlane.xlu0 %1315
      %v1317 = vmax.f32 %v495, %v496
      %1318 = vmax.xlane.f32.xlu0 %v1317
      %v1319 = vpop.xlane.xlu0 %1318
      %v1320 = vmax.f32 %v497, %v498
      %1321 = vmax.xlane.f32.xlu0 %v1320
      %v1322 = vpop.xlane.xlu0 %1321
      %v1323 = vmax.f32 %v499, %v500
      %1324 = vmax.xlane.f32.xlu0 %v1323
      %v1325 = vpop.xlane.xlu0 %1324
      %v1326 = vmax.f32 %v501, %v502
      %1327 = vmax.xlane.f32.xlu0 %v1326
      %v1328 = vpop.xlane.xlu0 %1327
      %v1329 = vmax.f32 %v503, %v504
      %1330 = vmax.xlane.f32.xlu0 %v1329
      %v1331 = vpop.xlane.xlu0 %1330
      %v1332 = vmax.f32 %v505, %v506
      %1333 = vmax.xlane.f32.xlu0 %v1332
      %v1334 = vpop.xlane.xlu0 %1333
      %v1335 = vmax.f32 %v507, %v508
      %1336 = vmax.xlane.f32.xlu0 %v1335
      %v1337 = vpop.xlane.xlu0 %1336
      %v1338 = vmax.f32 %v509, %v510
      %1339 = vmax.xlane.f32.xlu0 %v1338
      %v1340 = vpop.xlane.xlu0 %1339
      %v1341 = vmax.f32 %v511, %v512
      %1342 = vmax.xlane.f32.xlu0 %v1341
      %v1343 = vpop.xlane.xlu0 %1342
      %v1344 = vmax.f32 %v513, %v514
      %1345 = vmax.xlane.f32.xlu0 %v1344
      %v1346 = vpop.xlane.xlu0 %1345
      %v1347 = vmul.f32 %v707, 0.00390625
      %v1348 = vmul.f32 %v708, 0.00390625
      %v1349 = vmul.f32 %v709, 0.00390625
      %v1350 = vmul.f32 %v710, 0.00390625
      %v1351 = vmul.f32 %v711, 0.00390625
      %v1352 = vmul.f32 %v712, 0.00390625
      %v1353 = vmul.f32 %v713, 0.00390625
      %v1354 = vmul.f32 %v714, 0.00390625
      %v1355 = vmul.f32 %v715, 0.00390625
      %v1356 = vmul.f32 %v716, 0.00390625
      %v1357 = vmul.f32 %v717, 0.00390625
      %v1358 = vmul.f32 %v718, 0.00390625
      %v1359 = vmul.f32 %v719, 0.00390625
      %v1360 = vmul.f32 %v720, 0.00390625
      %v1361 = vmul.f32 %v721, 0.00390625
      %v1362 = vmul.f32 %v722, 0.00390625
      %v1363 = vmul.f32 %v723, 0.00390625
      %v1364 = vmul.f32 %v724, 0.00390625
      %v1365 = vmul.f32 %v725, 0.00390625
      %v1366 = vmul.f32 %v726, 0.00390625
      %v1367 = vmul.f32 %v727, 0.00390625
      %v1368 = vmul.f32 %v728, 0.00390625
      %v1369 = vmul.f32 %v729, 0.00390625
      %v1370 = vmul.f32 %v730, 0.00390625
      %v1371 = vmul.f32 %v731, 0.00390625
      %v1372 = vmul.f32 %v732, 0.00390625
      %v1373 = vmul.f32 %v733, 0.00390625
      %v1374 = vmul.f32 %v734, 0.00390625
      %v1375 = vmul.f32 %v735, 0.00390625
      %v1376 = vmul.f32 %v736, 0.00390625
      %v1377 = vmul.f32 %v737, 0.00390625
      %v1378 = vmul.f32 %v738, 0.00390625
      %v1379 = vmul.f32 %v739, 0.00390625
      %v1380 = vmul.f32 %v740, 0.00390625
      %v1381 = vmul.f32 %v741, 0.00390625
      %v1382 = vmul.f32 %v742, 0.00390625
      %v1383 = vmul.f32 %v743, 0.00390625
      %v1384 = vmul.f32 %v744, 0.00390625
      %v1385 = vmul.f32 %v745, 0.00390625
      %v1386 = vmul.f32 %v746, 0.00390625
      %v1387 = vmul.f32 %v747, 0.00390625
      %v1388 = vmul.f32 %v748, 0.00390625
      %v1389 = vmul.f32 %v749, 0.00390625
      %v1390 = vmul.f32 %v750, 0.00390625
      %v1391 = vmul.f32 %v751, 0.00390625
      %v1392 = vmul.f32 %v752, 0.00390625
      %v1393 = vmul.f32 %v753, 0.00390625
      %v1394 = vmul.f32 %v754, 0.00390625
      %v1395 = vmul.f32 %v755, 0.00390625
      %v1396 = vmul.f32 %v756, 0.00390625
      %v1397 = vmul.f32 %v757, 0.00390625
      %v1398 = vmul.f32 %v758, 0.00390625
      %v1399 = vmul.f32 %v759, 0.00390625
      %v1400 = vmul.f32 %v760, 0.00390625
      %v1401 = vmul.f32 %v761, 0.00390625
      %v1402 = vmul.f32 %v762, 0.00390625
      %v1403 = vmul.f32 %v763, 0.00390625
      %v1404 = vmul.f32 %v764, 0.00390625
      %v1405 = vmul.f32 %v765, 0.00390625
      %v1406 = vmul.f32 %v766, 0.00390625
      %v1407 = vmul.f32 %v767, 0.00390625
      %v1408 = vmul.f32 %v768, 0.00390625
      %v1409 = vmul.f32 %v769, 0.00390625
      %v1410 = vmul.f32 %v770, 0.00390625
      %v1411 = vmul.f32 %v1091, 0.00390625
      %v1412 = vmul.f32 %v1092, 0.00390625
      %v1413 = vmul.f32 %v1093, 0.00390625
      %v1414 = vmul.f32 %v1094, 0.00390625
      %v1415 = vmul.f32 %v1095, 0.00390625
      %v1416 = vmul.f32 %v1096, 0.00390625
      %v1417 = vmul.f32 %v1097, 0.00390625
      %v1418 = vmul.f32 %v1098, 0.00390625
      %v1419 = vmul.f32 %v1099, 0.00390625
      %v1420 = vmul.f32 %v1100, 0.00390625
      %v1421 = vmul.f32 %v1101, 0.00390625
      %v1422 = vmul.f32 %v1102, 0.00390625
      %v1423 = vmul.f32 %v1103, 0.00390625
      %v1424 = vmul.f32 %v1104, 0.00390625
      %v1425 = vmul.f32 %v1105, 0.00390625
      %v1426 = vmul.f32 %v1106, 0.00390625
      %v1427 = vmul.f32 %v1107, 0.00390625
      %v1428 = vmul.f32 %v1108, 0.00390625
      %v1429 = vmul.f32 %v1109, 0.00390625
      %v1430 = vmul.f32 %v1110, 0.00390625
      %v1431 = vmul.f32 %v1111, 0.00390625
      %v1432 = vmul.f32 %v1112, 0.00390625
      %v1433 = vmul.f32 %v1113, 0.00390625
      %v1434 = vmul.f32 %v1114, 0.00390625
      %v1435 = vmul.f32 %v1115, 0.00390625
      %v1436 = vmul.f32 %v1116, 0.00390625
      %v1437 = vmul.f32 %v1117, 0.00390625
      %v1438 = vmul.f32 %v1118, 0.00390625
      %v1439 = vmul.f32 %v1119, 0.00390625
      %v1440 = vmul.f32 %v1120, 0.00390625
      %v1441 = vmul.f32 %v1121, 0.00390625
      %v1442 = vmul.f32 %v1122, 0.00390625
      %v1443 = vmul.f32 %v1123, 0.00390625
      %v1444 = vmul.f32 %v1124, 0.00390625
      %v1445 = vmul.f32 %v1125, 0.00390625
      %v1446 = vmul.f32 %v1126, 0.00390625
      %v1447 = vmul.f32 %v1127, 0.00390625
      %v1448 = vmul.f32 %v1128, 0.00390625
      %v1449 = vmul.f32 %v1129, 0.00390625
      %v1450 = vmul.f32 %v1130, 0.00390625
      %v1451 = vmul.f32 %v1131, 0.00390625
      %v1452 = vmul.f32 %v1132, 0.00390625
      %v1453 = vmul.f32 %v1133, 0.00390625
      %v1454 = vmul.f32 %v1134, 0.00390625
      %v1455 = vmul.f32 %v1135, 0.00390625
      %v1456 = vmul.f32 %v1136, 0.00390625
      %v1457 = vmul.f32 %v1137, 0.00390625
      %v1458 = vmul.f32 %v1138, 0.00390625
      %v1459 = vmul.f32 %v1139, 0.00390625
      %v1460 = vmul.f32 %v1140, 0.00390625
      %v1461 = vmul.f32 %v1141, 0.00390625
      %v1462 = vmul.f32 %v1142, 0.00390625
      %v1463 = vmul.f32 %v1143, 0.00390625
      %v1464 = vmul.f32 %v1144, 0.00390625
      %v1465 = vmul.f32 %v1145, 0.00390625
      %v1466 = vmul.f32 %v1146, 0.00390625
      %v1467 = vmul.f32 %v1147, 0.00390625
      %v1468 = vmul.f32 %v1148, 0.00390625
      %v1469 = vmul.f32 %v1149, 0.00390625
      %v1470 = vmul.f32 %v1150, 0.00390625
      %v1471 = vmul.f32 %v1151, 0.00390625
      %v1472 = vmul.f32 %v1152, 0.00390625
      %v1473 = vmul.f32 %v1153, 0.00390625
      %v1474 = vmul.f32 %v1154, 0.00390625
      %v1475 = vld [vmem:[%s1] sm:$0x1f]
      %v1476 = vld [vmem:[%s2] sm:$0x7]
      %v1477 = vld [vmem:[%s3] sm:$0xff]
      %v1478 = vld [vmem:[%s3 + $0x8] sm:$0xff]
      %v1479 = vld [vmem:[%s3 + $0x10] sm:$0xff]
      %v1480 = vld [vmem:[%s3 + $0x18] sm:$0xff]
      %v1481 = vld [vmem:[%s3 + $0x20] sm:$0xff]
      %v1482 = vld [vmem:[%s3 + $0x28] sm:$0xff]
      %v1483 = vld [vmem:[%s3 + $0x30] sm:$0xff]
      %v1484 = vld [vmem:[%s3 + $0x38] sm:$0xff]
      %v1485 = vld [vmem:[%s4] sm:$0xff]
      %v1486 = vld [vmem:[%s4 + $0x8] sm:$0xff]
      %v1487 = vld [vmem:[%s4 + $0x10] sm:$0xff]
      %v1488 = vld [vmem:[%s4 + $0x18] sm:$0xff]
      %v1553 = vlaneseq
      %v1554 = vand.u32 %v1553, 127
      %v1555 = vlaneseq
      %v1556 = vshrl.u32 %v1555, 7
      %v1557 = vsub.s32 %v1554, %v1556
      %v1558 = vrot.slane %v1347, %v1557
      %v1559 = vadd.s32 %v1554, 4294967288
      %v1560 = vlaneseq
      %v1561 = vshrl.u32 %v1560, 7
      %v1562 = vsub.s32 %v1559, %v1561
      %v1563 = vrot.slane %v1348, %v1562
      %vm1564 = vcmask 130112
      %v1565 = vsel %vm1564, %v1563, %v1558
      %v1566 = vadd.s32 %v1554, 4294967280
      %v1567 = vlaneseq
      %v1568 = vshrl.u32 %v1567, 7
      %v1569 = vsub.s32 %v1566, %v1568
      %v1570 = vrot.slane %v1349, %v1569
      %vm1571 = vcmask 195712
      %v1572 = vsel %vm1571, %v1570, %v1565
      %v1573 = vadd.s32 %v1554, 4294967272
      %v1574 = vlaneseq
      %v1575 = vshrl.u32 %v1574, 7
      %v1576 = vsub.s32 %v1573, %v1575
      %v1577 = vrot.slane %v1350, %v1576
      %vm1578 = vcmask 261312
      %v1579 = vsel %vm1578, %v1577, %v1572
      %v1580 = vadd.s32 %v1554, 4294967264
      %v1581 = vlaneseq
      %v1582 = vshrl.u32 %v1581, 7
      %v1583 = vsub.s32 %v1580, %v1582
      %v1584 = vrot.slane %v1351, %v1583
      %vm1585 = vcmask 326912
      %v1586 = vsel %vm1585, %v1584, %v1579
      %v1587 = vadd.s32 %v1554, 4294967256
      %v1588 = vlaneseq
      %v1589 = vshrl.u32 %v1588, 7
      %v1590 = vsub.s32 %v1587, %v1589
      %v1591 = vrot.slane %v1352, %v1590
      %vm1592 = vcmask 392512
      %v1593 = vsel %vm1592, %v1591, %v1586
      %v1594 = vadd.s32 %v1554, 4294967248
      %v1595 = vlaneseq
      %v1596 = vshrl.u32 %v1595, 7
      %v1597 = vsub.s32 %v1594, %v1596
      %v1598 = vrot.slane %v1353, %v1597
      %vm1599 = vcmask 458112
      %v1600 = vsel %vm1599, %v1598, %v1593
      %v1601 = vadd.s32 %v1554, 4294967240
      %v1602 = vlaneseq
      %v1603 = vshrl.u32 %v1602, 7
      %v1604 = vsub.s32 %v1601, %v1603
      %v1605 = vrot.slane %v1354, %v1604
      %vm1606 = vcmask 523712
      %v1607 = vsel %vm1606, %v1605, %v1600
      %v1608 = vlaneseq
      %v1609 = vshrl.u32 %v1608, 7
      %v1610 = vsub.s32 %v1554, %v1609
      %v1611 = vrot.slane %v1355, %v1610
      %v1612 = vlaneseq
      %v1613 = vshrl.u32 %v1612, 7
      %v1614 = vsub.s32 %v1559, %v1613
      %v1615 = vrot.slane %v1356, %v1614
      %v1616 = vsel %vm1564, %v1615, %v1611
      %v1617 = vlaneseq
      %v1618 = vshrl.u32 %v1617, 7
      %v1619 = vsub.s32 %v1566, %v1618
      %v1620 = vrot.slane %v1357, %v1619
      %v1621 = vsel %vm1571, %v1620, %v1616
      %v1622 = vlaneseq
      %v1623 = vshrl.u32 %v1622, 7
      %v1624 = vsub.s32 %v1573, %v1623
      %v1625 = vrot.slane %v1358, %v1624
      %v1626 = vsel %vm1578, %v1625, %v1621
      %v1627 = vlaneseq
      %v1628 = vshrl.u32 %v1627, 7
      %v1629 = vsub.s32 %v1580, %v1628
      %v1630 = vrot.slane %v1359, %v1629
      %v1631 = vsel %vm1585, %v1630, %v1626
      %v1632 = vlaneseq
      %v1633 = vshrl.u32 %v1632, 7
      %v1634 = vsub.s32 %v1587, %v1633
      %v1635 = vrot.slane %v1360, %v1634
      %v1636 = vsel %vm1592, %v1635, %v1631
      %v1637 = vlaneseq
      %v1638 = vshrl.u32 %v1637, 7
      %v1639 = vsub.s32 %v1594, %v1638
      %v1640 = vrot.slane %v1361, %v1639
      %v1641 = vsel %vm1599, %v1640, %v1636
      %v1642 = vlaneseq
      %v1643 = vshrl.u32 %v1642, 7
      %v1644 = vsub.s32 %v1601, %v1643
      %v1645 = vrot.slane %v1362, %v1644
      %v1646 = vsel %vm1606, %v1645, %v1641
      %v1647 = vlaneseq
      %v1648 = vshrl.u32 %v1647, 7
      %v1649 = vsub.s32 %v1554, %v1648
      %v1650 = vrot.slane %v1363, %v1649
      %v1651 = vlaneseq
      %v1652 = vshrl.u32 %v1651, 7
      %v1653 = vsub.s32 %v1559, %v1652
      %v1654 = vrot.slane %v1364, %v1653
      %v1655 = vsel %vm1564, %v1654, %v1650
      %v1656 = vlaneseq
      %v1657 = vshrl.u32 %v1656, 7
      %v1658 = vsub.s32 %v1566, %v1657
      %v1659 = vrot.slane %v1365, %v1658
      %v1660 = vsel %vm1571, %v1659, %v1655
      %v1661 = vlaneseq
      %v1662 = vshrl.u32 %v1661, 7
      %v1663 = vsub.s32 %v1573, %v1662
      %v1664 = vrot.slane %v1366, %v1663
      %v1665 = vsel %vm1578, %v1664, %v1660
      %v1666 = vlaneseq
      %v1667 = vshrl.u32 %v1666, 7
      %v1668 = vsub.s32 %v1580, %v1667
      %v1669 = vrot.slane %v1367, %v1668
      %v1670 = vsel %vm1585, %v1669, %v1665
      %v1671 = vlaneseq
      %v1672 = vshrl.u32 %v1671, 7
      %v1673 = vsub.s32 %v1587, %v1672
      %v1674 = vrot.slane %v1368, %v1673
      %v1675 = vsel %vm1592, %v1674, %v1670
      %v1676 = vlaneseq
      %v1677 = vshrl.u32 %v1676, 7
      %v1678 = vsub.s32 %v1594, %v1677
      %v1679 = vrot.slane %v1369, %v1678
      %v1680 = vsel %vm1599, %v1679, %v1675
      %v1681 = vlaneseq
      %v1682 = vshrl.u32 %v1681, 7
      %v1683 = vsub.s32 %v1601, %v1682
      %v1684 = vrot.slane %v1370, %v1683
      %v1685 = vsel %vm1606, %v1684, %v1680
      %v1686 = vlaneseq
      %v1687 = vshrl.u32 %v1686, 7
      %v1688 = vsub.s32 %v1554, %v1687
      %v1689 = vrot.slane %v1371, %v1688
      %v1690 = vlaneseq
      %v1691 = vshrl.u32 %v1690, 7
      %v1692 = vsub.s32 %v1559, %v1691
      %v1693 = vrot.slane %v1372, %v1692
      %v1694 = vsel %vm1564, %v1693, %v1689
      %v1695 = vlaneseq
      %v1696 = vshrl.u32 %v1695, 7
      %v1697 = vsub.s32 %v1566, %v1696
      %v1698 = vrot.slane %v1373, %v1697
      %v1699 = vsel %vm1571, %v1698, %v1694
      %v1700 = vlaneseq
      %v1701 = vshrl.u32 %v1700, 7
      %v1702 = vsub.s32 %v1573, %v1701
      %v1703 = vrot.slane %v1374, %v1702
      %v1704 = vsel %vm1578, %v1703, %v1699
      %v1705 = vlaneseq
      %v1706 = vshrl.u32 %v1705, 7
      %v1707 = vsub.s32 %v1580, %v1706
      %v1708 = vrot.slane %v1375, %v1707
      %v1709 = vsel %vm1585, %v1708, %v1704
      %v1710 = vlaneseq
      %v1711 = vshrl.u32 %v1710, 7
      %v1712 = vsub.s32 %v1587, %v1711
      %v1713 = vrot.slane %v1376, %v1712
      %v1714 = vsel %vm1592, %v1713, %v1709
      %v1715 = vlaneseq
      %v1716 = vshrl.u32 %v1715, 7
      %v1717 = vsub.s32 %v1594, %v1716
      %v1718 = vrot.slane %v1377, %v1717
      %v1719 = vsel %vm1599, %v1718, %v1714
      %v1720 = vlaneseq
      %v1721 = vshrl.u32 %v1720, 7
      %v1722 = vsub.s32 %v1601, %v1721
      %v1723 = vrot.slane %v1378, %v1722
      %v1724 = vsel %vm1606, %v1723, %v1719
      %v1725 = vlaneseq
      %v1726 = vshrl.u32 %v1725, 7
      %v1727 = vsub.s32 %v1554, %v1726
      %v1728 = vrot.slane %v1379, %v1727
      %v1729 = vlaneseq
      %v1730 = vshrl.u32 %v1729, 7
      %v1731 = vsub.s32 %v1559, %v1730
      %v1732 = vrot.slane %v1380, %v1731
      %v1733 = vsel %vm1564, %v1732, %v1728
      %v1734 = vlaneseq
      %v1735 = vshrl.u32 %v1734, 7
      %v1736 = vsub.s32 %v1566, %v1735
      %v1737 = vrot.slane %v1381, %v1736
      %v1738 = vsel %vm1571, %v1737, %v1733
      %v1739 = vlaneseq
      %v1740 = vshrl.u32 %v1739, 7
      %v1741 = vsub.s32 %v1573, %v1740
      %v1742 = vrot.slane %v1382, %v1741
      %v1743 = vsel %vm1578, %v1742, %v1738
      %v1744 = vlaneseq
      %v1745 = vshrl.u32 %v1744, 7
      %v1746 = vsub.s32 %v1580, %v1745
      %v1747 = vrot.slane %v1383, %v1746
      %v1748 = vsel %vm1585, %v1747, %v1743
      %v1749 = vlaneseq
      %v1750 = vshrl.u32 %v1749, 7
      %v1751 = vsub.s32 %v1587, %v1750
      %v1752 = vrot.slane %v1384, %v1751
      %v1753 = vsel %vm1592, %v1752, %v1748
      %v1754 = vlaneseq
      %v1755 = vshrl.u32 %v1754, 7
      %v1756 = vsub.s32 %v1594, %v1755
      %v1757 = vrot.slane %v1385, %v1756
      %v1758 = vsel %vm1599, %v1757, %v1753
      %v1759 = vlaneseq
      %v1760 = vshrl.u32 %v1759, 7
      %v1761 = vsub.s32 %v1601, %v1760
      %v1762 = vrot.slane %v1386, %v1761
      %v1763 = vsel %vm1606, %v1762, %v1758
      %v1764 = vlaneseq
      %v1765 = vshrl.u32 %v1764, 7
      %v1766 = vsub.s32 %v1554, %v1765
      %v1767 = vrot.slane %v1387, %v1766
      %v1768 = vlaneseq
      %v1769 = vshrl.u32 %v1768, 7
      %v1770 = vsub.s32 %v1559, %v1769
      %v1771 = vrot.slane %v1388, %v1770
      %v1772 = vsel %vm1564, %v1771, %v1767
      %v1773 = vlaneseq
      %v1774 = vshrl.u32 %v1773, 7
      %v1775 = vsub.s32 %v1566, %v1774
      %v1776 = vrot.slane %v1389, %v1775
      %v1777 = vsel %vm1571, %v1776, %v1772
      %v1778 = vlaneseq
      %v1779 = vshrl.u32 %v1778, 7
      %v1780 = vsub.s32 %v1573, %v1779
      %v1781 = vrot.slane %v1390, %v1780
      %v1782 = vsel %vm1578, %v1781, %v1777
      %v1783 = vlaneseq
      %v1784 = vshrl.u32 %v1783, 7
      %v1785 = vsub.s32 %v1580, %v1784
      %v1786 = vrot.slane %v1391, %v1785
      %v1787 = vsel %vm1585, %v1786, %v1782
      %v1788 = vlaneseq
      %v1789 = vshrl.u32 %v1788, 7
      %v1790 = vsub.s32 %v1587, %v1789
      %v1791 = vrot.slane %v1392, %v1790
      %v1792 = vsel %vm1592, %v1791, %v1787
      %v1793 = vlaneseq
      %v1794 = vshrl.u32 %v1793, 7
      %v1795 = vsub.s32 %v1594, %v1794
      %v1796 = vrot.slane %v1393, %v1795
      %v1797 = vsel %vm1599, %v1796, %v1792
      %v1798 = vlaneseq
      %v1799 = vshrl.u32 %v1798, 7
      %v1800 = vsub.s32 %v1601, %v1799
      %v1801 = vrot.slane %v1394, %v1800
      %v1802 = vsel %vm1606, %v1801, %v1797
      %v1803 = vlaneseq
      %v1804 = vshrl.u32 %v1803, 7
      %v1805 = vsub.s32 %v1554, %v1804
      %v1806 = vrot.slane %v1395, %v1805
      %v1807 = vlaneseq
      %v1808 = vshrl.u32 %v1807, 7
      %v1809 = vsub.s32 %v1559, %v1808
      %v1810 = vrot.slane %v1396, %v1809
      %v1811 = vsel %vm1564, %v1810, %v1806
      %v1812 = vlaneseq
      %v1813 = vshrl.u32 %v1812, 7
      %v1814 = vsub.s32 %v1566, %v1813
      %v1815 = vrot.slane %v1397, %v1814
      %v1816 = vsel %vm1571, %v1815, %v1811
      %v1817 = vlaneseq
      %v1818 = vshrl.u32 %v1817, 7
      %v1819 = vsub.s32 %v1573, %v1818
      %v1820 = vrot.slane %v1398, %v1819
      %v1821 = vsel %vm1578, %v1820, %v1816
      %v1822 = vlaneseq
      %v1823 = vshrl.u32 %v1822, 7
      %v1824 = vsub.s32 %v1580, %v1823
      %v1825 = vrot.slane %v1399, %v1824
      %v1826 = vsel %vm1585, %v1825, %v1821
      %v1827 = vlaneseq
      %v1828 = vshrl.u32 %v1827, 7
      %v1829 = vsub.s32 %v1587, %v1828
      %v1830 = vrot.slane %v1400, %v1829
      %v1831 = vsel %vm1592, %v1830, %v1826
      %v1832 = vlaneseq
      %v1833 = vshrl.u32 %v1832, 7
      %v1834 = vsub.s32 %v1594, %v1833
      %v1835 = vrot.slane %v1401, %v1834
      %v1836 = vsel %vm1599, %v1835, %v1831
      %v1837 = vlaneseq
      %v1838 = vshrl.u32 %v1837, 7
      %v1839 = vsub.s32 %v1601, %v1838
      %v1840 = vrot.slane %v1402, %v1839
      %v1841 = vsel %vm1606, %v1840, %v1836
      %v1842 = vlaneseq
      %v1843 = vshrl.u32 %v1842, 7
      %v1844 = vsub.s32 %v1554, %v1843
      %v1845 = vrot.slane %v1403, %v1844
      %v1846 = vlaneseq
      %v1847 = vshrl.u32 %v1846, 7
      %v1848 = vsub.s32 %v1559, %v1847
      %v1849 = vrot.slane %v1404, %v1848
      %v1850 = vsel %vm1564, %v1849, %v1845
      %v1851 = vlaneseq
      %v1852 = vshrl.u32 %v1851, 7
      %v1853 = vsub.s32 %v1566, %v1852
      %v1854 = vrot.slane %v1405, %v1853
      %v1855 = vsel %vm1571, %v1854, %v1850
      %v1856 = vlaneseq
      %v1857 = vshrl.u32 %v1856, 7
      %v1858 = vsub.s32 %v1573, %v1857
      %v1859 = vrot.slane %v1406, %v1858
      %v1860 = vsel %vm1578, %v1859, %v1855
      %v1861 = vlaneseq
      %v1862 = vshrl.u32 %v1861, 7
      %v1863 = vsub.s32 %v1580, %v1862
      %v1864 = vrot.slane %v1407, %v1863
      %v1865 = vsel %vm1585, %v1864, %v1860
      %v1866 = vlaneseq
      %v1867 = vshrl.u32 %v1866, 7
      %v1868 = vsub.s32 %v1587, %v1867
      %v1869 = vrot.slane %v1408, %v1868
      %v1870 = vsel %vm1592, %v1869, %v1865
      %v1871 = vlaneseq
      %v1872 = vshrl.u32 %v1871, 7
      %v1873 = vsub.s32 %v1594, %v1872
      %v1874 = vrot.slane %v1409, %v1873
      %v1875 = vsel %vm1599, %v1874, %v1870
      %v1876 = vlaneseq
      %v1877 = vshrl.u32 %v1876, 7
      %v1878 = vsub.s32 %v1601, %v1877
      %v1879 = vrot.slane %v1410, %v1878
      %v1880 = vsel %vm1606, %v1879, %v1875
      %vm1881 = vcmask 1041409
      %v1882 = vsel %vm1881, %v1646, %v1607
      %vm1883 = vcmask 1042434
      %v1884 = vsel %vm1883, %v1685, %v1882
      %vm1885 = vcmask 1043459
      %v1886 = vsel %vm1885, %v1724, %v1884
      %vm1887 = vcmask 1044484
      %v1888 = vsel %vm1887, %v1763, %v1886
      %vm1889 = vcmask 1045509
      %v1890 = vsel %vm1889, %v1802, %v1888
      %vm1891 = vcmask 1046534
      %v1892 = vsel %vm1891, %v1841, %v1890
      %vm1893 = vcmask 1047559
      %v1894 = vsel %vm1893, %v1880, %v1892
      %v1959 = vlaneseq
      %v1960 = vshrl.u32 %v1959, 7
      %v1961 = vsub.s32 %v1554, %v1960
      %v1962 = vrot.slane %v1411, %v1961
      %v1963 = vlaneseq
      %v1964 = vshrl.u32 %v1963, 7
      %v1965 = vsub.s32 %v1559, %v1964
      %v1966 = vrot.slane %v1412, %v1965
      %v1967 = vsel %vm1564, %v1966, %v1962
      %v1968 = vlaneseq
      %v1969 = vshrl.u32 %v1968, 7
      %v1970 = vsub.s32 %v1566, %v1969
      %v1971 = vrot.slane %v1413, %v1970
      %v1972 = vsel %vm1571, %v1971, %v1967
      %v1973 = vlaneseq
      %v1974 = vshrl.u32 %v1973, 7
      %v1975 = vsub.s32 %v1573, %v1974
      %v1976 = vrot.slane %v1414, %v1975
      %v1977 = vsel %vm1578, %v1976, %v1972
      %v1978 = vlaneseq
      %v1979 = vshrl.u32 %v1978, 7
      %v1980 = vsub.s32 %v1580, %v1979
      %v1981 = vrot.slane %v1415, %v1980
      %v1982 = vsel %vm1585, %v1981, %v1977
      %v1983 = vlaneseq
      %v1984 = vshrl.u32 %v1983, 7
      %v1985 = vsub.s32 %v1587, %v1984
      %v1986 = vrot.slane %v1416, %v1985
      %v1987 = vsel %vm1592, %v1986, %v1982
      %v1988 = vlaneseq
      %v1989 = vshrl.u32 %v1988, 7
      %v1990 = vsub.s32 %v1594, %v1989
      %v1991 = vrot.slane %v1417, %v1990
      %v1992 = vsel %vm1599, %v1991, %v1987
      %v1993 = vlaneseq
      %v1994 = vshrl.u32 %v1993, 7
      %v1995 = vsub.s32 %v1601, %v1994
      %v1996 = vrot.slane %v1418, %v1995
      %v1997 = vsel %vm1606, %v1996, %v1992
      %v1998 = vlaneseq
      %v1999 = vshrl.u32 %v1998, 7
      %v2000 = vsub.s32 %v1554, %v1999
      %v2001 = vrot.slane %v1419, %v2000
      %v2002 = vlaneseq
      %v2003 = vshrl.u32 %v2002, 7
      %v2004 = vsub.s32 %v1559, %v2003
      %v2005 = vrot.slane %v1420, %v2004
      %v2006 = vsel %vm1564, %v2005, %v2001
      %v2007 = vlaneseq
      %v2008 = vshrl.u32 %v2007, 7
      %v2009 = vsub.s32 %v1566, %v2008
      %v2010 = vrot.slane %v1421, %v2009
      %v2011 = vsel %vm1571, %v2010, %v2006
      %v2012 = vlaneseq
      %v2013 = vshrl.u32 %v2012, 7
      %v2014 = vsub.s32 %v1573, %v2013
      %v2015 = vrot.slane %v1422, %v2014
      %v2016 = vsel %vm1578, %v2015, %v2011
      %v2017 = vlaneseq
      %v2018 = vshrl.u32 %v2017, 7
      %v2019 = vsub.s32 %v1580, %v2018
      %v2020 = vrot.slane %v1423, %v2019
      %v2021 = vsel %vm1585, %v2020, %v2016
      %v2022 = vlaneseq
      %v2023 = vshrl.u32 %v2022, 7
      %v2024 = vsub.s32 %v1587, %v2023
      %v2025 = vrot.slane %v1424, %v2024
      %v2026 = vsel %vm1592, %v2025, %v2021
      %v2027 = vlaneseq
      %v2028 = vshrl.u32 %v2027, 7
      %v2029 = vsub.s32 %v1594, %v2028
      %v2030 = vrot.slane %v1425, %v2029
      %v2031 = vsel %vm1599, %v2030, %v2026
      %v2032 = vlaneseq
      %v2033 = vshrl.u32 %v2032, 7
      %v2034 = vsub.s32 %v1601, %v2033
      %v2035 = vrot.slane %v1426, %v2034
      %v2036 = vsel %vm1606, %v2035, %v2031
      %v2037 = vlaneseq
      %v2038 = vshrl.u32 %v2037, 7
      %v2039 = vsub.s32 %v1554, %v2038
      %v2040 = vrot.slane %v1427, %v2039
      %v2041 = vlaneseq
      %v2042 = vshrl.u32 %v2041, 7
      %v2043 = vsub.s32 %v1559, %v2042
      %v2044 = vrot.slane %v1428, %v2043
      %v2045 = vsel %vm1564, %v2044, %v2040
      %v2046 = vlaneseq
      %v2047 = vshrl.u32 %v2046, 7
      %v2048 = vsub.s32 %v1566, %v2047
      %v2049 = vrot.slane %v1429, %v2048
      %v2050 = vsel %vm1571, %v2049, %v2045
      %v2051 = vlaneseq
      %v2052 = vshrl.u32 %v2051, 7
      %v2053 = vsub.s32 %v1573, %v2052
      %v2054 = vrot.slane %v1430, %v2053
      %v2055 = vsel %vm1578, %v2054, %v2050
      %v2056 = vlaneseq
      %v2057 = vshrl.u32 %v2056, 7
      %v2058 = vsub.s32 %v1580, %v2057
      %v2059 = vrot.slane %v1431, %v2058
      %v2060 = vsel %vm1585, %v2059, %v2055
      %v2061 = vlaneseq
      %v2062 = vshrl.u32 %v2061, 7
      %v2063 = vsub.s32 %v1587, %v2062
      %v2064 = vrot.slane %v1432, %v2063
      %v2065 = vsel %vm1592, %v2064, %v2060
      %v2066 = vlaneseq
      %v2067 = vshrl.u32 %v2066, 7
      %v2068 = vsub.s32 %v1594, %v2067
      %v2069 = vrot.slane %v1433, %v2068
      %v2070 = vsel %vm1599, %v2069, %v2065
      %v2071 = vlaneseq
      %v2072 = vshrl.u32 %v2071, 7
      %v2073 = vsub.s32 %v1601, %v2072
      %v2074 = vrot.slane %v1434, %v2073
      %v2075 = vsel %vm1606, %v2074, %v2070
      %v2076 = vlaneseq
      %v2077 = vshrl.u32 %v2076, 7
      %v2078 = vsub.s32 %v1554, %v2077
      %v2079 = vrot.slane %v1435, %v2078
      %v2080 = vlaneseq
      %v2081 = vshrl.u32 %v2080, 7
      %v2082 = vsub.s32 %v1559, %v2081
      %v2083 = vrot.slane %v1436, %v2082
      %v2084 = vsel %vm1564, %v2083, %v2079
      %v2085 = vlaneseq
      %v2086 = vshrl.u32 %v2085, 7
      %v2087 = vsub.s32 %v1566, %v2086
      %v2088 = vrot.slane %v1437, %v2087
      %v2089 = vsel %vm1571, %v2088, %v2084
      %v2090 = vlaneseq
      %v2091 = vshrl.u32 %v2090, 7
      %v2092 = vsub.s32 %v1573, %v2091
      %v2093 = vrot.slane %v1438, %v2092
      %v2094 = vsel %vm1578, %v2093, %v2089
      %v2095 = vlaneseq
      %v2096 = vshrl.u32 %v2095, 7
      %v2097 = vsub.s32 %v1580, %v2096
      %v2098 = vrot.slane %v1439, %v2097
      %v2099 = vsel %vm1585, %v2098, %v2094
      %v2100 = vlaneseq
      %v2101 = vshrl.u32 %v2100, 7
      %v2102 = vsub.s32 %v1587, %v2101
      %v2103 = vrot.slane %v1440, %v2102
      %v2104 = vsel %vm1592, %v2103, %v2099
      %v2105 = vlaneseq
      %v2106 = vshrl.u32 %v2105, 7
      %v2107 = vsub.s32 %v1594, %v2106
      %v2108 = vrot.slane %v1441, %v2107
      %v2109 = vsel %vm1599, %v2108, %v2104
      %v2110 = vlaneseq
      %v2111 = vshrl.u32 %v2110, 7
      %v2112 = vsub.s32 %v1601, %v2111
      %v2113 = vrot.slane %v1442, %v2112
      %v2114 = vsel %vm1606, %v2113, %v2109
      %v2115 = vlaneseq
      %v2116 = vshrl.u32 %v2115, 7
      %v2117 = vsub.s32 %v1554, %v2116
      %v2118 = vrot.slane %v1443, %v2117
      %v2119 = vlaneseq
      %v2120 = vshrl.u32 %v2119, 7
      %v2121 = vsub.s32 %v1559, %v2120
      %v2122 = vrot.slane %v1444, %v2121
      %v2123 = vsel %vm1564, %v2122, %v2118
      %v2124 = vlaneseq
      %v2125 = vshrl.u32 %v2124, 7
      %v2126 = vsub.s32 %v1566, %v2125
      %v2127 = vrot.slane %v1445, %v2126
      %v2128 = vsel %vm1571, %v2127, %v2123
      %v2129 = vlaneseq
      %v2130 = vshrl.u32 %v2129, 7
      %v2131 = vsub.s32 %v1573, %v2130
      %v2132 = vrot.slane %v1446, %v2131
      %v2133 = vsel %vm1578, %v2132, %v2128
      %v2134 = vlaneseq
      %v2135 = vshrl.u32 %v2134, 7
      %v2136 = vsub.s32 %v1580, %v2135
      %v2137 = vrot.slane %v1447, %v2136
      %v2138 = vsel %vm1585, %v2137, %v2133
      %v2139 = vlaneseq
      %v2140 = vshrl.u32 %v2139, 7
      %v2141 = vsub.s32 %v1587, %v2140
      %v2142 = vrot.slane %v1448, %v2141
      %v2143 = vsel %vm1592, %v2142, %v2138
      %v2144 = vlaneseq
      %v2145 = vshrl.u32 %v2144, 7
      %v2146 = vsub.s32 %v1594, %v2145
      %v2147 = vrot.slane %v1449, %v2146
      %v2148 = vsel %vm1599, %v2147, %v2143
      %v2149 = vlaneseq
      %v2150 = vshrl.u32 %v2149, 7
      %v2151 = vsub.s32 %v1601, %v2150
      %v2152 = vrot.slane %v1450, %v2151
      %v2153 = vsel %vm1606, %v2152, %v2148
      %v2154 = vlaneseq
      %v2155 = vshrl.u32 %v2154, 7
      %v2156 = vsub.s32 %v1554, %v2155
      %v2157 = vrot.slane %v1451, %v2156
      %v2158 = vlaneseq
      %v2159 = vshrl.u32 %v2158, 7
      %v2160 = vsub.s32 %v1559, %v2159
      %v2161 = vrot.slane %v1452, %v2160
      %v2162 = vsel %vm1564, %v2161, %v2157
      %v2163 = vlaneseq
      %v2164 = vshrl.u32 %v2163, 7
      %v2165 = vsub.s32 %v1566, %v2164
      %v2166 = vrot.slane %v1453, %v2165
      %v2167 = vsel %vm1571, %v2166, %v2162
      %v2168 = vlaneseq
      %v2169 = vshrl.u32 %v2168, 7
      %v2170 = vsub.s32 %v1573, %v2169
      %v2171 = vrot.slane %v1454, %v2170
      %v2172 = vsel %vm1578, %v2171, %v2167
      %v2173 = vlaneseq
      %v2174 = vshrl.u32 %v2173, 7
      %v2175 = vsub.s32 %v1580, %v2174
      %v2176 = vrot.slane %v1455, %v2175
      %v2177 = vsel %vm1585, %v2176, %v2172
      %v2178 = vlaneseq
      %v2179 = vshrl.u32 %v2178, 7
      %v2180 = vsub.s32 %v1587, %v2179
      %v2181 = vrot.slane %v1456, %v2180
      %v2182 = vsel %vm1592, %v2181, %v2177
      %v2183 = vlaneseq
      %v2184 = vshrl.u32 %v2183, 7
      %v2185 = vsub.s32 %v1594, %v2184
      %v2186 = vrot.slane %v1457, %v2185
      %v2187 = vsel %vm1599, %v2186, %v2182
      %v2188 = vlaneseq
      %v2189 = vshrl.u32 %v2188, 7
      %v2190 = vsub.s32 %v1601, %v2189
      %v2191 = vrot.slane %v1458, %v2190
      %v2192 = vsel %vm1606, %v2191, %v2187
      %v2193 = vlaneseq
      %v2194 = vshrl.u32 %v2193, 7
      %v2195 = vsub.s32 %v1554, %v2194
      %v2196 = vrot.slane %v1459, %v2195
      %v2197 = vlaneseq
      %v2198 = vshrl.u32 %v2197, 7
      %v2199 = vsub.s32 %v1559, %v2198
      %v2200 = vrot.slane %v1460, %v2199
      %v2201 = vsel %vm1564, %v2200, %v2196
      %v2202 = vlaneseq
      %v2203 = vshrl.u32 %v2202, 7
      %v2204 = vsub.s32 %v1566, %v2203
      %v2205 = vrot.slane %v1461, %v2204
      %v2206 = vsel %vm1571, %v2205, %v2201
      %v2207 = vlaneseq
      %v2208 = vshrl.u32 %v2207, 7
      %v2209 = vsub.s32 %v1573, %v2208
      %v2210 = vrot.slane %v1462, %v2209
      %v2211 = vsel %vm1578, %v2210, %v2206
      %v2212 = vlaneseq
      %v2213 = vshrl.u32 %v2212, 7
      %v2214 = vsub.s32 %v1580, %v2213
      %v2215 = vrot.slane %v1463, %v2214
      %v2216 = vsel %vm1585, %v2215, %v2211
      %v2217 = vlaneseq
      %v2218 = vshrl.u32 %v2217, 7
      %v2219 = vsub.s32 %v1587, %v2218
      %v2220 = vrot.slane %v1464, %v2219
      %v2221 = vsel %vm1592, %v2220, %v2216
      %v2222 = vlaneseq
      %v2223 = vshrl.u32 %v2222, 7
      %v2224 = vsub.s32 %v1594, %v2223
      %v2225 = vrot.slane %v1465, %v2224
      %v2226 = vsel %vm1599, %v2225, %v2221
      %v2227 = vlaneseq
      %v2228 = vshrl.u32 %v2227, 7
      %v2229 = vsub.s32 %v1601, %v2228
      %v2230 = vrot.slane %v1466, %v2229
      %v2231 = vsel %vm1606, %v2230, %v2226
      %v2232 = vlaneseq
      %v2233 = vshrl.u32 %v2232, 7
      %v2234 = vsub.s32 %v1554, %v2233
      %v2235 = vrot.slane %v1467, %v2234
      %v2236 = vlaneseq
      %v2237 = vshrl.u32 %v2236, 7
      %v2238 = vsub.s32 %v1559, %v2237
      %v2239 = vrot.slane %v1468, %v2238
      %v2240 = vsel %vm1564, %v2239, %v2235
      %v2241 = vlaneseq
      %v2242 = vshrl.u32 %v2241, 7
      %v2243 = vsub.s32 %v1566, %v2242
      %v2244 = vrot.slane %v1469, %v2243
      %v2245 = vsel %vm1571, %v2244, %v2240
      %v2246 = vlaneseq
      %v2247 = vshrl.u32 %v2246, 7
      %v2248 = vsub.s32 %v1573, %v2247
      %v2249 = vrot.slane %v1470, %v2248
      %v2250 = vsel %vm1578, %v2249, %v2245
      %v2251 = vlaneseq
      %v2252 = vshrl.u32 %v2251, 7
      %v2253 = vsub.s32 %v1580, %v2252
      %v2254 = vrot.slane %v1471, %v2253
      %v2255 = vsel %vm1585, %v2254, %v2250
      %v2256 = vlaneseq
      %v2257 = vshrl.u32 %v2256, 7
      %v2258 = vsub.s32 %v1587, %v2257
      %v2259 = vrot.slane %v1472, %v2258
      %v2260 = vsel %vm1592, %v2259, %v2255
      %v2261 = vlaneseq
      %v2262 = vshrl.u32 %v2261, 7
      %v2263 = vsub.s32 %v1594, %v2262
      %v2264 = vrot.slane %v1473, %v2263
      %v2265 = vsel %vm1599, %v2264, %v2260
      %v2266 = vlaneseq
      %v2267 = vshrl.u32 %v2266, 7
      %v2268 = vsub.s32 %v1601, %v2267
      %v2269 = vrot.slane %v1474, %v2268
      %v2270 = vsel %vm1606, %v2269, %v2265
      %v2271 = vsel %vm1881, %v2036, %v1997
      %v2272 = vsel %vm1883, %v2075, %v2271
      %v2273 = vsel %vm1885, %v2114, %v2272
      %v2274 = vsel %vm1887, %v2153, %v2273
      %v2275 = vsel %vm1889, %v2192, %v2274
      %v2276 = vsel %vm1891, %v2231, %v2275
      %v2277 = vsel %vm1893, %v2270, %v2276
      %vm2278 = vcmask 523264
      %v2279 = vsel %vm2278, %v1894, 0
      %v2281 = vsel %vm2278, %v2277, 0
      %2283 = vmatprep.subr.mxu0 0.0
      %2284 = vmatpush1.msra.mxu0 0.0
      %2285 = vmatprep.subr.mxu0 0.0
      %2286 = vmatpush1.msra.mxu0 0.0
      %2287 = vmatprep.subr.mxu0 0.0
      %2288 = vmatpush1.msra.mxu0 0.0
      %2289 = vmatprep.subr.mxu0 0.0
      %2290 = vmatpush1.msra.mxu0 0.0
      %2291 = vmatprep.subr.mxu0 0.0
      %2292 = vmatpush1.msra.mxu0 0.0
      %2293 = vmatprep.subr.mxu0 0.0
      %2294 = vmatpush1.msra.mxu0 0.0
      %2295 = vmatprep.subr.mxu0 0.0
      %2296 = vmatpush1.msra.mxu0 0.0
      %2297 = vmatprep.subr.mxu0 0.0
      %2298 = vmatpush1.msra.mxu0 0.0
      %2299 = vmatprep.subr.mxu0 0.0
      %2300 = vmatpush1.msra.mxu0 %v1484
      %2301 = vmatprep.subr.mxu0 0.0
      %2302 = vmatpush1.msra.mxu0 %v1483
      %2303 = vmatprep.subr.mxu0 0.0
      %2304 = vmatpush1.msra.mxu0 %v1482
      %2305 = vmatprep.subr.mxu0 0.0
      %2306 = vmatpush1.msra.mxu0 %v1481
      %2307 = vmatprep.subr.mxu0 0.0
      %2308 = vmatpush1.msra.mxu0 %v1480
      %2309 = vmatprep.subr.mxu0 0.0
      %2310 = vmatpush1.msra.mxu0 %v1479
      %2311 = vmatprep.subr.mxu0 0.0
      %2312 = vmatpush1.msra.mxu0 %v1478
      %2313 = vmatprep.subr.mxu0 0.0
      %2314 = vmatpush1.msra.mxu0 %v1477
      %2315 = vmatprep.subr.mxu0 0.0
      %2316 = vmatpush2.msra.mxu0 0.0
      %2317 = vmatprep.subr.mxu0 0.0
      %2318 = vmatpush2.msra.mxu0 0.0
      %2319 = vmatprep.subr.mxu0 0.0
      %2320 = vmatpush2.msra.mxu0 0.0
      %2321 = vmatprep.subr.mxu0 0.0
      %2322 = vmatpush2.msra.mxu0 0.0
      %2323 = vmatprep.subr.mxu0 0.0
      %2324 = vmatpush2.msra.mxu0 0.0
      %2325 = vmatprep.subr.mxu0 0.0
      %2326 = vmatpush2.msra.mxu0 0.0
      %2327 = vmatprep.subr.mxu0 0.0
      %2328 = vmatpush2.msra.mxu0 0.0
      %2329 = vmatprep.subr.mxu0 0.0
      %2330 = vmatpush2.msra.mxu0 0.0
      %2331 = vmatprep.subr.mxu0 0.0
      %2332 = vmatpush2.msra.mxu0 0.0
      %2333 = vmatprep.subr.mxu0 0.0
      %2334 = vmatpush2.msra.mxu0 0.0
      %2335 = vmatprep.subr.mxu0 0.0
      %2336 = vmatpush2.msra.mxu0 0.0
      %2337 = vmatprep.subr.mxu0 0.0
      %2338 = vmatpush2.msra.mxu0 0.0
      %2339 = vmatprep.subr.mxu0 0.0
      %2340 = vmatpush2.msra.mxu0 0.0
      %2341 = vmatprep.subr.mxu0 0.0
      %2342 = vmatpush2.msra.mxu0 0.0
      %2343 = vmatprep.subr.mxu0 0.0
      %2344 = vmatpush2.msra.mxu0 0.0
      %2345 = vmatprep.subr.mxu0 0.0
      %2346 = vmatpush2.msra.mxu0 0.0
      %2347 = vmatprep.mubr.f32.mxu0 0.0
      %2348 = vmatmul.mubr.f32.gmra.mxu0 %v2279
      %v2349 = vpop.f32.mrf.mxu0
      %v2350 = vadd.f32 0.0, %v2349
      %v2351 = vpop.f32.mrf.mxu0
      %2352 = vmatprep.mubr.f32.mxu0 0.0
      %2353 = vmatmul.mubr.f32.gmra.mxu0 %v2281
      %v2354 = vpop.f32.mrf.mxu0
      %v2355 = vadd.f32 0.0, %v2354
      %v2356 = vpop.f32.mrf.mxu0
      %2357 = vdwg.mxu0
      %vm2358 = vcmask 261120
      %v2360 = vsel %vm2358, %v2350, 0
      %v2363 = vsel %vm2358, %v2355, 0
      %2365 = vmatprep.subr.mxu0 0.0
      %2366 = vmatpush1.msra.mxu0 0.0
      %2367 = vmatprep.subr.mxu0 0.0
      %2368 = vmatpush1.msra.mxu0 0.0
      %2369 = vmatprep.subr.mxu0 0.0
      %2370 = vmatpush1.msra.mxu0 0.0
      %2371 = vmatprep.subr.mxu0 0.0
      %2372 = vmatpush1.msra.mxu0 0.0
      %2373 = vmatprep.subr.mxu0 0.0
      %2374 = vmatpush1.msra.mxu0 0.0
      %2375 = vmatprep.subr.mxu0 0.0
      %2376 = vmatpush1.msra.mxu0 0.0
      %2377 = vmatprep.subr.mxu0 0.0
      %2378 = vmatpush1.msra.mxu0 0.0
      %2379 = vmatprep.subr.mxu0 0.0
      %2380 = vmatpush1.msra.mxu0 0.0
      %2381 = vmatprep.subr.mxu0 0.0
      %2382 = vmatpush1.msra.mxu0 0.0
      %2383 = vmatprep.subr.mxu0 0.0
      %2384 = vmatpush1.msra.mxu0 0.0
      %2385 = vmatprep.subr.mxu0 0.0
      %2386 = vmatpush1.msra.mxu0 0.0
      %2387 = vmatprep.subr.mxu0 0.0
      %2388 = vmatpush1.msra.mxu0 0.0
      %2389 = vmatprep.subr.mxu0 0.0
      %2390 = vmatpush1.msra.mxu0 %v1488
      %2391 = vmatprep.subr.mxu0 0.0
      %2392 = vmatpush1.msra.mxu0 %v1487
      %2393 = vmatprep.subr.mxu0 0.0
      %2394 = vmatpush1.msra.mxu0 %v1486
      %2395 = vmatprep.subr.mxu0 0.0
      %2396 = vmatpush1.msra.mxu0 %v1485
      %2397 = vmatprep.subr.mxu0 0.0
      %2398 = vmatpush2.msra.mxu0 0.0
      %2399 = vmatprep.subr.mxu0 0.0
      %2400 = vmatpush2.msra.mxu0 0.0
      %2401 = vmatprep.subr.mxu0 0.0
      %2402 = vmatpush2.msra.mxu0 0.0
      %2403 = vmatprep.subr.mxu0 0.0
      %2404 = vmatpush2.msra.mxu0 0.0
      %2405 = vmatprep.subr.mxu0 0.0
      %2406 = vmatpush2.msra.mxu0 0.0
      %2407 = vmatprep.subr.mxu0 0.0
      %2408 = vmatpush2.msra.mxu0 0.0
      %2409 = vmatprep.subr.mxu0 0.0
      %2410 = vmatpush2.msra.mxu0 0.0
      %2411 = vmatprep.subr.mxu0 0.0
      %2412 = vmatpush2.msra.mxu0 0.0
      %2413 = vmatprep.subr.mxu0 0.0
      %2414 = vmatpush2.msra.mxu0 0.0
      %2415 = vmatprep.subr.mxu0 0.0
      %2416 = vmatpush2.msra.mxu0 0.0
      %2417 = vmatprep.subr.mxu0 0.0
      %2418 = vmatpush2.msra.mxu0 0.0
      %2419 = vmatprep.subr.mxu0 0.0
      %2420 = vmatpush2.msra.mxu0 0.0
      %2421 = vmatprep.subr.mxu0 0.0
      %2422 = vmatpush2.msra.mxu0 0.0
      %2423 = vmatprep.subr.mxu0 0.0
      %2424 = vmatpush2.msra.mxu0 0.0
      %2425 = vmatprep.subr.mxu0 0.0
      %2426 = vmatpush2.msra.mxu0 0.0
      %2427 = vmatprep.subr.mxu0 0.0
      %2428 = vmatpush2.msra.mxu0 0.0
      %2429 = vmatprep.mubr.f32.mxu0 0.0
      %2430 = vmatmul.mubr.f32.gmra.mxu0 %v2360
      %v2431 = vpop.f32.mrf.mxu0
      %v2432 = vadd.f32 0.0, %v2431
      %v2433 = vpop.f32.mrf.mxu0
      %2434 = vmatprep.mubr.f32.mxu0 0.0
      %2435 = vmatmul.mubr.f32.gmra.mxu0 %v2363
      %v2436 = vpop.f32.mrf.mxu0
      %v2437 = vadd.f32 0.0, %v2436
      %v2438 = vpop.f32.mrf.mxu0
      %2439 = vdwg.mxu0
      %v2440 = vmul.f32 %v2432, %v2432
      %v2441 = vsub.f32 %v2437, %v2440
      %v2442 = vmax.f32 %v2441, 0.0
      %v2443 = vadd.f32 %v2442, 1e-05
      %v2444 = vrsqrt.pop %v2443
      %v2445 = vlaneseq
      %v2446 = vshrl.u32 %v2445, 7
      %v2447 = vsub.s32 0, %v2446
      %v2448 = vrot.slane %v1475, %v2447
      %v2449 = vmul.f32 %v2448, %v2444
      %v2450 = vmul.f32 %v2432, %v2449
      %v2451 = vlaneseq
      %v2452 = vshrl.u32 %v2451, 7
      %v2453 = vsub.s32 1, %v2452
      %v2454 = vrot.slane %v1475, %v2453
      %v2455 = vsub.f32 %v2454, %v2450
      %2457 = vxpose.xlu0.b32.start [1/16] %v1894, 128
      %2458 = vxpose.xlu0.b32.cont [2/16] 0.0, 128
      %2459 = vxpose.xlu0.b32.cont [3/16] 0.0, 128
      %2460 = vxpose.xlu0.b32.cont [4/16] 0.0, 128
      %2461 = vxpose.xlu0.b32.cont [5/16] 0.0, 128
      %2462 = vxpose.xlu0.b32.cont [6/16] 0.0, 128
      %2463 = vxpose.xlu0.b32.cont [7/16] 0.0, 128
      %2464 = vxpose.xlu0.b32.cont [8/16] 0.0, 128
      %2465 = vxpose.xlu0.b32.cont [9/16] 0.0, 128
      %2466 = vxpose.xlu0.b32.cont [10/16] 0.0, 128
      %2467 = vxpose.xlu0.b32.cont [11/16] 0.0, 128
      %2468 = vxpose.xlu0.b32.cont [12/16] 0.0, 128
      %2469 = vxpose.xlu0.b32.cont [13/16] 0.0, 128
      %2470 = vxpose.xlu0.b32.cont [14/16] 0.0, 128
      %2471 = vxpose.xlu0.b32.cont [15/16] 0.0, 128
      %2472 = vxpose.xlu0.b32.end [16/16] 0.0, 128
      %v2473 = vpop.trf.xlu0
      %v2474 = vpop.trf.xlu0
      %v2475 = vpop.trf.xlu0
      %v2476 = vpop.trf.xlu0
      %v2477 = vpop.trf.xlu0
      %v2478 = vpop.trf.xlu0
      %v2479 = vpop.trf.xlu0
      %v2480 = vpop.trf.xlu0
      %v2481 = vpop.trf.xlu0
      %v2482 = vpop.trf.xlu0
      %v2483 = vpop.trf.xlu0
      %v2484 = vpop.trf.xlu0
      %v2485 = vpop.trf.xlu0
      %v2486 = vpop.trf.xlu0
      %v2487 = vpop.trf.xlu0
      %v2488 = vpop.trf.xlu0
      %v2553 = vlaneseq
      %v2554 = vshrl.u32 %v2553, 7
      %v2555 = vsub.s32 %v1554, %v2554
      %v2556 = vrot.slane %v1157, %v2555
      %v2557 = vlaneseq
      %v2558 = vshrl.u32 %v2557, 7
      %v2559 = vsub.s32 %v1559, %v2558
      %v2560 = vrot.slane %v1160, %v2559
      %v2561 = vsel %vm1564, %v2560, %v2556
      %v2562 = vlaneseq
      %v2563 = vshrl.u32 %v2562, 7
      %v2564 = vsub.s32 %v1566, %v2563
      %v2565 = vrot.slane %v1163, %v2564
      %v2566 = vsel %vm1571, %v2565, %v2561
      %v2567 = vlaneseq
      %v2568 = vshrl.u32 %v2567, 7
      %v2569 = vsub.s32 %v1573, %v2568
      %v2570 = vrot.slane %v1166, %v2569
      %v2571 = vsel %vm1578, %v2570, %v2566
      %v2572 = vlaneseq
      %v2573 = vshrl.u32 %v2572, 7
      %v2574 = vsub.s32 %v1580, %v2573
      %v2575 = vrot.slane %v1169, %v2574
      %v2576 = vsel %vm1585, %v2575, %v2571
      %v2577 = vlaneseq
      %v2578 = vshrl.u32 %v2577, 7
      %v2579 = vsub.s32 %v1587, %v2578
      %v2580 = vrot.slane %v1172, %v2579
      %v2581 = vsel %vm1592, %v2580, %v2576
      %v2582 = vlaneseq
      %v2583 = vshrl.u32 %v2582, 7
      %v2584 = vsub.s32 %v1594, %v2583
      %v2585 = vrot.slane %v1175, %v2584
      %v2586 = vsel %vm1599, %v2585, %v2581
      %v2587 = vlaneseq
      %v2588 = vshrl.u32 %v2587, 7
      %v2589 = vsub.s32 %v1601, %v2588
      %v2590 = vrot.slane %v1178, %v2589
      %v2591 = vsel %vm1606, %v2590, %v2586
      %v2592 = vlaneseq
      %v2593 = vshrl.u32 %v2592, 7
      %v2594 = vsub.s32 %v1554, %v2593
      %v2595 = vrot.slane %v1181, %v2594
      %v2596 = vlaneseq
      %v2597 = vshrl.u32 %v2596, 7
      %v2598 = vsub.s32 %v1559, %v2597
      %v2599 = vrot.slane %v1184, %v2598
      %v2600 = vsel %vm1564, %v2599, %v2595
      %v2601 = vlaneseq
      %v2602 = vshrl.u32 %v2601, 7
      %v2603 = vsub.s32 %v1566, %v2602
      %v2604 = vrot.slane %v1187, %v2603
      %v2605 = vsel %vm1571, %v2604, %v2600
      %v2606 = vlaneseq
      %v2607 = vshrl.u32 %v2606, 7
      %v2608 = vsub.s32 %v1573, %v2607
      %v2609 = vrot.slane %v1190, %v2608
      %v2610 = vsel %vm1578, %v2609, %v2605
      %v2611 = vlaneseq
      %v2612 = vshrl.u32 %v2611, 7
      %v2613 = vsub.s32 %v1580, %v2612
      %v2614 = vrot.slane %v1193, %v2613
      %v2615 = vsel %vm1585, %v2614, %v2610
      %v2616 = vlaneseq
      %v2617 = vshrl.u32 %v2616, 7
      %v2618 = vsub.s32 %v1587, %v2617
      %v2619 = vrot.slane %v1196, %v2618
      %v2620 = vsel %vm1592, %v2619, %v2615
      %v2621 = vlaneseq
      %v2622 = vshrl.u32 %v2621, 7
      %v2623 = vsub.s32 %v1594, %v2622
      %v2624 = vrot.slane %v1199, %v2623
      %v2625 = vsel %vm1599, %v2624, %v2620
      %v2626 = vlaneseq
      %v2627 = vshrl.u32 %v2626, 7
      %v2628 = vsub.s32 %v1601, %v2627
      %v2629 = vrot.slane %v1202, %v2628
      %v2630 = vsel %vm1606, %v2629, %v2625
      %v2631 = vlaneseq
      %v2632 = vshrl.u32 %v2631, 7
      %v2633 = vsub.s32 %v1554, %v2632
      %v2634 = vrot.slane %v1205, %v2633
      %v2635 = vlaneseq
      %v2636 = vshrl.u32 %v2635, 7
      %v2637 = vsub.s32 %v1559, %v2636
      %v2638 = vrot.slane %v1208, %v2637
      %v2639 = vsel %vm1564, %v2638, %v2634
      %v2640 = vlaneseq
      %v2641 = vshrl.u32 %v2640, 7
      %v2642 = vsub.s32 %v1566, %v2641
      %v2643 = vrot.slane %v1211, %v2642
      %v2644 = vsel %vm1571, %v2643, %v2639
      %v2645 = vlaneseq
      %v2646 = vshrl.u32 %v2645, 7
      %v2647 = vsub.s32 %v1573, %v2646
      %v2648 = vrot.slane %v1214, %v2647
      %v2649 = vsel %vm1578, %v2648, %v2644
      %v2650 = vlaneseq
      %v2651 = vshrl.u32 %v2650, 7
      %v2652 = vsub.s32 %v1580, %v2651
      %v2653 = vrot.slane %v1217, %v2652
      %v2654 = vsel %vm1585, %v2653, %v2649
      %v2655 = vlaneseq
      %v2656 = vshrl.u32 %v2655, 7
      %v2657 = vsub.s32 %v1587, %v2656
      %v2658 = vrot.slane %v1220, %v2657
      %v2659 = vsel %vm1592, %v2658, %v2654
      %v2660 = vlaneseq
      %v2661 = vshrl.u32 %v2660, 7
      %v2662 = vsub.s32 %v1594, %v2661
      %v2663 = vrot.slane %v1223, %v2662
      %v2664 = vsel %vm1599, %v2663, %v2659
      %v2665 = vlaneseq
      %v2666 = vshrl.u32 %v2665, 7
      %v2667 = vsub.s32 %v1601, %v2666
      %v2668 = vrot.slane %v1226, %v2667
      %v2669 = vsel %vm1606, %v2668, %v2664
      %v2670 = vlaneseq
      %v2671 = vshrl.u32 %v2670, 7
      %v2672 = vsub.s32 %v1554, %v2671
      %v2673 = vrot.slane %v1229, %v2672
      %v2674 = vlaneseq
      %v2675 = vshrl.u32 %v2674, 7
      %v2676 = vsub.s32 %v1559, %v2675
      %v2677 = vrot.slane %v1232, %v2676
      %v2678 = vsel %vm1564, %v2677, %v2673
      %v2679 = vlaneseq
      %v2680 = vshrl.u32 %v2679, 7
      %v2681 = vsub.s32 %v1566, %v2680
      %v2682 = vrot.slane %v1235, %v2681
      %v2683 = vsel %vm1571, %v2682, %v2678
      %v2684 = vlaneseq
      %v2685 = vshrl.u32 %v2684, 7
      %v2686 = vsub.s32 %v1573, %v2685
      %v2687 = vrot.slane %v1238, %v2686
      %v2688 = vsel %vm1578, %v2687, %v2683
      %v2689 = vlaneseq
      %v2690 = vshrl.u32 %v2689, 7
      %v2691 = vsub.s32 %v1580, %v2690
      %v2692 = vrot.slane %v1241, %v2691
      %v2693 = vsel %vm1585, %v2692, %v2688
      %v2694 = vlaneseq
      %v2695 = vshrl.u32 %v2694, 7
      %v2696 = vsub.s32 %v1587, %v2695
      %v2697 = vrot.slane %v1244, %v2696
      %v2698 = vsel %vm1592, %v2697, %v2693
      %v2699 = vlaneseq
      %v2700 = vshrl.u32 %v2699, 7
      %v2701 = vsub.s32 %v1594, %v2700
      %v2702 = vrot.slane %v1247, %v2701
      %v2703 = vsel %vm1599, %v2702, %v2698
      %v2704 = vlaneseq
      %v2705 = vshrl.u32 %v2704, 7
      %v2706 = vsub.s32 %v1601, %v2705
      %v2707 = vrot.slane %v1250, %v2706
      %v2708 = vsel %vm1606, %v2707, %v2703
      %v2709 = vlaneseq
      %v2710 = vshrl.u32 %v2709, 7
      %v2711 = vsub.s32 %v1554, %v2710
      %v2712 = vrot.slane %v1253, %v2711
      %v2713 = vlaneseq
      %v2714 = vshrl.u32 %v2713, 7
      %v2715 = vsub.s32 %v1559, %v2714
      %v2716 = vrot.slane %v1256, %v2715
      %v2717 = vsel %vm1564, %v2716, %v2712
      %v2718 = vlaneseq
      %v2719 = vshrl.u32 %v2718, 7
      %v2720 = vsub.s32 %v1566, %v2719
      %v2721 = vrot.slane %v1259, %v2720
      %v2722 = vsel %vm1571, %v2721, %v2717
      %v2723 = vlaneseq
      %v2724 = vshrl.u32 %v2723, 7
      %v2725 = vsub.s32 %v1573, %v2724
      %v2726 = vrot.slane %v1262, %v2725
      %v2727 = vsel %vm1578, %v2726, %v2722
      %v2728 = vlaneseq
      %v2729 = vshrl.u32 %v2728, 7
      %v2730 = vsub.s32 %v1580, %v2729
      %v2731 = vrot.slane %v1265, %v2730
      %v2732 = vsel %vm1585, %v2731, %v2727
      %v2733 = vlaneseq
      %v2734 = vshrl.u32 %v2733, 7
      %v2735 = vsub.s32 %v1587, %v2734
      %v2736 = vrot.slane %v1268, %v2735
      %v2737 = vsel %vm1592, %v2736, %v2732
      %v2738 = vlaneseq
      %v2739 = vshrl.u32 %v2738, 7
      %v2740 = vsub.s32 %v1594, %v2739
      %v2741 = vrot.slane %v1271, %v2740
      %v2742 = vsel %vm1599, %v2741, %v2737
      %v2743 = vlaneseq
      %v2744 = vshrl.u32 %v2743, 7
      %v2745 = vsub.s32 %v1601, %v2744
      %v2746 = vrot.slane %v1274, %v2745
      %v2747 = vsel %vm1606, %v2746, %v2742
      %v2748 = vlaneseq
      %v2749 = vshrl.u32 %v2748, 7
      %v2750 = vsub.s32 %v1554, %v2749
      %v2751 = vrot.slane %v1277, %v2750
      %v2752 = vlaneseq
      %v2753 = vshrl.u32 %v2752, 7
      %v2754 = vsub.s32 %v1559, %v2753
      %v2755 = vrot.slane %v1280, %v2754
      %v2756 = vsel %vm1564, %v2755, %v2751
      %v2757 = vlaneseq
      %v2758 = vshrl.u32 %v2757, 7
      %v2759 = vsub.s32 %v1566, %v2758
      %v2760 = vrot.slane %v1283, %v2759
      %v2761 = vsel %vm1571, %v2760, %v2756
      %v2762 = vlaneseq
      %v2763 = vshrl.u32 %v2762, 7
      %v2764 = vsub.s32 %v1573, %v2763
      %v2765 = vrot.slane %v1286, %v2764
      %v2766 = vsel %vm1578, %v2765, %v2761
      %v2767 = vlaneseq
      %v2768 = vshrl.u32 %v2767, 7
      %v2769 = vsub.s32 %v1580, %v2768
      %v2770 = vrot.slane %v1289, %v2769
      %v2771 = vsel %vm1585, %v2770, %v2766
      %v2772 = vlaneseq
      %v2773 = vshrl.u32 %v2772, 7
      %v2774 = vsub.s32 %v1587, %v2773
      %v2775 = vrot.slane %v1292, %v2774
      %v2776 = vsel %vm1592, %v2775, %v2771
      %v2777 = vlaneseq
      %v2778 = vshrl.u32 %v2777, 7
      %v2779 = vsub.s32 %v1594, %v2778
      %v2780 = vrot.slane %v1295, %v2779
      %v2781 = vsel %vm1599, %v2780, %v2776
      %v2782 = vlaneseq
      %v2783 = vshrl.u32 %v2782, 7
      %v2784 = vsub.s32 %v1601, %v2783
      %v2785 = vrot.slane %v1298, %v2784
      %v2786 = vsel %vm1606, %v2785, %v2781
      %v2787 = vlaneseq
      %v2788 = vshrl.u32 %v2787, 7
      %v2789 = vsub.s32 %v1554, %v2788
      %v2790 = vrot.slane %v1301, %v2789
      %v2791 = vlaneseq
      %v2792 = vshrl.u32 %v2791, 7
      %v2793 = vsub.s32 %v1559, %v2792
      %v2794 = vrot.slane %v1304, %v2793
      %v2795 = vsel %vm1564, %v2794, %v2790
      %v2796 = vlaneseq
      %v2797 = vshrl.u32 %v2796, 7
      %v2798 = vsub.s32 %v1566, %v2797
      %v2799 = vrot.slane %v1307, %v2798
      %v2800 = vsel %vm1571, %v2799, %v2795
      %v2801 = vlaneseq
      %v2802 = vshrl.u32 %v2801, 7
      %v2803 = vsub.s32 %v1573, %v2802
      %v2804 = vrot.slane %v1310, %v2803
      %v2805 = vsel %vm1578, %v2804, %v2800
      %v2806 = vlaneseq
      %v2807 = vshrl.u32 %v2806, 7
      %v2808 = vsub.s32 %v1580, %v2807
      %v2809 = vrot.slane %v1313, %v2808
      %v2810 = vsel %vm1585, %v2809, %v2805
      %v2811 = vlaneseq
      %v2812 = vshrl.u32 %v2811, 7
      %v2813 = vsub.s32 %v1587, %v2812
      %v2814 = vrot.slane %v1316, %v2813
      %v2815 = vsel %vm1592, %v2814, %v2810
      %v2816 = vlaneseq
      %v2817 = vshrl.u32 %v2816, 7
      %v2818 = vsub.s32 %v1594, %v2817
      %v2819 = vrot.slane %v1319, %v2818
      %v2820 = vsel %vm1599, %v2819, %v2815
      %v2821 = vlaneseq
      %v2822 = vshrl.u32 %v2821, 7
      %v2823 = vsub.s32 %v1601, %v2822
      %v2824 = vrot.slane %v1322, %v2823
      %v2825 = vsel %vm1606, %v2824, %v2820
      %v2826 = vlaneseq
      %v2827 = vshrl.u32 %v2826, 7
      %v2828 = vsub.s32 %v1554, %v2827
      %v2829 = vrot.slane %v1325, %v2828
      %v2830 = vlaneseq
      %v2831 = vshrl.u32 %v2830, 7
      %v2832 = vsub.s32 %v1559, %v2831
      %v2833 = vrot.slane %v1328, %v2832
      %v2834 = vsel %vm1564, %v2833, %v2829
      %v2835 = vlaneseq
      %v2836 = vshrl.u32 %v2835, 7
      %v2837 = vsub.s32 %v1566, %v2836
      %v2838 = vrot.slane %v1331, %v2837
      %v2839 = vsel %vm1571, %v2838, %v2834
      %v2840 = vlaneseq
      %v2841 = vshrl.u32 %v2840, 7
      %v2842 = vsub.s32 %v1573, %v2841
      %v2843 = vrot.slane %v1334, %v2842
      %v2844 = vsel %vm1578, %v2843, %v2839
      %v2845 = vlaneseq
      %v2846 = vshrl.u32 %v2845, 7
      %v2847 = vsub.s32 %v1580, %v2846
      %v2848 = vrot.slane %v1337, %v2847
      %v2849 = vsel %vm1585, %v2848, %v2844
      %v2850 = vlaneseq
      %v2851 = vshrl.u32 %v2850, 7
      %v2852 = vsub.s32 %v1587, %v2851
      %v2853 = vrot.slane %v1340, %v2852
      %v2854 = vsel %vm1592, %v2853, %v2849
      %v2855 = vlaneseq
      %v2856 = vshrl.u32 %v2855, 7
      %v2857 = vsub.s32 %v1594, %v2856
      %v2858 = vrot.slane %v1343, %v2857
      %v2859 = vsel %vm1599, %v2858, %v2854
      %v2860 = vlaneseq
      %v2861 = vshrl.u32 %v2860, 7
      %v2862 = vsub.s32 %v1601, %v2861
      %v2863 = vrot.slane %v1346, %v2862
      %v2864 = vsel %vm1606, %v2863, %v2859
      %v2865 = vsel %vm1881, %v2630, %v2591
      %v2866 = vsel %vm1883, %v2669, %v2865
      %v2867 = vsel %vm1885, %v2708, %v2866
      %v2868 = vsel %vm1887, %v2747, %v2867
      %v2869 = vsel %vm1889, %v2786, %v2868
      %v2870 = vsel %vm1891, %v2825, %v2869
      %v2871 = vsel %vm1893, %v2864, %v2870
      %2873 = vxpose.xlu0.b32.start [1/16] %v2871, 128
      %2874 = vxpose.xlu0.b32.cont [2/16] 0.0, 128
      %2875 = vxpose.xlu0.b32.cont [3/16] 0.0, 128
      %2876 = vxpose.xlu0.b32.cont [4/16] 0.0, 128
      %2877 = vxpose.xlu0.b32.cont [5/16] 0.0, 128
      %2878 = vxpose.xlu0.b32.cont [6/16] 0.0, 128
      %2879 = vxpose.xlu0.b32.cont [7/16] 0.0, 128
      %2880 = vxpose.xlu0.b32.cont [8/16] 0.0, 128
      %2881 = vxpose.xlu0.b32.cont [9/16] 0.0, 128
      %2882 = vxpose.xlu0.b32.cont [10/16] 0.0, 128
      %2883 = vxpose.xlu0.b32.cont [11/16] 0.0, 128
      %2884 = vxpose.xlu0.b32.cont [12/16] 0.0, 128
      %2885 = vxpose.xlu0.b32.cont [13/16] 0.0, 128
      %2886 = vxpose.xlu0.b32.cont [14/16] 0.0, 128
      %2887 = vxpose.xlu0.b32.cont [15/16] 0.0, 128
      %2888 = vxpose.xlu0.b32.end [16/16] 0.0, 128
      %v2889 = vpop.trf.xlu0
      %v2890 = vpop.trf.xlu0
      %v2891 = vpop.trf.xlu0
      %v2892 = vpop.trf.xlu0
      %v2893 = vpop.trf.xlu0
      %v2894 = vpop.trf.xlu0
      %v2895 = vpop.trf.xlu0
      %v2896 = vpop.trf.xlu0
      %v2897 = vpop.trf.xlu0
      %v2898 = vpop.trf.xlu0
      %v2899 = vpop.trf.xlu0
      %v2900 = vpop.trf.xlu0
      %v2901 = vpop.trf.xlu0
      %v2902 = vpop.trf.xlu0
      %v2903 = vpop.trf.xlu0
      %v2904 = vpop.trf.xlu0
      %vm2905 = vcmask 64512
      %v2906 = vsel %vm2905, %v2473, 0.0
      %2907 = vadd.xlane.f32.xlu0 %v2906
      %v2908 = vpop.xlane.xlu0 %2907
      %v2909 = vsel %vm2905, %v2474, 0.0
      %2910 = vadd.xlane.f32.xlu0 %v2909
      %v2911 = vpop.xlane.xlu0 %2910
      %v2912 = vsel %vm2905, %v2475, 0.0
      %2913 = vadd.xlane.f32.xlu0 %v2912
      %v2914 = vpop.xlane.xlu0 %2913
      %v2915 = vsel %vm2905, %v2476, 0.0
      %2916 = vadd.xlane.f32.xlu0 %v2915
      %v2917 = vpop.xlane.xlu0 %2916
      %v2918 = vsel %vm2905, %v2477, 0.0
      %2919 = vadd.xlane.f32.xlu0 %v2918
      %v2920 = vpop.xlane.xlu0 %2919
      %v2921 = vsel %vm2905, %v2478, 0.0
      %2922 = vadd.xlane.f32.xlu0 %v2921
      %v2923 = vpop.xlane.xlu0 %2922
      %v2924 = vsel %vm2905, %v2479, 0.0
      %2925 = vadd.xlane.f32.xlu0 %v2924
      %v2926 = vpop.xlane.xlu0 %2925
      %v2927 = vsel %vm2905, %v2480, 0.0
      %2928 = vadd.xlane.f32.xlu0 %v2927
      %v2929 = vpop.xlane.xlu0 %2928
      %v2930 = vsel %vm2905, %v2889, 0.0
      %2931 = vadd.xlane.f32.xlu0 %v2930
      %v2932 = vpop.xlane.xlu0 %2931
      %v2933 = vsel %vm2905, %v2890, 0.0
      %2934 = vadd.xlane.f32.xlu0 %v2933
      %v2935 = vpop.xlane.xlu0 %2934
      %v2936 = vsel %vm2905, %v2891, 0.0
      %2937 = vadd.xlane.f32.xlu0 %v2936
      %v2938 = vpop.xlane.xlu0 %2937
      %v2939 = vsel %vm2905, %v2892, 0.0
      %2940 = vadd.xlane.f32.xlu0 %v2939
      %v2941 = vpop.xlane.xlu0 %2940
      %v2942 = vsel %vm2905, %v2893, 0.0
      %2943 = vadd.xlane.f32.xlu0 %v2942
      %v2944 = vpop.xlane.xlu0 %2943
      %v2945 = vsel %vm2905, %v2894, 0.0
      %2946 = vadd.xlane.f32.xlu0 %v2945
      %v2947 = vpop.xlane.xlu0 %2946
      %v2948 = vsel %vm2905, %v2895, 0.0
      %2949 = vadd.xlane.f32.xlu0 %v2948
      %v2950 = vpop.xlane.xlu0 %2949
      %v2951 = vsel %vm2905, %v2896, 0.0
      %2952 = vadd.xlane.f32.xlu0 %v2951
      %v2953 = vpop.xlane.xlu0 %2952
      %v2954 = vrcp.pop 8.0
      %v2955 = vmul.f32 %v2908, %v2954
      %v2956 = vmul.f32 %v2911, %v2954
      %v2957 = vmul.f32 %v2914, %v2954
      %v2958 = vmul.f32 %v2917, %v2954
      %v2959 = vmul.f32 %v2920, %v2954
      %v2960 = vmul.f32 %v2923, %v2954
      %v2961 = vmul.f32 %v2926, %v2954
      %v2962 = vmul.f32 %v2929, %v2954
      %v2963 = vmul.f32 %v2932, %v2954
      %v2964 = vmul.f32 %v2935, %v2954
      %v2965 = vmul.f32 %v2938, %v2954
      %v2966 = vmul.f32 %v2941, %v2954
      %v2967 = vmul.f32 %v2944, %v2954
      %v2968 = vmul.f32 %v2947, %v2954
      %v2969 = vmul.f32 %v2950, %v2954
      %v2970 = vmul.f32 %v2953, %v2954
      %v2971 = vsub.f32 %v2473, %v2955
      %v2972 = vsub.f32 %v2474, %v2956
      %v2973 = vsub.f32 %v2475, %v2957
      %v2974 = vsub.f32 %v2476, %v2958
      %v2975 = vsub.f32 %v2477, %v2959
      %v2976 = vsub.f32 %v2478, %v2960
      %v2977 = vsub.f32 %v2479, %v2961
      %v2978 = vsub.f32 %v2480, %v2962
      %v2979 = vsub.f32 %v2889, %v2963
      %v2980 = vsub.f32 %v2890, %v2964
      %v2981 = vsub.f32 %v2891, %v2965
      %v2982 = vsub.f32 %v2892, %v2966
      %v2983 = vsub.f32 %v2893, %v2967
      %v2984 = vsub.f32 %v2894, %v2968
      %v2985 = vsub.f32 %v2895, %v2969
      %v2986 = vsub.f32 %v2896, %v2970
      %v2987 = vmul.f32 %v2971, %v2971
      %v2988 = vmul.f32 %v2972, %v2972
      %v2989 = vmul.f32 %v2973, %v2973
      %v2990 = vmul.f32 %v2974, %v2974
      %v2991 = vmul.f32 %v2975, %v2975
      %v2992 = vmul.f32 %v2976, %v2976
      %v2993 = vmul.f32 %v2977, %v2977
      %v2994 = vmul.f32 %v2978, %v2978
      %v2995 = vmul.f32 %v2979, %v2979
      %v2996 = vmul.f32 %v2980, %v2980
      %v2997 = vmul.f32 %v2981, %v2981
      %v2998 = vmul.f32 %v2982, %v2982
      %v2999 = vmul.f32 %v2983, %v2983
      %v3000 = vmul.f32 %v2984, %v2984
      %v3001 = vmul.f32 %v2985, %v2985
      %v3002 = vmul.f32 %v2986, %v2986
      %v3003 = vsel %vm2905, %v2987, 0.0
      %3004 = vadd.xlane.f32.xlu0 %v3003
      %v3005 = vpop.xlane.xlu0 %3004
      %v3006 = vsel %vm2905, %v2988, 0.0
      %3007 = vadd.xlane.f32.xlu0 %v3006
      %v3008 = vpop.xlane.xlu0 %3007
      %v3009 = vsel %vm2905, %v2989, 0.0
      %3010 = vadd.xlane.f32.xlu0 %v3009
      %v3011 = vpop.xlane.xlu0 %3010
      %v3012 = vsel %vm2905, %v2990, 0.0
      %3013 = vadd.xlane.f32.xlu0 %v3012
      %v3014 = vpop.xlane.xlu0 %3013
      %v3015 = vsel %vm2905, %v2991, 0.0
      %3016 = vadd.xlane.f32.xlu0 %v3015
      %v3017 = vpop.xlane.xlu0 %3016
      %v3018 = vsel %vm2905, %v2992, 0.0
      %3019 = vadd.xlane.f32.xlu0 %v3018
      %v3020 = vpop.xlane.xlu0 %3019
      %v3021 = vsel %vm2905, %v2993, 0.0
      %3022 = vadd.xlane.f32.xlu0 %v3021
      %v3023 = vpop.xlane.xlu0 %3022
      %v3024 = vsel %vm2905, %v2994, 0.0
      %3025 = vadd.xlane.f32.xlu0 %v3024
      %v3026 = vpop.xlane.xlu0 %3025
      %v3027 = vsel %vm2905, %v2995, 0.0
      %3028 = vadd.xlane.f32.xlu0 %v3027
      %v3029 = vpop.xlane.xlu0 %3028
      %v3030 = vsel %vm2905, %v2996, 0.0
      %3031 = vadd.xlane.f32.xlu0 %v3030
      %v3032 = vpop.xlane.xlu0 %3031
      %v3033 = vsel %vm2905, %v2997, 0.0
      %3034 = vadd.xlane.f32.xlu0 %v3033
      %v3035 = vpop.xlane.xlu0 %3034
      %v3036 = vsel %vm2905, %v2998, 0.0
      %3037 = vadd.xlane.f32.xlu0 %v3036
      %v3038 = vpop.xlane.xlu0 %3037
      %v3039 = vsel %vm2905, %v2999, 0.0
      %3040 = vadd.xlane.f32.xlu0 %v3039
      %v3041 = vpop.xlane.xlu0 %3040
      %v3042 = vsel %vm2905, %v3000, 0.0
      %3043 = vadd.xlane.f32.xlu0 %v3042
      %v3044 = vpop.xlane.xlu0 %3043
      %v3045 = vsel %vm2905, %v3001, 0.0
      %3046 = vadd.xlane.f32.xlu0 %v3045
      %v3047 = vpop.xlane.xlu0 %3046
      %v3048 = vsel %vm2905, %v3002, 0.0
      %3049 = vadd.xlane.f32.xlu0 %v3048
      %v3050 = vpop.xlane.xlu0 %3049
      %v3051 = vmul.f32 %v3005, %v2954
      %v3052 = vmul.f32 %v3008, %v2954
      %v3053 = vmul.f32 %v3011, %v2954
      %v3054 = vmul.f32 %v3014, %v2954
      %v3055 = vmul.f32 %v3017, %v2954
      %v3056 = vmul.f32 %v3020, %v2954
      %v3057 = vmul.f32 %v3023, %v2954
      %v3058 = vmul.f32 %v3026, %v2954
      %v3059 = vmul.f32 %v3029, %v2954
      %v3060 = vmul.f32 %v3032, %v2954
      %v3061 = vmul.f32 %v3035, %v2954
      %v3062 = vmul.f32 %v3038, %v2954
      %v3063 = vmul.f32 %v3041, %v2954
      %v3064 = vmul.f32 %v3044, %v2954
      %v3065 = vmul.f32 %v3047, %v2954
      %v3066 = vmul.f32 %v3050, %v2954
      %v3067 = vadd.f32 %v3051, 1e-05
      %v3068 = vadd.f32 %v3052, 1e-05
      %v3069 = vadd.f32 %v3053, 1e-05
      %v3070 = vadd.f32 %v3054, 1e-05
      %v3071 = vadd.f32 %v3055, 1e-05
      %v3072 = vadd.f32 %v3056, 1e-05
      %v3073 = vadd.f32 %v3057, 1e-05
      %v3074 = vadd.f32 %v3058, 1e-05
      %v3075 = vadd.f32 %v3059, 1e-05
      %v3076 = vadd.f32 %v3060, 1e-05
      %v3077 = vadd.f32 %v3061, 1e-05
      %v3078 = vadd.f32 %v3062, 1e-05
      %v3079 = vadd.f32 %v3063, 1e-05
      %v3080 = vadd.f32 %v3064, 1e-05
      %v3081 = vadd.f32 %v3065, 1e-05
      %v3082 = vadd.f32 %v3066, 1e-05
      %v3083 = vrsqrt.pop %v3067
      %v3084 = vrsqrt.pop %v3068
      %v3085 = vrsqrt.pop %v3069
      %v3086 = vrsqrt.pop %v3070
      %v3087 = vrsqrt.pop %v3071
      %v3088 = vrsqrt.pop %v3072
      %v3089 = vrsqrt.pop %v3073
      %v3090 = vrsqrt.pop %v3074
      %v3091 = vrsqrt.pop %v3075
      %v3092 = vrsqrt.pop %v3076
      %v3093 = vrsqrt.pop %v3077
      %v3094 = vrsqrt.pop %v3078
      %v3095 = vrsqrt.pop %v3079
      %v3096 = vrsqrt.pop %v3080
      %v3097 = vrsqrt.pop %v3081
      %v3098 = vrsqrt.pop %v3082
      %v3099 = vmul.f32 %v2971, %v3083
      %v3100 = vmul.f32 %v2972, %v3084
      %v3101 = vmul.f32 %v2973, %v3085
      %v3102 = vmul.f32 %v2974, %v3086
      %v3103 = vmul.f32 %v2975, %v3087
      %v3104 = vmul.f32 %v2976, %v3088
      %v3105 = vmul.f32 %v2977, %v3089
      %v3106 = vmul.f32 %v2978, %v3090
      %v3107 = vmul.f32 %v2979, %v3091
      %v3108 = vmul.f32 %v2980, %v3092
      %v3109 = vmul.f32 %v2981, %v3093
      %v3110 = vmul.f32 %v2982, %v3094
      %v3111 = vmul.f32 %v2983, %v3095
      %v3112 = vmul.f32 %v2984, %v3096
      %v3113 = vmul.f32 %v2985, %v3097
      %v3114 = vmul.f32 %v2986, %v3098
      %v3115 = vlaneseq
      %v3116 = vshrl.u32 %v3115, 7
      %v3117 = vsub.s32 0, %v3116
      %v3118 = vrot.slane %v1476, %v3117
      %v3119 = vmul.f32 %v3099, %v3118
      %v3120 = vmul.f32 %v3100, %v3118
      %v3121 = vmul.f32 %v3101, %v3118
      %v3122 = vmul.f32 %v3102, %v3118
      %v3123 = vmul.f32 %v3103, %v3118
      %v3124 = vmul.f32 %v3104, %v3118
      %v3125 = vmul.f32 %v3105, %v3118
      %v3126 = vmul.f32 %v3106, %v3118
      %v3127 = vmul.f32 %v3107, %v3118
      %v3128 = vmul.f32 %v3108, %v3118
      %v3129 = vmul.f32 %v3109, %v3118
      %v3130 = vmul.f32 %v3110, %v3118
      %v3131 = vmul.f32 %v3111, %v3118
      %v3132 = vmul.f32 %v3112, %v3118
      %v3133 = vmul.f32 %v3113, %v3118
      %v3134 = vmul.f32 %v3114, %v3118
      %v3135 = vlaneseq
      %v3136 = vshrl.u32 %v3135, 7
      %v3137 = vsub.s32 1, %v3136
      %v3138 = vrot.slane %v1476, %v3137
      %v3139 = vadd.f32 %v3119, %v3138
      %v3140 = vadd.f32 %v3120, %v3138
      %v3141 = vadd.f32 %v3121, %v3138
      %v3142 = vadd.f32 %v3122, %v3138
      %v3143 = vadd.f32 %v3123, %v3138
      %v3144 = vadd.f32 %v3124, %v3138
      %v3145 = vadd.f32 %v3125, %v3138
      %v3146 = vadd.f32 %v3126, %v3138
      %v3147 = vadd.f32 %v3127, %v3138
      %v3148 = vadd.f32 %v3128, %v3138
      %v3149 = vadd.f32 %v3129, %v3138
      %v3150 = vadd.f32 %v3130, %v3138
      %v3151 = vadd.f32 %v3131, %v3138
      %v3152 = vadd.f32 %v3132, %v3138
      %v3153 = vadd.f32 %v3133, %v3138
      %v3154 = vadd.f32 %v3134, %v3138
      %v3155 = vld [vmem:[%s5] sm:$0xff]
      %v3156 = vld [vmem:[%s6] sm:$0x1]
      %v3157 = vld [vmem:[%s7] sm:$0xff]
      %v3159 = vlaneseq
      %v3160 = vshrl.u32 %v3159, 7
      %v3161 = vsub.s32 0, %v3160
      %v3162 = vrot.slane %v3156, %v3161
      %v3165 = vsel %vm2905, %v3139, 0
      %v3168 = vsel %vm2905, %v3140, 0
      %v3171 = vsel %vm2905, %v3141, 0
      %v3174 = vsel %vm2905, %v3142, 0
      %v3177 = vsel %vm2905, %v3143, 0
      %v3180 = vsel %vm2905, %v3144, 0
      %v3183 = vsel %vm2905, %v3145, 0
      %v3186 = vsel %vm2905, %v3146, 0
      %v3189 = vsel %vm2905, %v3147, 0
      %v3192 = vsel %vm2905, %v3148, 0
      %v3195 = vsel %vm2905, %v3149, 0
      %v3198 = vsel %vm2905, %v3150, 0
      %v3201 = vsel %vm2905, %v3151, 0
      %v3204 = vsel %vm2905, %v3152, 0
      %v3207 = vsel %vm2905, %v3153, 0
      %v3210 = vsel %vm2905, %v3154, 0
      %3212 = vmatprep.subr.mxu0 0.0
      %3213 = vmatpush1.msra.mxu0 0.0
      %3214 = vmatprep.subr.mxu0 0.0
      %3215 = vmatpush1.msra.mxu0 0.0
      %3216 = vmatprep.subr.mxu0 0.0
      %3217 = vmatpush1.msra.mxu0 0.0
      %3218 = vmatprep.subr.mxu0 0.0
      %3219 = vmatpush1.msra.mxu0 0.0
      %3220 = vmatprep.subr.mxu0 0.0
      %3221 = vmatpush1.msra.mxu0 0.0
      %3222 = vmatprep.subr.mxu0 0.0
      %3223 = vmatpush1.msra.mxu0 0.0
      %3224 = vmatprep.subr.mxu0 0.0
      %3225 = vmatpush1.msra.mxu0 0.0
      %3226 = vmatprep.subr.mxu0 0.0
      %3227 = vmatpush1.msra.mxu0 0.0
      %3228 = vmatprep.subr.mxu0 0.0
      %3229 = vmatpush1.msra.mxu0 0.0
      %3230 = vmatprep.subr.mxu0 0.0
      %3231 = vmatpush1.msra.mxu0 0.0
      %3232 = vmatprep.subr.mxu0 0.0
      %3233 = vmatpush1.msra.mxu0 0.0
      %3234 = vmatprep.subr.mxu0 0.0
      %3235 = vmatpush1.msra.mxu0 0.0
      %3236 = vmatprep.subr.mxu0 0.0
      %3237 = vmatpush1.msra.mxu0 0.0
      %3238 = vmatprep.subr.mxu0 0.0
      %3239 = vmatpush1.msra.mxu0 0.0
      %3240 = vmatprep.subr.mxu0 0.0
      %3241 = vmatpush1.msra.mxu0 0.0
      %3242 = vmatprep.subr.mxu0 0.0
      %3243 = vmatpush1.msra.mxu0 %v3155
      %3244 = vmatprep.subr.mxu0 0.0
      %3245 = vmatpush2.msra.mxu0 0.0
      %3246 = vmatprep.subr.mxu0 0.0
      %3247 = vmatpush2.msra.mxu0 0.0
      %3248 = vmatprep.subr.mxu0 0.0
      %3249 = vmatpush2.msra.mxu0 0.0
      %3250 = vmatprep.subr.mxu0 0.0
      %3251 = vmatpush2.msra.mxu0 0.0
      %3252 = vmatprep.subr.mxu0 0.0
      %3253 = vmatpush2.msra.mxu0 0.0
      %3254 = vmatprep.subr.mxu0 0.0
      %3255 = vmatpush2.msra.mxu0 0.0
      %3256 = vmatprep.subr.mxu0 0.0
      %3257 = vmatpush2.msra.mxu0 0.0
      %3258 = vmatprep.subr.mxu0 0.0
      %3259 = vmatpush2.msra.mxu0 0.0
      %3260 = vmatprep.subr.mxu0 0.0
      %3261 = vmatpush2.msra.mxu0 0.0
      %3262 = vmatprep.subr.mxu0 0.0
      %3263 = vmatpush2.msra.mxu0 0.0
      %3264 = vmatprep.subr.mxu0 0.0
      %3265 = vmatpush2.msra.mxu0 0.0
      %3266 = vmatprep.subr.mxu0 0.0
      %3267 = vmatpush2.msra.mxu0 0.0
      %3268 = vmatprep.subr.mxu0 0.0
      %3269 = vmatpush2.msra.mxu0 0.0
      %3270 = vmatprep.subr.mxu0 0.0
      %3271 = vmatpush2.msra.mxu0 0.0
      %3272 = vmatprep.subr.mxu0 0.0
      %3273 = vmatpush2.msra.mxu0 0.0
      %3274 = vmatprep.subr.mxu0 0.0
      %3275 = vmatpush2.msra.mxu0 0.0
      %3276 = vmatprep.mubr.f32.mxu0 0.0
      %3277 = vmatmul.mubr.f32.gmra.mxu0 %v3165
      %v3278 = vpop.f32.mrf.mxu0
      %v3279 = vadd.f32 %v3162, %v3278
      %v3280 = vpop.f32.mrf.mxu0
      %3281 = vmatprep.mubr.f32.mxu0 0.0
      %3282 = vmatmul.mubr.f32.gmra.mxu0 %v3168
      %v3283 = vpop.f32.mrf.mxu0
      %v3284 = vadd.f32 %v3162, %v3283
      %v3285 = vpop.f32.mrf.mxu0
      %3286 = vmatprep.mubr.f32.mxu0 0.0
      %3287 = vmatmul.mubr.f32.gmra.mxu0 %v3171
      %v3288 = vpop.f32.mrf.mxu0
      %v3289 = vadd.f32 %v3162, %v3288
      %v3290 = vpop.f32.mrf.mxu0
      %3291 = vmatprep.mubr.f32.mxu0 0.0
      %3292 = vmatmul.mubr.f32.gmra.mxu0 %v3174
      %v3293 = vpop.f32.mrf.mxu0
      %v3294 = vadd.f32 %v3162, %v3293
      %v3295 = vpop.f32.mrf.mxu0
      %3296 = vmatprep.mubr.f32.mxu0 0.0
      %3297 = vmatmul.mubr.f32.gmra.mxu0 %v3177
      %v3298 = vpop.f32.mrf.mxu0
      %v3299 = vadd.f32 %v3162, %v3298
      %v3300 = vpop.f32.mrf.mxu0
      %3301 = vmatprep.mubr.f32.mxu0 0.0
      %3302 = vmatmul.mubr.f32.gmra.mxu0 %v3180
      %v3303 = vpop.f32.mrf.mxu0
      %v3304 = vadd.f32 %v3162, %v3303
      %v3305 = vpop.f32.mrf.mxu0
      %3306 = vmatprep.mubr.f32.mxu0 0.0
      %3307 = vmatmul.mubr.f32.gmra.mxu0 %v3183
      %v3308 = vpop.f32.mrf.mxu0
      %v3309 = vadd.f32 %v3162, %v3308
      %v3310 = vpop.f32.mrf.mxu0
      %3311 = vmatprep.mubr.f32.mxu0 0.0
      %3312 = vmatmul.mubr.f32.gmra.mxu0 %v3186
      %v3313 = vpop.f32.mrf.mxu0
      %v3314 = vadd.f32 %v3162, %v3313
      %v3315 = vpop.f32.mrf.mxu0
      %3316 = vmatprep.mubr.f32.mxu0 0.0
      %3317 = vmatmul.mubr.f32.gmra.mxu0 %v3189
      %v3318 = vpop.f32.mrf.mxu0
      %v3319 = vadd.f32 %v3162, %v3318
      %v3320 = vpop.f32.mrf.mxu0
      %3321 = vmatprep.mubr.f32.mxu0 0.0
      %3322 = vmatmul.mubr.f32.gmra.mxu0 %v3192
      %v3323 = vpop.f32.mrf.mxu0
      %v3324 = vadd.f32 %v3162, %v3323
      %v3325 = vpop.f32.mrf.mxu0
      %3326 = vmatprep.mubr.f32.mxu0 0.0
      %3327 = vmatmul.mubr.f32.gmra.mxu0 %v3195
      %v3328 = vpop.f32.mrf.mxu0
      %v3329 = vadd.f32 %v3162, %v3328
      %v3330 = vpop.f32.mrf.mxu0
      %3331 = vmatprep.mubr.f32.mxu0 0.0
      %3332 = vmatmul.mubr.f32.gmra.mxu0 %v3198
      %v3333 = vpop.f32.mrf.mxu0
      %v3334 = vadd.f32 %v3162, %v3333
      %v3335 = vpop.f32.mrf.mxu0
      %3336 = vmatprep.mubr.f32.mxu0 0.0
      %3337 = vmatmul.mubr.f32.gmra.mxu0 %v3201
      %v3338 = vpop.f32.mrf.mxu0
      %v3339 = vadd.f32 %v3162, %v3338
      %v3340 = vpop.f32.mrf.mxu0
      %3341 = vmatprep.mubr.f32.mxu0 0.0
      %3342 = vmatmul.mubr.f32.gmra.mxu0 %v3204
      %v3343 = vpop.f32.mrf.mxu0
      %v3344 = vadd.f32 %v3162, %v3343
      %v3345 = vpop.f32.mrf.mxu0
      %3346 = vmatprep.mubr.f32.mxu0 0.0
      %3347 = vmatmul.mubr.f32.gmra.mxu0 %v3207
      %v3348 = vpop.f32.mrf.mxu0
      %v3349 = vadd.f32 %v3162, %v3348
      %v3350 = vpop.f32.mrf.mxu0
      %3351 = vmatprep.mubr.f32.mxu0 0.0
      %3352 = vmatmul.mubr.f32.gmra.mxu0 %v3210
      %v3353 = vpop.f32.mrf.mxu0
      %v3354 = vadd.f32 %v3162, %v3353
      %v3355 = vpop.f32.mrf.mxu0
      %3356 = vdwg.mxu0
      %v3357 = vmul.f32 %v3279, %v3279
      %v3358 = vmul.f32 %v3284, %v3284
      %v3359 = vmul.f32 %v3289, %v3289
      %v3360 = vmul.f32 %v3294, %v3294
      %v3361 = vmul.f32 %v3299, %v3299
      %v3362 = vmul.f32 %v3304, %v3304
      %v3363 = vmul.f32 %v3309, %v3309
      %v3364 = vmul.f32 %v3314, %v3314
      %v3365 = vmul.f32 %v3319, %v3319
      %v3366 = vmul.f32 %v3324, %v3324
      %v3367 = vmul.f32 %v3329, %v3329
      %v3368 = vmul.f32 %v3334, %v3334
      %v3369 = vmul.f32 %v3339, %v3339
      %v3370 = vmul.f32 %v3344, %v3344
      %v3371 = vmul.f32 %v3349, %v3349
      %v3372 = vmul.f32 %v3354, %v3354
      %v3373 = vmul.f32 %v3279, %v3357
      %v3374 = vmul.f32 %v3284, %v3358
      %v3375 = vmul.f32 %v3289, %v3359
      %v3376 = vmul.f32 %v3294, %v3360
      %v3377 = vmul.f32 %v3299, %v3361
      %v3378 = vmul.f32 %v3304, %v3362
      %v3379 = vmul.f32 %v3309, %v3363
      %v3380 = vmul.f32 %v3314, %v3364
      %v3381 = vmul.f32 %v3319, %v3365
      %v3382 = vmul.f32 %v3324, %v3366
      %v3383 = vmul.f32 %v3329, %v3367
      %v3384 = vmul.f32 %v3334, %v3368
      %v3385 = vmul.f32 %v3339, %v3369
      %v3386 = vmul.f32 %v3344, %v3370
      %v3387 = vmul.f32 %v3349, %v3371
      %v3388 = vmul.f32 %v3354, %v3372
      %v3389 = vmul.f32 %v3373, 0.044715
      %v3390 = vmul.f32 %v3374, 0.044715
      %v3391 = vmul.f32 %v3375, 0.044715
      %v3392 = vmul.f32 %v3376, 0.044715
      %v3393 = vmul.f32 %v3377, 0.044715
      %v3394 = vmul.f32 %v3378, 0.044715
      %v3395 = vmul.f32 %v3379, 0.044715
      %v3396 = vmul.f32 %v3380, 0.044715
      %v3397 = vmul.f32 %v3381, 0.044715
      %v3398 = vmul.f32 %v3382, 0.044715
      %v3399 = vmul.f32 %v3383, 0.044715
      %v3400 = vmul.f32 %v3384, 0.044715
      %v3401 = vmul.f32 %v3385, 0.044715
      %v3402 = vmul.f32 %v3386, 0.044715
      %v3403 = vmul.f32 %v3387, 0.044715
      %v3404 = vmul.f32 %v3388, 0.044715
      %v3405 = vadd.f32 %v3279, %v3389
      %v3406 = vadd.f32 %v3284, %v3390
      %v3407 = vadd.f32 %v3289, %v3391
      %v3408 = vadd.f32 %v3294, %v3392
      %v3409 = vadd.f32 %v3299, %v3393
      %v3410 = vadd.f32 %v3304, %v3394
      %v3411 = vadd.f32 %v3309, %v3395
      %v3412 = vadd.f32 %v3314, %v3396
      %v3413 = vadd.f32 %v3319, %v3397
      %v3414 = vadd.f32 %v3324, %v3398
      %v3415 = vadd.f32 %v3329, %v3399
      %v3416 = vadd.f32 %v3334, %v3400
      %v3417 = vadd.f32 %v3339, %v3401
      %v3418 = vadd.f32 %v3344, %v3402
      %v3419 = vadd.f32 %v3349, %v3403
      %v3420 = vadd.f32 %v3354, %v3404
      %v3421 = vmul.f32 %v3405, 0.7978846
      %v3422 = vmul.f32 %v3406, 0.7978846
      %v3423 = vmul.f32 %v3407, 0.7978846
      %v3424 = vmul.f32 %v3408, 0.7978846
      %v3425 = vmul.f32 %v3409, 0.7978846
      %v3426 = vmul.f32 %v3410, 0.7978846
      %v3427 = vmul.f32 %v3411, 0.7978846
      %v3428 = vmul.f32 %v3412, 0.7978846
      %v3429 = vmul.f32 %v3413, 0.7978846
      %v3430 = vmul.f32 %v3414, 0.7978846
      %v3431 = vmul.f32 %v3415, 0.7978846
      %v3432 = vmul.f32 %v3416, 0.7978846
      %v3433 = vmul.f32 %v3417, 0.7978846
      %v3434 = vmul.f32 %v3418, 0.7978846
      %v3435 = vmul.f32 %v3419, 0.7978846
      %v3436 = vmul.f32 %v3420, 0.7978846
      %v3437 = vtanh.pop %v3421
      %v3438 = vtanh.pop %v3422
      %v3439 = vtanh.pop %v3423
      %v3440 = vtanh.pop %v3424
      %v3441 = vtanh.pop %v3425
      %v3442 = vtanh.pop %v3426
      %v3443 = vtanh.pop %v3427
      %v3444 = vtanh.pop %v3428
      %v3445 = vtanh.pop %v3429
      %v3446 = vtanh.pop %v3430
      %v3447 = vtanh.pop %v3431
      %v3448 = vtanh.pop %v3432
      %v3449 = vtanh.pop %v3433
      %v3450 = vtanh.pop %v3434
      %v3451 = vtanh.pop %v3435
      %v3452 = vtanh.pop %v3436
      %v3453 = vadd.f32 %v3437, 1.0
      %v3454 = vadd.f32 %v3438, 1.0
      %v3455 = vadd.f32 %v3439, 1.0
      %v3456 = vadd.f32 %v3440, 1.0
      %v3457 = vadd.f32 %v3441, 1.0
      %v3458 = vadd.f32 %v3442, 1.0
      %v3459 = vadd.f32 %v3443, 1.0
      %v3460 = vadd.f32 %v3444, 1.0
      %v3461 = vadd.f32 %v3445, 1.0
      %v3462 = vadd.f32 %v3446, 1.0
      %v3463 = vadd.f32 %v3447, 1.0
      %v3464 = vadd.f32 %v3448, 1.0
      %v3465 = vadd.f32 %v3449, 1.0
      %v3466 = vadd.f32 %v3450, 1.0
      %v3467 = vadd.f32 %v3451, 1.0
      %v3468 = vadd.f32 %v3452, 1.0
      %v3469 = vmul.f32 %v3453, 0.5
      %v3470 = vmul.f32 %v3454, 0.5
      %v3471 = vmul.f32 %v3455, 0.5
      %v3472 = vmul.f32 %v3456, 0.5
      %v3473 = vmul.f32 %v3457, 0.5
      %v3474 = vmul.f32 %v3458, 0.5
      %v3475 = vmul.f32 %v3459, 0.5
      %v3476 = vmul.f32 %v3460, 0.5
      %v3477 = vmul.f32 %v3461, 0.5
      %v3478 = vmul.f32 %v3462, 0.5
      %v3479 = vmul.f32 %v3463, 0.5
      %v3480 = vmul.f32 %v3464, 0.5
      %v3481 = vmul.f32 %v3465, 0.5
      %v3482 = vmul.f32 %v3466, 0.5
      %v3483 = vmul.f32 %v3467, 0.5
      %v3484 = vmul.f32 %v3468, 0.5
      %v3485 = vmul.f32 %v3279, %v3469
      %v3486 = vmul.f32 %v3284, %v3470
      %v3487 = vmul.f32 %v3289, %v3471
      %v3488 = vmul.f32 %v3294, %v3472
      %v3489 = vmul.f32 %v3299, %v3473
      %v3490 = vmul.f32 %v3304, %v3474
      %v3491 = vmul.f32 %v3309, %v3475
      %v3492 = vmul.f32 %v3314, %v3476
      %v3493 = vmul.f32 %v3319, %v3477
      %v3494 = vmul.f32 %v3324, %v3478
      %v3495 = vmul.f32 %v3329, %v3479
      %v3496 = vmul.f32 %v3334, %v3480
      %v3497 = vmul.f32 %v3339, %v3481
      %v3498 = vmul.f32 %v3344, %v3482
      %v3499 = vmul.f32 %v3349, %v3483
      %v3500 = vmul.f32 %v3354, %v3484
      %v3501 = vlaneseq
      %v3502 = vshrl.u32 %v3501, 7
      %v3503 = vsub.s32 2, %v3502
      %v3504 = vrot.slane %v1476, %v3503
      %v3506 = vsel %vm2905, %v3485, 0
      %v3509 = vsel %vm2905, %v3486, 0
      %v3512 = vsel %vm2905, %v3487, 0
      %v3515 = vsel %vm2905, %v3488, 0
      %v3518 = vsel %vm2905, %v3489, 0
      %v3521 = vsel %vm2905, %v3490, 0
      %v3524 = vsel %vm2905, %v3491, 0
      %v3527 = vsel %vm2905, %v3492, 0
      %v3530 = vsel %vm2905, %v3493, 0
      %v3533 = vsel %vm2905, %v3494, 0
      %v3536 = vsel %vm2905, %v3495, 0
      %v3539 = vsel %vm2905, %v3496, 0
      %v3542 = vsel %vm2905, %v3497, 0
      %v3545 = vsel %vm2905, %v3498, 0
      %v3548 = vsel %vm2905, %v3499, 0
      %v3551 = vsel %vm2905, %v3500, 0
      %3553 = vmatprep.subr.mxu0 0.0
      %3554 = vmatpush1.msra.mxu0 0.0
      %3555 = vmatprep.subr.mxu0 0.0
      %3556 = vmatpush1.msra.mxu0 0.0
      %3557 = vmatprep.subr.mxu0 0.0
      %3558 = vmatpush1.msra.mxu0 0.0
      %3559 = vmatprep.subr.mxu0 0.0
      %3560 = vmatpush1.msra.mxu0 0.0
      %3561 = vmatprep.subr.mxu0 0.0
      %3562 = vmatpush1.msra.mxu0 0.0
      %3563 = vmatprep.subr.mxu0 0.0
      %3564 = vmatpush1.msra.mxu0 0.0
      %3565 = vmatprep.subr.mxu0 0.0
      %3566 = vmatpush1.msra.mxu0 0.0
      %3567 = vmatprep.subr.mxu0 0.0
      %3568 = vmatpush1.msra.mxu0 0.0
      %3569 = vmatprep.subr.mxu0 0.0
      %3570 = vmatpush1.msra.mxu0 0.0
      %3571 = vmatprep.subr.mxu0 0.0
      %3572 = vmatpush1.msra.mxu0 0.0
      %3573 = vmatprep.subr.mxu0 0.0
      %3574 = vmatpush1.msra.mxu0 0.0
      %3575 = vmatprep.subr.mxu0 0.0
      %3576 = vmatpush1.msra.mxu0 0.0
      %3577 = vmatprep.subr.mxu0 0.0
      %3578 = vmatpush1.msra.mxu0 0.0
      %3579 = vmatprep.subr.mxu0 0.0
      %3580 = vmatpush1.msra.mxu0 0.0
      %3581 = vmatprep.subr.mxu0 0.0
      %3582 = vmatpush1.msra.mxu0 0.0
      %3583 = vmatprep.subr.mxu0 0.0
      %3584 = vmatpush1.msra.mxu0 %v3157
      %3585 = vmatprep.subr.mxu0 0.0
      %3586 = vmatpush2.msra.mxu0 0.0
      %3587 = vmatprep.subr.mxu0 0.0
      %3588 = vmatpush2.msra.mxu0 0.0
      %3589 = vmatprep.subr.mxu0 0.0
      %3590 = vmatpush2.msra.mxu0 0.0
      %3591 = vmatprep.subr.mxu0 0.0
      %3592 = vmatpush2.msra.mxu0 0.0
      %3593 = vmatprep.subr.mxu0 0.0
      %3594 = vmatpush2.msra.mxu0 0.0
      %3595 = vmatprep.subr.mxu0 0.0
      %3596 = vmatpush2.msra.mxu0 0.0
      %3597 = vmatprep.subr.mxu0 0.0
      %3598 = vmatpush2.msra.mxu0 0.0
      %3599 = vmatprep.subr.mxu0 0.0
      %3600 = vmatpush2.msra.mxu0 0.0
      %3601 = vmatprep.subr.mxu0 0.0
      %3602 = vmatpush2.msra.mxu0 0.0
      %3603 = vmatprep.subr.mxu0 0.0
      %3604 = vmatpush2.msra.mxu0 0.0
      %3605 = vmatprep.subr.mxu0 0.0
      %3606 = vmatpush2.msra.mxu0 0.0
      %3607 = vmatprep.subr.mxu0 0.0
      %3608 = vmatpush2.msra.mxu0 0.0
      %3609 = vmatprep.subr.mxu0 0.0
      %3610 = vmatpush2.msra.mxu0 0.0
      %3611 = vmatprep.subr.mxu0 0.0
      %3612 = vmatpush2.msra.mxu0 0.0
      %3613 = vmatprep.subr.mxu0 0.0
      %3614 = vmatpush2.msra.mxu0 0.0
      %3615 = vmatprep.subr.mxu0 0.0
      %3616 = vmatpush2.msra.mxu0 0.0
      %3617 = vmatprep.mubr.f32.mxu0 0.0
      %3618 = vmatmul.mubr.f32.gmra.mxu0 %v3506
      %v3619 = vpop.f32.mrf.mxu0
      %v3620 = vadd.f32 %v3504, %v3619
      %v3621 = vpop.f32.mrf.mxu0
      %3622 = vmatprep.mubr.f32.mxu0 0.0
      %3623 = vmatmul.mubr.f32.gmra.mxu0 %v3509
      %v3624 = vpop.f32.mrf.mxu0
      %v3625 = vadd.f32 %v3504, %v3624
      %v3626 = vpop.f32.mrf.mxu0
      %3627 = vmatprep.mubr.f32.mxu0 0.0
      %3628 = vmatmul.mubr.f32.gmra.mxu0 %v3512
      %v3629 = vpop.f32.mrf.mxu0
      %v3630 = vadd.f32 %v3504, %v3629
      %v3631 = vpop.f32.mrf.mxu0
      %3632 = vmatprep.mubr.f32.mxu0 0.0
      %3633 = vmatmul.mubr.f32.gmra.mxu0 %v3515
      %v3634 = vpop.f32.mrf.mxu0
      %v3635 = vadd.f32 %v3504, %v3634
      %v3636 = vpop.f32.mrf.mxu0
      %3637 = vmatprep.mubr.f32.mxu0 0.0
      %3638 = vmatmul.mubr.f32.gmra.mxu0 %v3518
      %v3639 = vpop.f32.mrf.mxu0
      %v3640 = vadd.f32 %v3504, %v3639
      %v3641 = vpop.f32.mrf.mxu0
      %3642 = vmatprep.mubr.f32.mxu0 0.0
      %3643 = vmatmul.mubr.f32.gmra.mxu0 %v3521
      %v3644 = vpop.f32.mrf.mxu0
      %v3645 = vadd.f32 %v3504, %v3644
      %v3646 = vpop.f32.mrf.mxu0
      %3647 = vmatprep.mubr.f32.mxu0 0.0
      %3648 = vmatmul.mubr.f32.gmra.mxu0 %v3524
      %v3649 = vpop.f32.mrf.mxu0
      %v3650 = vadd.f32 %v3504, %v3649
      %v3651 = vpop.f32.mrf.mxu0
      %3652 = vmatprep.mubr.f32.mxu0 0.0
      %3653 = vmatmul.mubr.f32.gmra.mxu0 %v3527
      %v3654 = vpop.f32.mrf.mxu0
      %v3655 = vadd.f32 %v3504, %v3654
      %v3656 = vpop.f32.mrf.mxu0
      %3657 = vmatprep.mubr.f32.mxu0 0.0
      %3658 = vmatmul.mubr.f32.gmra.mxu0 %v3530
      %v3659 = vpop.f32.mrf.mxu0
      %v3660 = vadd.f32 %v3504, %v3659
      %v3661 = vpop.f32.mrf.mxu0
      %3662 = vmatprep.mubr.f32.mxu0 0.0
      %3663 = vmatmul.mubr.f32.gmra.mxu0 %v3533
      %v3664 = vpop.f32.mrf.mxu0
      %v3665 = vadd.f32 %v3504, %v3664
      %v3666 = vpop.f32.mrf.mxu0
      %3667 = vmatprep.mubr.f32.mxu0 0.0
      %3668 = vmatmul.mubr.f32.gmra.mxu0 %v3536
      %v3669 = vpop.f32.mrf.mxu0
      %v3670 = vadd.f32 %v3504, %v3669
      %v3671 = vpop.f32.mrf.mxu0
      %3672 = vmatprep.mubr.f32.mxu0 0.0
      %3673 = vmatmul.mubr.f32.gmra.mxu0 %v3539
      %v3674 = vpop.f32.mrf.mxu0
      %v3675 = vadd.f32 %v3504, %v3674
      %v3676 = vpop.f32.mrf.mxu0
      %3677 = vmatprep.mubr.f32.mxu0 0.0
      %3678 = vmatmul.mubr.f32.gmra.mxu0 %v3542
      %v3679 = vpop.f32.mrf.mxu0
      %v3680 = vadd.f32 %v3504, %v3679
      %v3681 = vpop.f32.mrf.mxu0
      %3682 = vmatprep.mubr.f32.mxu0 0.0
      %3683 = vmatmul.mubr.f32.gmra.mxu0 %v3545
      %v3684 = vpop.f32.mrf.mxu0
      %v3685 = vadd.f32 %v3504, %v3684
      %v3686 = vpop.f32.mrf.mxu0
      %3687 = vmatprep.mubr.f32.mxu0 0.0
      %3688 = vmatmul.mubr.f32.gmra.mxu0 %v3548
      %v3689 = vpop.f32.mrf.mxu0
      %v3690 = vadd.f32 %v3504, %v3689
      %v3691 = vpop.f32.mrf.mxu0
      %3692 = vmatprep.mubr.f32.mxu0 0.0
      %3693 = vmatmul.mubr.f32.gmra.mxu0 %v3551
      %v3694 = vpop.f32.mrf.mxu0
      %v3695 = vadd.f32 %v3504, %v3694
      %v3696 = vpop.f32.mrf.mxu0
      %3697 = vdwg.mxu0
      %v3698 = vadd.f32 %v2473, %v3620
      %v3699 = vadd.f32 %v2474, %v3625
      %v3700 = vadd.f32 %v2475, %v3630
      %v3701 = vadd.f32 %v2476, %v3635
      %v3702 = vadd.f32 %v2477, %v3640
      %v3703 = vadd.f32 %v2478, %v3645
      %v3704 = vadd.f32 %v2479, %v3650
      %v3705 = vadd.f32 %v2480, %v3655
      %v3706 = vadd.f32 %v2889, %v3660
      %v3707 = vadd.f32 %v2890, %v3665
      %v3708 = vadd.f32 %v2891, %v3670
      %v3709 = vadd.f32 %v2892, %v3675
      %v3710 = vadd.f32 %v2893, %v3680
      %v3711 = vadd.f32 %v2894, %v3685
      %v3712 = vadd.f32 %v2895, %v3690
      %v3713 = vadd.f32 %v2896, %v3695
      %3714 = vxpose.xlu0.b32.start [1/16] %v3698, 128
      %3715 = vxpose.xlu0.b32.cont [2/16] %v3699, 128
      %3716 = vxpose.xlu0.b32.cont [3/16] %v3700, 128
      %3717 = vxpose.xlu0.b32.cont [4/16] %v3701, 128
      %3718 = vxpose.xlu0.b32.cont [5/16] %v3702, 128
      %3719 = vxpose.xlu0.b32.cont [6/16] %v3703, 128
      %3720 = vxpose.xlu0.b32.cont [7/16] %v3704, 128
      %3721 = vxpose.xlu0.b32.cont [8/16] %v3705, 128
      %3722 = vxpose.xlu0.b32.cont [9/16] 0.0, 128
      %3723 = vxpose.xlu0.b32.cont [10/16] 0.0, 128
      %3724 = vxpose.xlu0.b32.cont [11/16] 0.0, 128
      %3725 = vxpose.xlu0.b32.cont [12/16] 0.0, 128
      %3726 = vxpose.xlu0.b32.cont [13/16] 0.0, 128
      %3727 = vxpose.xlu0.b32.cont [14/16] 0.0, 128
      %3728 = vxpose.xlu0.b32.cont [15/16] 0.0, 128
      %3729 = vxpose.xlu0.b32.end [16/16] 0.0, 128
      %v3730 = vpop.trf.xlu0
      %v3731 = vpop.trf.xlu0
      %v3732 = vpop.trf.xlu0
      %v3733 = vpop.trf.xlu0
      %v3734 = vpop.trf.xlu0
      %v3735 = vpop.trf.xlu0
      %v3736 = vpop.trf.xlu0
      %v3737 = vpop.trf.xlu0
      %v3738 = vpop.trf.xlu0
      %v3739 = vpop.trf.xlu0
      %v3740 = vpop.trf.xlu0
      %v3741 = vpop.trf.xlu0
      %v3742 = vpop.trf.xlu0
      %v3743 = vpop.trf.xlu0
      %v3744 = vpop.trf.xlu0
      %v3745 = vpop.trf.xlu0
      %3746 = vxpose.xlu0.b32.start [1/16] %v3706, 128
      %3747 = vxpose.xlu0.b32.cont [2/16] %v3707, 128
      %3748 = vxpose.xlu0.b32.cont [3/16] %v3708, 128
      %3749 = vxpose.xlu0.b32.cont [4/16] %v3709, 128
      %3750 = vxpose.xlu0.b32.cont [5/16] %v3710, 128
      %3751 = vxpose.xlu0.b32.cont [6/16] %v3711, 128
      %3752 = vxpose.xlu0.b32.cont [7/16] %v3712, 128
      %3753 = vxpose.xlu0.b32.cont [8/16] %v3713, 128
      %3754 = vxpose.xlu0.b32.cont [9/16] 0.0, 128
      %3755 = vxpose.xlu0.b32.cont [10/16] 0.0, 128
      %3756 = vxpose.xlu0.b32.cont [11/16] 0.0, 128
      %3757 = vxpose.xlu0.b32.cont [12/16] 0.0, 128
      %3758 = vxpose.xlu0.b32.cont [13/16] 0.0, 128
      %3759 = vxpose.xlu0.b32.cont [14/16] 0.0, 128
      %3760 = vxpose.xlu0.b32.cont [15/16] 0.0, 128
      %3761 = vxpose.xlu0.b32.end [16/16] 0.0, 128
      %v3762 = vpop.trf.xlu0
      %v3763 = vpop.trf.xlu0
      %v3764 = vpop.trf.xlu0
      %v3765 = vpop.trf.xlu0
      %v3766 = vpop.trf.xlu0
      %v3767 = vpop.trf.xlu0
      %v3768 = vpop.trf.xlu0
      %v3769 = vpop.trf.xlu0
      %v3770 = vpop.trf.xlu0
      %v3771 = vpop.trf.xlu0
      %v3772 = vpop.trf.xlu0
      %v3773 = vpop.trf.xlu0
      %v3774 = vpop.trf.xlu0
      %v3775 = vpop.trf.xlu0
      %v3776 = vpop.trf.xlu0
      %v3777 = vpop.trf.xlu0
      %v3778 = vsel %vm2278, %v3730, 0.0
      %3779 = vadd.xlane.f32.xlu0 %v3778
      %v3780 = vpop.xlane.xlu0 %3779
      %v3781 = vsel %vm2278, %v3762, 0.0
      %3782 = vadd.xlane.f32.xlu0 %v3781
      %v3783 = vpop.xlane.xlu0 %3782
      %v3784 = vrcp.pop 64.0
      %v3785 = vmul.f32 %v3780, %v3784
      %v3786 = vmul.f32 %v3783, %v3784
      %v3787 = vsub.f32 %v3730, %v3785
      %v3788 = vsub.f32 %v3762, %v3786
      %v3789 = vmul.f32 %v3787, %v3787
      %v3790 = vmul.f32 %v3788, %v3788
      %v3791 = vsel %vm2278, %v3789, 0.0
      %3792 = vadd.xlane.f32.xlu0 %v3791
      %v3793 = vpop.xlane.xlu0 %3792
      %v3794 = vsel %vm2278, %v3790, 0.0
      %3795 = vadd.xlane.f32.xlu0 %v3794
      %v3796 = vpop.xlane.xlu0 %3795
      %v3797 = vmul.f32 %v3793, %v3784
      %v3798 = vmul.f32 %v3796, %v3784
      %v3799 = vadd.f32 %v3797, 1e-05
      %v3800 = vadd.f32 %v3798, 1e-05
      %v3801 = vrsqrt.pop %v3799
      %v3802 = vrsqrt.pop %v3800
      %v3803 = vmul.f32 %v3787, %v3801
      %v3804 = vmul.f32 %v3788, %v3802
      %v3805 = vlaneseq
      %v3806 = vshrl.u32 %v3805, 7
      %v3807 = vsub.s32 2, %v3806
      %v3808 = vrot.slane %v1475, %v3807
      %v3809 = vmul.f32 %v3803, %v3808
      %v3810 = vmul.f32 %v3804, %v3808
      %v3811 = vlaneseq
      %v3812 = vshrl.u32 %v3811, 7
      %v3813 = vsub.s32 3, %v3812
      %v3814 = vrot.slane %v1475, %v3813
      %v3815 = vadd.f32 %v3809, %v3814
      %v3816 = vadd.f32 %v3810, %v3814
      %v3817 = vld [vmem:[%s8] sm:$0xff]
      %v3818 = vld [vmem:[%s8 + $0x8] sm:$0xff]
      %v3819 = vld [vmem:[%s8 + $0x10] sm:$0xff]
      %v3820 = vld [vmem:[%s8 + $0x18] sm:$0xff]
      %v3821 = vld [vmem:[%s8 + $0x20] sm:$0xff]
      %v3822 = vld [vmem:[%s8 + $0x28] sm:$0xff]
      %v3823 = vld [vmem:[%s8 + $0x30] sm:$0xff]
      %v3824 = vld [vmem:[%s8 + $0x38] sm:$0xff]
      %v3825 = vld [vmem:[%s9] sm:$0x1]
      %v3826 = vld [vmem:[%s10] sm:$0xff]
      %v3827 = vld [vmem:[%s10 + $0x8] sm:$0xff]
      %v3828 = vld [vmem:[%s10 + $0x10] sm:$0xff]
      %v3829 = vld [vmem:[%s10 + $0x18] sm:$0xff]
      %v3830 = vld [vmem:[%s10 + $0x20] sm:$0xff]
      %v3831 = vld [vmem:[%s10 + $0x28] sm:$0xff]
      %v3832 = vld [vmem:[%s10 + $0x30] sm:$0xff]
      %v3833 = vld [vmem:[%s10 + $0x38] sm:$0xff]
      %v3834 = vld [vmem:[%s10 + $0x40] sm:$0xff]
      %v3835 = vld [vmem:[%s10 + $0x48] sm:$0xff]
      %v3836 = vld [vmem:[%s10 + $0x50] sm:$0xff]
      %v3837 = vld [vmem:[%s10 + $0x58] sm:$0xff]
      %v3838 = vld [vmem:[%s10 + $0x60] sm:$0xff]
      %v3839 = vld [vmem:[%s10 + $0x68] sm:$0xff]
      %v3840 = vld [vmem:[%s10 + $0x70] sm:$0xff]
      %v3841 = vld [vmem:[%s10 + $0x78] sm:$0xff]
      %v3843 = vlaneseq
      %v3844 = vshrl.u32 %v3843, 7
      %v3845 = vsub.s32 0, %v3844
      %v3846 = vrot.slane %v3825, %v3845
      %v3849 = vsel %vm2278, %v3815, 0
      %v3852 = vsel %vm2278, %v3816, 0
      %3854 = vmatprep.subr.mxu0 0.0
      %3855 = vmatpush1.msra.mxu0 0.0
      %3856 = vmatprep.subr.mxu0 0.0
      %3857 = vmatpush1.msra.mxu0 0.0
      %3858 = vmatprep.subr.mxu0 0.0
      %3859 = vmatpush1.msra.mxu0 0.0
      %3860 = vmatprep.subr.mxu0 0.0
      %3861 = vmatpush1.msra.mxu0 0.0
      %3862 = vmatprep.subr.mxu0 0.0
      %3863 = vmatpush1.msra.mxu0 0.0
      %3864 = vmatprep.subr.mxu0 0.0
      %3865 = vmatpush1.msra.mxu0 0.0
      %3866 = vmatprep.subr.mxu0 0.0
      %3867 = vmatpush1.msra.mxu0 0.0
      %3868 = vmatprep.subr.mxu0 0.0
      %3869 = vmatpush1.msra.mxu0 0.0
      %3870 = vmatprep.subr.mxu0 0.0
      %3871 = vmatpush1.msra.mxu0 %v3824
      %3872 = vmatprep.subr.mxu0 0.0
      %3873 = vmatpush1.msra.mxu0 %v3823
      %3874 = vmatprep.subr.mxu0 0.0
      %3875 = vmatpush1.msra.mxu0 %v3822
      %3876 = vmatprep.subr.mxu0 0.0
      %3877 = vmatpush1.msra.mxu0 %v3821
      %3878 = vmatprep.subr.mxu0 0.0
      %3879 = vmatpush1.msra.mxu0 %v3820
      %3880 = vmatprep.subr.mxu0 0.0
      %3881 = vmatpush1.msra.mxu0 %v3819
      %3882 = vmatprep.subr.mxu0 0.0
      %3883 = vmatpush1.msra.mxu0 %v3818
      %3884 = vmatprep.subr.mxu0 0.0
      %3885 = vmatpush1.msra.mxu0 %v3817
      %3886 = vmatprep.subr.mxu0 0.0
      %3887 = vmatpush2.msra.mxu0 0.0
      %3888 = vmatprep.subr.mxu0 0.0
      %3889 = vmatpush2.msra.mxu0 0.0
      %3890 = vmatprep.subr.mxu0 0.0
      %3891 = vmatpush2.msra.mxu0 0.0
      %3892 = vmatprep.subr.mxu0 0.0
      %3893 = vmatpush2.msra.mxu0 0.0
      %3894 = vmatprep.subr.mxu0 0.0
      %3895 = vmatpush2.msra.mxu0 0.0
      %3896 = vmatprep.subr.mxu0 0.0
      %3897 = vmatpush2.msra.mxu0 0.0
      %3898 = vmatprep.subr.mxu0 0.0
      %3899 = vmatpush2.msra.mxu0 0.0
      %3900 = vmatprep.subr.mxu0 0.0
      %3901 = vmatpush2.msra.mxu0 0.0
      %3902 = vmatprep.subr.mxu0 0.0
      %3903 = vmatpush2.msra.mxu0 0.0
      %3904 = vmatprep.subr.mxu0 0.0
      %3905 = vmatpush2.msra.mxu0 0.0
      %3906 = vmatprep.subr.mxu0 0.0
      %3907 = vmatpush2.msra.mxu0 0.0
      %3908 = vmatprep.subr.mxu0 0.0
      %3909 = vmatpush2.msra.mxu0 0.0
      %3910 = vmatprep.subr.mxu0 0.0
      %3911 = vmatpush2.msra.mxu0 0.0
      %3912 = vmatprep.subr.mxu0 0.0
      %3913 = vmatpush2.msra.mxu0 0.0
      %3914 = vmatprep.subr.mxu0 0.0
      %3915 = vmatpush2.msra.mxu0 0.0
      %3916 = vmatprep.subr.mxu0 0.0
      %3917 = vmatpush2.msra.mxu0 0.0
      %3918 = vmatprep.mubr.f32.mxu0 0.0
      %3919 = vmatmul.mubr.f32.gmra.mxu0 %v3849
      %v3920 = vpop.f32.mrf.mxu0
      %v3921 = vadd.f32 %v3846, %v3920
      %v3922 = vpop.f32.mrf.mxu0
      %3923 = vmatprep.mubr.f32.mxu0 0.0
      %3924 = vmatmul.mubr.f32.gmra.mxu0 %v3852
      %v3925 = vpop.f32.mrf.mxu0
      %v3926 = vadd.f32 %v3846, %v3925
      %v3927 = vpop.f32.mrf.mxu0
      %3928 = vdwg.mxu0
      %v3929 = vmul.f32 %v3921, %v3921
      %v3930 = vmul.f32 %v3926, %v3926
      %v3931 = vmul.f32 %v3921, %v3929
      %v3932 = vmul.f32 %v3926, %v3930
      %v3933 = vmul.f32 %v3931, 0.044715
      %v3934 = vmul.f32 %v3932, 0.044715
      %v3935 = vadd.f32 %v3921, %v3933
      %v3936 = vadd.f32 %v3926, %v3934
      %v3937 = vmul.f32 %v3935, 0.7978846
      %v3938 = vmul.f32 %v3936, 0.7978846
      %v3939 = vtanh.pop %v3937
      %v3940 = vtanh.pop %v3938
      %v3941 = vadd.f32 %v3939, 1.0
      %v3942 = vadd.f32 %v3940, 1.0
      %v3943 = vmul.f32 %v3941, 0.5
      %v3944 = vmul.f32 %v3942, 0.5
      %v3945 = vmul.f32 %v3921, %v3943
      %v3946 = vmul.f32 %v3926, %v3944
      %v3947 = vlaneseq
      %v3948 = vshrl.u32 %v3947, 7
      %v3949 = vsub.s32 4, %v3948
      %v3950 = vrot.slane %v1475, %v3949
      %3951 = vmatprep.subr.mxu0 0.0
      %3952 = vmatpush1.msra.mxu0 %v3841
      %3953 = vmatprep.subr.mxu0 0.0
      %3954 = vmatpush1.msra.mxu0 %v3840
      %3955 = vmatprep.subr.mxu0 0.0
      %3956 = vmatpush1.msra.mxu0 %v3839
      %3957 = vmatprep.subr.mxu0 0.0
      %3958 = vmatpush1.msra.mxu0 %v3838
      %3959 = vmatprep.subr.mxu0 0.0
      %3960 = vmatpush1.msra.mxu0 %v3837
      %3961 = vmatprep.subr.mxu0 0.0
      %3962 = vmatpush1.msra.mxu0 %v3836
      %3963 = vmatprep.subr.mxu0 0.0
      %3964 = vmatpush1.msra.mxu0 %v3835
      %3965 = vmatprep.subr.mxu0 0.0
      %3966 = vmatpush1.msra.mxu0 %v3834
      %3967 = vmatprep.subr.mxu0 0.0
      %3968 = vmatpush1.msra.mxu0 %v3833
      %3969 = vmatprep.subr.mxu0 0.0
      %3970 = vmatpush1.msra.mxu0 %v3832
      %3971 = vmatprep.subr.mxu0 0.0
      %3972 = vmatpush1.msra.mxu0 %v3831
      %3973 = vmatprep.subr.mxu0 0.0
      %3974 = vmatpush1.msra.mxu0 %v3830
      %3975 = vmatprep.subr.mxu0 0.0
      %3976 = vmatpush1.msra.mxu0 %v3829
      %3977 = vmatprep.subr.mxu0 0.0
      %3978 = vmatpush1.msra.mxu0 %v3828
      %3979 = vmatprep.subr.mxu0 0.0
      %3980 = vmatpush1.msra.mxu0 %v3827
      %3981 = vmatprep.subr.mxu0 0.0
      %3982 = vmatpush1.msra.mxu0 %v3826
      %3983 = vmatprep.subr.mxu0 0.0
      %3984 = vmatpush2.msra.mxu0 0.0
      %3985 = vmatprep.subr.mxu0 0.0
      %3986 = vmatpush2.msra.mxu0 0.0
      %3987 = vmatprep.subr.mxu0 0.0
      %3988 = vmatpush2.msra.mxu0 0.0
      %3989 = vmatprep.subr.mxu0 0.0
      %3990 = vmatpush2.msra.mxu0 0.0
      %3991 = vmatprep.subr.mxu0 0.0
      %3992 = vmatpush2.msra.mxu0 0.0
      %3993 = vmatprep.subr.mxu0 0.0
      %3994 = vmatpush2.msra.mxu0 0.0
      %3995 = vmatprep.subr.mxu0 0.0
      %3996 = vmatpush2.msra.mxu0 0.0
      %3997 = vmatprep.subr.mxu0 0.0
      %3998 = vmatpush2.msra.mxu0 0.0
      %3999 = vmatprep.subr.mxu0 0.0
      %4000 = vmatpush2.msra.mxu0 0.0
      %4001 = vmatprep.subr.mxu0 0.0
      %4002 = vmatpush2.msra.mxu0 0.0
      %4003 = vmatprep.subr.mxu0 0.0
      %4004 = vmatpush2.msra.mxu0 0.0
      %4005 = vmatprep.subr.mxu0 0.0
      %4006 = vmatpush2.msra.mxu0 0.0
      %4007 = vmatprep.subr.mxu0 0.0
      %4008 = vmatpush2.msra.mxu0 0.0
      %4009 = vmatprep.subr.mxu0 0.0
      %4010 = vmatpush2.msra.mxu0 0.0
      %4011 = vmatprep.subr.mxu0 0.0
      %4012 = vmatpush2.msra.mxu0 0.0
      %4013 = vmatprep.subr.mxu0 0.0
      %4014 = vmatpush2.msra.mxu0 0.0
      %4015 = vmatprep.mubr.f32.mxu0 0.0
      %4016 = vmatmul.mubr.f32.gmra.mxu0 %v3945
      %v4017 = vpop.f32.mrf.mxu0
      %v4018 = vadd.f32 %v3950, %v4017
      %v4019 = vpop.f32.mrf.mxu0
      %4020 = vmatprep.mubr.f32.mxu0 0.0
      %4021 = vmatmul.mubr.f32.gmra.mxu0 %v3946
      %v4022 = vpop.f32.mrf.mxu0
      %v4023 = vadd.f32 %v3950, %v4022
      %v4024 = vpop.f32.mrf.mxu0
      %4025 = vdwg.mxu0
      %v4026 = vadd.f32 %v3730, %v4018
      %v4027 = vadd.f32 %v3762, %v4023
      %v4028 = vadd.f32 %v4026, %v4027
      %v4029 = vxor.u32 %v4028, 2147483648
      %v4030 = vmul.f32 %v4029, 1.442695
      %v4031 = vpow.pop %v4030
      %v4032 = vadd.f32 %v4031, 1.0
      %v4033 = vrcp.pop %v4032
      %v4034 = vmul.f32 1.0, %v4033
      %v4035 = vmul.f32 %v2449, %v4034
      %v4036 = vmul.f32 %v2455, %v4034
      %v4037 = vlaneseq
      %v4038 = vshrl.u32 %v4037, 7
      %v4039 = vsub.s32 0, %v4038
      %v4040 = vrot.slane %v4035, %v4039
      %4042 = vbcast.lane.b32.xlu0 %v4040, 256
      %v4043 = vpop.permute.xlu0 %4042
      %s4045 = sor.u32 256, 8
      %4046 = vbcast.lane.b32.xlu0 %v4040, %s4045
      %v4047 = vpop.permute.xlu0 %4046
      %s4049 = sor.u32 256, 16
      %4050 = vbcast.lane.b32.xlu0 %v4040, %s4049
      %v4051 = vpop.permute.xlu0 %4050
      %s4053 = sor.u32 256, 24
      %4054 = vbcast.lane.b32.xlu0 %v4040, %s4053
      %v4055 = vpop.permute.xlu0 %4054
      %s4057 = sor.u32 256, 32
      %4058 = vbcast.lane.b32.xlu0 %v4040, %s4057
      %v4059 = vpop.permute.xlu0 %4058
      %s4061 = sor.u32 256, 40
      %4062 = vbcast.lane.b32.xlu0 %v4040, %s4061
      %v4063 = vpop.permute.xlu0 %4062
      %s4065 = sor.u32 256, 48
      %4066 = vbcast.lane.b32.xlu0 %v4040, %s4065
      %v4067 = vpop.permute.xlu0 %4066
      %s4069 = sor.u32 256, 56
      %4070 = vbcast.lane.b32.xlu0 %v4040, %s4069
      %v4071 = vpop.permute.xlu0 %4070
      %v4072 = vlaneseq
      %v4073 = vshrl.u32 %v4072, 7
      %v4074 = vsub.s32 1, %v4073
      %v4075 = vrot.slane %v4035, %v4074
      %4077 = vbcast.lane.b32.xlu0 %v4075, 256
      %v4078 = vpop.permute.xlu0 %4077
      %s4080 = sor.u32 256, 8
      %4081 = vbcast.lane.b32.xlu0 %v4075, %s4080
      %v4082 = vpop.permute.xlu0 %4081
      %s4084 = sor.u32 256, 16
      %4085 = vbcast.lane.b32.xlu0 %v4075, %s4084
      %v4086 = vpop.permute.xlu0 %4085
      %s4088 = sor.u32 256, 24
      %4089 = vbcast.lane.b32.xlu0 %v4075, %s4088
      %v4090 = vpop.permute.xlu0 %4089
      %s4092 = sor.u32 256, 32
      %4093 = vbcast.lane.b32.xlu0 %v4075, %s4092
      %v4094 = vpop.permute.xlu0 %4093
      %s4096 = sor.u32 256, 40
      %4097 = vbcast.lane.b32.xlu0 %v4075, %s4096
      %v4098 = vpop.permute.xlu0 %4097
      %s4100 = sor.u32 256, 48
      %4101 = vbcast.lane.b32.xlu0 %v4075, %s4100
      %v4102 = vpop.permute.xlu0 %4101
      %s4104 = sor.u32 256, 56
      %4105 = vbcast.lane.b32.xlu0 %v4075, %s4104
      %v4106 = vpop.permute.xlu0 %4105
      %v4107 = vlaneseq
      %v4108 = vshrl.u32 %v4107, 7
      %v4109 = vsub.s32 2, %v4108
      %v4110 = vrot.slane %v4035, %v4109
      %4112 = vbcast.lane.b32.xlu0 %v4110, 256
      %v4113 = vpop.permute.xlu0 %4112
      %s4115 = sor.u32 256, 8
      %4116 = vbcast.lane.b32.xlu0 %v4110, %s4115
      %v4117 = vpop.permute.xlu0 %4116
      %s4119 = sor.u32 256, 16
      %4120 = vbcast.lane.b32.xlu0 %v4110, %s4119
      %v4121 = vpop.permute.xlu0 %4120
      %s4123 = sor.u32 256, 24
      %4124 = vbcast.lane.b32.xlu0 %v4110, %s4123
      %v4125 = vpop.permute.xlu0 %4124
      %s4127 = sor.u32 256, 32
      %4128 = vbcast.lane.b32.xlu0 %v4110, %s4127
      %v4129 = vpop.permute.xlu0 %4128
      %s4131 = sor.u32 256, 40
      %4132 = vbcast.lane.b32.xlu0 %v4110, %s4131
      %v4133 = vpop.permute.xlu0 %4132
      %s4135 = sor.u32 256, 48
      %4136 = vbcast.lane.b32.xlu0 %v4110, %s4135
      %v4137 = vpop.permute.xlu0 %4136
      %s4139 = sor.u32 256, 56
      %4140 = vbcast.lane.b32.xlu0 %v4110, %s4139
      %v4141 = vpop.permute.xlu0 %4140
      %v4142 = vlaneseq
      %v4143 = vshrl.u32 %v4142, 7
      %v4144 = vsub.s32 3, %v4143
      %v4145 = vrot.slane %v4035, %v4144
      %4147 = vbcast.lane.b32.xlu0 %v4145, 256
      %v4148 = vpop.permute.xlu0 %4147
      %s4150 = sor.u32 256, 8
      %4151 = vbcast.lane.b32.xlu0 %v4145, %s4150
      %v4152 = vpop.permute.xlu0 %4151
      %s4154 = sor.u32 256, 16
      %4155 = vbcast.lane.b32.xlu0 %v4145, %s4154
      %v4156 = vpop.permute.xlu0 %4155
      %s4158 = sor.u32 256, 24
      %4159 = vbcast.lane.b32.xlu0 %v4145, %s4158
      %v4160 = vpop.permute.xlu0 %4159
      %s4162 = sor.u32 256, 32
      %4163 = vbcast.lane.b32.xlu0 %v4145, %s4162
      %v4164 = vpop.permute.xlu0 %4163
      %s4166 = sor.u32 256, 40
      %4167 = vbcast.lane.b32.xlu0 %v4145, %s4166
      %v4168 = vpop.permute.xlu0 %4167
      %s4170 = sor.u32 256, 48
      %4171 = vbcast.lane.b32.xlu0 %v4145, %s4170
      %v4172 = vpop.permute.xlu0 %4171
      %s4174 = sor.u32 256, 56
      %4175 = vbcast.lane.b32.xlu0 %v4145, %s4174
      %v4176 = vpop.permute.xlu0 %4175
      %v4177 = vlaneseq
      %v4178 = vshrl.u32 %v4177, 7
      %v4179 = vsub.s32 4, %v4178
      %v4180 = vrot.slane %v4035, %v4179
      %4182 = vbcast.lane.b32.xlu0 %v4180, 256
      %v4183 = vpop.permute.xlu0 %4182
      %s4185 = sor.u32 256, 8
      %4186 = vbcast.lane.b32.xlu0 %v4180, %s4185
      %v4187 = vpop.permute.xlu0 %4186
      %s4189 = sor.u32 256, 16
      %4190 = vbcast.lane.b32.xlu0 %v4180, %s4189
      %v4191 = vpop.permute.xlu0 %4190
      %s4193 = sor.u32 256, 24
      %4194 = vbcast.lane.b32.xlu0 %v4180, %s4193
      %v4195 = vpop.permute.xlu0 %4194
      %s4197 = sor.u32 256, 32
      %4198 = vbcast.lane.b32.xlu0 %v4180, %s4197
      %v4199 = vpop.permute.xlu0 %4198
      %s4201 = sor.u32 256, 40
      %4202 = vbcast.lane.b32.xlu0 %v4180, %s4201
      %v4203 = vpop.permute.xlu0 %4202
      %s4205 = sor.u32 256, 48
      %4206 = vbcast.lane.b32.xlu0 %v4180, %s4205
      %v4207 = vpop.permute.xlu0 %4206
      %s4209 = sor.u32 256, 56
      %4210 = vbcast.lane.b32.xlu0 %v4180, %s4209
      %v4211 = vpop.permute.xlu0 %4210
      %v4212 = vlaneseq
      %v4213 = vshrl.u32 %v4212, 7
      %v4214 = vsub.s32 5, %v4213
      %v4215 = vrot.slane %v4035, %v4214
      %4217 = vbcast.lane.b32.xlu0 %v4215, 256
      %v4218 = vpop.permute.xlu0 %4217
      %s4220 = sor.u32 256, 8
      %4221 = vbcast.lane.b32.xlu0 %v4215, %s4220
      %v4222 = vpop.permute.xlu0 %4221
      %s4224 = sor.u32 256, 16
      %4225 = vbcast.lane.b32.xlu0 %v4215, %s4224
      %v4226 = vpop.permute.xlu0 %4225
      %s4228 = sor.u32 256, 24
      %4229 = vbcast.lane.b32.xlu0 %v4215, %s4228
      %v4230 = vpop.permute.xlu0 %4229
      %s4232 = sor.u32 256, 32
      %4233 = vbcast.lane.b32.xlu0 %v4215, %s4232
      %v4234 = vpop.permute.xlu0 %4233
      %s4236 = sor.u32 256, 40
      %4237 = vbcast.lane.b32.xlu0 %v4215, %s4236
      %v4238 = vpop.permute.xlu0 %4237
      %s4240 = sor.u32 256, 48
      %4241 = vbcast.lane.b32.xlu0 %v4215, %s4240
      %v4242 = vpop.permute.xlu0 %4241
      %s4244 = sor.u32 256, 56
      %4245 = vbcast.lane.b32.xlu0 %v4215, %s4244
      %v4246 = vpop.permute.xlu0 %4245
      %v4247 = vlaneseq
      %v4248 = vshrl.u32 %v4247, 7
      %v4249 = vsub.s32 6, %v4248
      %v4250 = vrot.slane %v4035, %v4249
      %4252 = vbcast.lane.b32.xlu0 %v4250, 256
      %v4253 = vpop.permute.xlu0 %4252
      %s4255 = sor.u32 256, 8
      %4256 = vbcast.lane.b32.xlu0 %v4250, %s4255
      %v4257 = vpop.permute.xlu0 %4256
      %s4259 = sor.u32 256, 16
      %4260 = vbcast.lane.b32.xlu0 %v4250, %s4259
      %v4261 = vpop.permute.xlu0 %4260
      %s4263 = sor.u32 256, 24
      %4264 = vbcast.lane.b32.xlu0 %v4250, %s4263
      %v4265 = vpop.permute.xlu0 %4264
      %s4267 = sor.u32 256, 32
      %4268 = vbcast.lane.b32.xlu0 %v4250, %s4267
      %v4269 = vpop.permute.xlu0 %4268
      %s4271 = sor.u32 256, 40
      %4272 = vbcast.lane.b32.xlu0 %v4250, %s4271
      %v4273 = vpop.permute.xlu0 %4272
      %s4275 = sor.u32 256, 48
      %4276 = vbcast.lane.b32.xlu0 %v4250, %s4275
      %v4277 = vpop.permute.xlu0 %4276
      %s4279 = sor.u32 256, 56
      %4280 = vbcast.lane.b32.xlu0 %v4250, %s4279
      %v4281 = vpop.permute.xlu0 %4280
      %v4282 = vlaneseq
      %v4283 = vshrl.u32 %v4282, 7
      %v4284 = vsub.s32 7, %v4283
      %v4285 = vrot.slane %v4035, %v4284
      %4287 = vbcast.lane.b32.xlu0 %v4285, 256
      %v4288 = vpop.permute.xlu0 %4287
      %s4290 = sor.u32 256, 8
      %4291 = vbcast.lane.b32.xlu0 %v4285, %s4290
      %v4292 = vpop.permute.xlu0 %4291
      %s4294 = sor.u32 256, 16
      %4295 = vbcast.lane.b32.xlu0 %v4285, %s4294
      %v4296 = vpop.permute.xlu0 %4295
      %s4298 = sor.u32 256, 24
      %4299 = vbcast.lane.b32.xlu0 %v4285, %s4298
      %v4300 = vpop.permute.xlu0 %4299
      %s4302 = sor.u32 256, 32
      %4303 = vbcast.lane.b32.xlu0 %v4285, %s4302
      %v4304 = vpop.permute.xlu0 %4303
      %s4306 = sor.u32 256, 40
      %4307 = vbcast.lane.b32.xlu0 %v4285, %s4306
      %v4308 = vpop.permute.xlu0 %4307
      %s4310 = sor.u32 256, 48
      %4311 = vbcast.lane.b32.xlu0 %v4285, %s4310
      %v4312 = vpop.permute.xlu0 %4311
      %s4314 = sor.u32 256, 56
      %4315 = vbcast.lane.b32.xlu0 %v4285, %s4314
      %v4316 = vpop.permute.xlu0 %4315
      %v4317 = vlaneseq
      %v4318 = vshrl.u32 %v4317, 7
      %v4319 = vsub.s32 0, %v4318
      %v4320 = vrot.slane %v4036, %v4319
      %4322 = vbcast.lane.b32.xlu0 %v4320, 256
      %v4323 = vpop.permute.xlu0 %4322
      %s4325 = sor.u32 256, 8
      %4326 = vbcast.lane.b32.xlu0 %v4320, %s4325
      %v4327 = vpop.permute.xlu0 %4326
      %s4329 = sor.u32 256, 16
      %4330 = vbcast.lane.b32.xlu0 %v4320, %s4329
      %v4331 = vpop.permute.xlu0 %4330
      %s4333 = sor.u32 256, 24
      %4334 = vbcast.lane.b32.xlu0 %v4320, %s4333
      %v4335 = vpop.permute.xlu0 %4334
      %s4337 = sor.u32 256, 32
      %4338 = vbcast.lane.b32.xlu0 %v4320, %s4337
      %v4339 = vpop.permute.xlu0 %4338
      %s4341 = sor.u32 256, 40
      %4342 = vbcast.lane.b32.xlu0 %v4320, %s4341
      %v4343 = vpop.permute.xlu0 %4342
      %s4345 = sor.u32 256, 48
      %4346 = vbcast.lane.b32.xlu0 %v4320, %s4345
      %v4347 = vpop.permute.xlu0 %4346
      %s4349 = sor.u32 256, 56
      %4350 = vbcast.lane.b32.xlu0 %v4320, %s4349
      %v4351 = vpop.permute.xlu0 %4350
      %v4352 = vlaneseq
      %v4353 = vshrl.u32 %v4352, 7
      %v4354 = vsub.s32 1, %v4353
      %v4355 = vrot.slane %v4036, %v4354
      %4357 = vbcast.lane.b32.xlu0 %v4355, 256
      %v4358 = vpop.permute.xlu0 %4357
      %s4360 = sor.u32 256, 8
      %4361 = vbcast.lane.b32.xlu0 %v4355, %s4360
      %v4362 = vpop.permute.xlu0 %4361
      %s4364 = sor.u32 256, 16
      %4365 = vbcast.lane.b32.xlu0 %v4355, %s4364
      %v4366 = vpop.permute.xlu0 %4365
      %s4368 = sor.u32 256, 24
      %4369 = vbcast.lane.b32.xlu0 %v4355, %s4368
      %v4370 = vpop.permute.xlu0 %4369
      %s4372 = sor.u32 256, 32
      %4373 = vbcast.lane.b32.xlu0 %v4355, %s4372
      %v4374 = vpop.permute.xlu0 %4373
      %s4376 = sor.u32 256, 40
      %4377 = vbcast.lane.b32.xlu0 %v4355, %s4376
      %v4378 = vpop.permute.xlu0 %4377
      %s4380 = sor.u32 256, 48
      %4381 = vbcast.lane.b32.xlu0 %v4355, %s4380
      %v4382 = vpop.permute.xlu0 %4381
      %s4384 = sor.u32 256, 56
      %4385 = vbcast.lane.b32.xlu0 %v4355, %s4384
      %v4386 = vpop.permute.xlu0 %4385
      %v4387 = vlaneseq
      %v4388 = vshrl.u32 %v4387, 7
      %v4389 = vsub.s32 2, %v4388
      %v4390 = vrot.slane %v4036, %v4389
      %4392 = vbcast.lane.b32.xlu0 %v4390, 256
      %v4393 = vpop.permute.xlu0 %4392
      %s4395 = sor.u32 256, 8
      %4396 = vbcast.lane.b32.xlu0 %v4390, %s4395
      %v4397 = vpop.permute.xlu0 %4396
      %s4399 = sor.u32 256, 16
      %4400 = vbcast.lane.b32.xlu0 %v4390, %s4399
      %v4401 = vpop.permute.xlu0 %4400
      %s4403 = sor.u32 256, 24
      %4404 = vbcast.lane.b32.xlu0 %v4390, %s4403
      %v4405 = vpop.permute.xlu0 %4404
      %s4407 = sor.u32 256, 32
      %4408 = vbcast.lane.b32.xlu0 %v4390, %s4407
      %v4409 = vpop.permute.xlu0 %4408
      %s4411 = sor.u32 256, 40
      %4412 = vbcast.lane.b32.xlu0 %v4390, %s4411
      %v4413 = vpop.permute.xlu0 %4412
      %s4415 = sor.u32 256, 48
      %4416 = vbcast.lane.b32.xlu0 %v4390, %s4415
      %v4417 = vpop.permute.xlu0 %4416
      %s4419 = sor.u32 256, 56
      %4420 = vbcast.lane.b32.xlu0 %v4390, %s4419
      %v4421 = vpop.permute.xlu0 %4420
      %v4422 = vlaneseq
      %v4423 = vshrl.u32 %v4422, 7
      %v4424 = vsub.s32 3, %v4423
      %v4425 = vrot.slane %v4036, %v4424
      %4427 = vbcast.lane.b32.xlu0 %v4425, 256
      %v4428 = vpop.permute.xlu0 %4427
      %s4430 = sor.u32 256, 8
      %4431 = vbcast.lane.b32.xlu0 %v4425, %s4430
      %v4432 = vpop.permute.xlu0 %4431
      %s4434 = sor.u32 256, 16
      %4435 = vbcast.lane.b32.xlu0 %v4425, %s4434
      %v4436 = vpop.permute.xlu0 %4435
      %s4438 = sor.u32 256, 24
      %4439 = vbcast.lane.b32.xlu0 %v4425, %s4438
      %v4440 = vpop.permute.xlu0 %4439
      %s4442 = sor.u32 256, 32
      %4443 = vbcast.lane.b32.xlu0 %v4425, %s4442
      %v4444 = vpop.permute.xlu0 %4443
      %s4446 = sor.u32 256, 40
      %4447 = vbcast.lane.b32.xlu0 %v4425, %s4446
      %v4448 = vpop.permute.xlu0 %4447
      %s4450 = sor.u32 256, 48
      %4451 = vbcast.lane.b32.xlu0 %v4425, %s4450
      %v4452 = vpop.permute.xlu0 %4451
      %s4454 = sor.u32 256, 56
      %4455 = vbcast.lane.b32.xlu0 %v4425, %s4454
      %v4456 = vpop.permute.xlu0 %4455
      %v4457 = vlaneseq
      %v4458 = vshrl.u32 %v4457, 7
      %v4459 = vsub.s32 4, %v4458
      %v4460 = vrot.slane %v4036, %v4459
      %4462 = vbcast.lane.b32.xlu0 %v4460, 256
      %v4463 = vpop.permute.xlu0 %4462
      %s4465 = sor.u32 256, 8
      %4466 = vbcast.lane.b32.xlu0 %v4460, %s4465
      %v4467 = vpop.permute.xlu0 %4466
      %s4469 = sor.u32 256, 16
      %4470 = vbcast.lane.b32.xlu0 %v4460, %s4469
      %v4471 = vpop.permute.xlu0 %4470
      %s4473 = sor.u32 256, 24
      %4474 = vbcast.lane.b32.xlu0 %v4460, %s4473
      %v4475 = vpop.permute.xlu0 %4474
      %s4477 = sor.u32 256, 32
      %4478 = vbcast.lane.b32.xlu0 %v4460, %s4477
      %v4479 = vpop.permute.xlu0 %4478
      %s4481 = sor.u32 256, 40
      %4482 = vbcast.lane.b32.xlu0 %v4460, %s4481
      %v4483 = vpop.permute.xlu0 %4482
      %s4485 = sor.u32 256, 48
      %4486 = vbcast.lane.b32.xlu0 %v4460, %s4485
      %v4487 = vpop.permute.xlu0 %4486
      %s4489 = sor.u32 256, 56
      %4490 = vbcast.lane.b32.xlu0 %v4460, %s4489
      %v4491 = vpop.permute.xlu0 %4490
      %v4492 = vlaneseq
      %v4493 = vshrl.u32 %v4492, 7
      %v4494 = vsub.s32 5, %v4493
      %v4495 = vrot.slane %v4036, %v4494
      %4497 = vbcast.lane.b32.xlu0 %v4495, 256
      %v4498 = vpop.permute.xlu0 %4497
      %s4500 = sor.u32 256, 8
      %4501 = vbcast.lane.b32.xlu0 %v4495, %s4500
      %v4502 = vpop.permute.xlu0 %4501
      %s4504 = sor.u32 256, 16
      %4505 = vbcast.lane.b32.xlu0 %v4495, %s4504
      %v4506 = vpop.permute.xlu0 %4505
      %s4508 = sor.u32 256, 24
      %4509 = vbcast.lane.b32.xlu0 %v4495, %s4508
      %v4510 = vpop.permute.xlu0 %4509
      %s4512 = sor.u32 256, 32
      %4513 = vbcast.lane.b32.xlu0 %v4495, %s4512
      %v4514 = vpop.permute.xlu0 %4513
      %s4516 = sor.u32 256, 40
      %4517 = vbcast.lane.b32.xlu0 %v4495, %s4516
      %v4518 = vpop.permute.xlu0 %4517
      %s4520 = sor.u32 256, 48
      %4521 = vbcast.lane.b32.xlu0 %v4495, %s4520
      %v4522 = vpop.permute.xlu0 %4521
      %s4524 = sor.u32 256, 56
      %4525 = vbcast.lane.b32.xlu0 %v4495, %s4524
      %v4526 = vpop.permute.xlu0 %4525
      %v4527 = vlaneseq
      %v4528 = vshrl.u32 %v4527, 7
      %v4529 = vsub.s32 6, %v4528
      %v4530 = vrot.slane %v4036, %v4529
      %4532 = vbcast.lane.b32.xlu0 %v4530, 256
      %v4533 = vpop.permute.xlu0 %4532
      %s4535 = sor.u32 256, 8
      %4536 = vbcast.lane.b32.xlu0 %v4530, %s4535
      %v4537 = vpop.permute.xlu0 %4536
      %s4539 = sor.u32 256, 16
      %4540 = vbcast.lane.b32.xlu0 %v4530, %s4539
      %v4541 = vpop.permute.xlu0 %4540
      %s4543 = sor.u32 256, 24
      %4544 = vbcast.lane.b32.xlu0 %v4530, %s4543
      %v4545 = vpop.permute.xlu0 %4544
      %s4547 = sor.u32 256, 32
      %4548 = vbcast.lane.b32.xlu0 %v4530, %s4547
      %v4549 = vpop.permute.xlu0 %4548
      %s4551 = sor.u32 256, 40
      %4552 = vbcast.lane.b32.xlu0 %v4530, %s4551
      %v4553 = vpop.permute.xlu0 %4552
      %s4555 = sor.u32 256, 48
      %4556 = vbcast.lane.b32.xlu0 %v4530, %s4555
      %v4557 = vpop.permute.xlu0 %4556
      %s4559 = sor.u32 256, 56
      %4560 = vbcast.lane.b32.xlu0 %v4530, %s4559
      %v4561 = vpop.permute.xlu0 %4560
      %v4562 = vlaneseq
      %v4563 = vshrl.u32 %v4562, 7
      %v4564 = vsub.s32 7, %v4563
      %v4565 = vrot.slane %v4036, %v4564
      %4567 = vbcast.lane.b32.xlu0 %v4565, 256
      %v4568 = vpop.permute.xlu0 %4567
      %s4570 = sor.u32 256, 8
      %4571 = vbcast.lane.b32.xlu0 %v4565, %s4570
      %v4572 = vpop.permute.xlu0 %4571
      %s4574 = sor.u32 256, 16
      %4575 = vbcast.lane.b32.xlu0 %v4565, %s4574
      %v4576 = vpop.permute.xlu0 %4575
      %s4578 = sor.u32 256, 24
      %4579 = vbcast.lane.b32.xlu0 %v4565, %s4578
      %v4580 = vpop.permute.xlu0 %4579
      %s4582 = sor.u32 256, 32
      %4583 = vbcast.lane.b32.xlu0 %v4565, %s4582
      %v4584 = vpop.permute.xlu0 %4583
      %s4586 = sor.u32 256, 40
      %4587 = vbcast.lane.b32.xlu0 %v4565, %s4586
      %v4588 = vpop.permute.xlu0 %4587
      %s4590 = sor.u32 256, 48
      %4591 = vbcast.lane.b32.xlu0 %v4565, %s4590
      %v4592 = vpop.permute.xlu0 %4591
      %s4594 = sor.u32 256, 56
      %4595 = vbcast.lane.b32.xlu0 %v4565, %s4594
      %v4596 = vpop.permute.xlu0 %4595
      %v4597 = vmul.f32 %v387, %v4043
      %v4598 = vmul.f32 %v388, %v4043
      %v4599 = vmul.f32 %v389, %v4047
      %v4600 = vmul.f32 %v390, %v4047
      %v4601 = vmul.f32 %v391, %v4051
      %v4602 = vmul.f32 %v392, %v4051
      %v4603 = vmul.f32 %v393, %v4055
      %v4604 = vmul.f32 %v394, %v4055
      %v4605 = vmul.f32 %v395, %v4059
      %v4606 = vmul.f32 %v396, %v4059
      %v4607 = vmul.f32 %v397, %v4063
      %v4608 = vmul.f32 %v398, %v4063
      %v4609 = vmul.f32 %v399, %v4067
      %v4610 = vmul.f32 %v400, %v4067
      %v4611 = vmul.f32 %v401, %v4071
      %v4612 = vmul.f32 %v402, %v4071
      %v4613 = vmul.f32 %v403, %v4078
      %v4614 = vmul.f32 %v404, %v4078
      %v4615 = vmul.f32 %v405, %v4082
      %v4616 = vmul.f32 %v406, %v4082
      %v4617 = vmul.f32 %v407, %v4086
      %v4618 = vmul.f32 %v408, %v4086
      %v4619 = vmul.f32 %v409, %v4090
      %v4620 = vmul.f32 %v410, %v4090
      %v4621 = vmul.f32 %v411, %v4094
      %v4622 = vmul.f32 %v412, %v4094
      %v4623 = vmul.f32 %v413, %v4098
      %v4624 = vmul.f32 %v414, %v4098
      %v4625 = vmul.f32 %v415, %v4102
      %v4626 = vmul.f32 %v416, %v4102
      %v4627 = vmul.f32 %v417, %v4106
      %v4628 = vmul.f32 %v418, %v4106
      %v4629 = vmul.f32 %v419, %v4113
      %v4630 = vmul.f32 %v420, %v4113
      %v4631 = vmul.f32 %v421, %v4117
      %v4632 = vmul.f32 %v422, %v4117
      %v4633 = vmul.f32 %v423, %v4121
      %v4634 = vmul.f32 %v424, %v4121
      %v4635 = vmul.f32 %v425, %v4125
      %v4636 = vmul.f32 %v426, %v4125
      %v4637 = vmul.f32 %v427, %v4129
      %v4638 = vmul.f32 %v428, %v4129
      %v4639 = vmul.f32 %v429, %v4133
      %v4640 = vmul.f32 %v430, %v4133
      %v4641 = vmul.f32 %v431, %v4137
      %v4642 = vmul.f32 %v432, %v4137
      %v4643 = vmul.f32 %v433, %v4141
      %v4644 = vmul.f32 %v434, %v4141
      %v4645 = vmul.f32 %v435, %v4148
      %v4646 = vmul.f32 %v436, %v4148
      %v4647 = vmul.f32 %v437, %v4152
      %v4648 = vmul.f32 %v438, %v4152
      %v4649 = vmul.f32 %v439, %v4156
      %v4650 = vmul.f32 %v440, %v4156
      %v4651 = vmul.f32 %v441, %v4160
      %v4652 = vmul.f32 %v442, %v4160
      %v4653 = vmul.f32 %v443, %v4164
      %v4654 = vmul.f32 %v444, %v4164
      %v4655 = vmul.f32 %v445, %v4168
      %v4656 = vmul.f32 %v446, %v4168
      %v4657 = vmul.f32 %v447, %v4172
      %v4658 = vmul.f32 %v448, %v4172
      %v4659 = vmul.f32 %v449, %v4176
      %v4660 = vmul.f32 %v450, %v4176
      %v4661 = vmul.f32 %v451, %v4183
      %v4662 = vmul.f32 %v452, %v4183
      %v4663 = vmul.f32 %v453, %v4187
      %v4664 = vmul.f32 %v454, %v4187
      %v4665 = vmul.f32 %v455, %v4191
      %v4666 = vmul.f32 %v456, %v4191
      %v4667 = vmul.f32 %v457, %v4195
      %v4668 = vmul.f32 %v458, %v4195
      %v4669 = vmul.f32 %v459, %v4199
      %v4670 = vmul.f32 %v460, %v4199
      %v4671 = vmul.f32 %v461, %v4203
      %v4672 = vmul.f32 %v462, %v4203
      %v4673 = vmul.f32 %v463, %v4207
      %v4674 = vmul.f32 %v464, %v4207
      %v4675 = vmul.f32 %v465, %v4211
      %v4676 = vmul.f32 %v466, %v4211
      %v4677 = vmul.f32 %v467, %v4218
      %v4678 = vmul.f32 %v468, %v4218
      %v4679 = vmul.f32 %v469, %v4222
      %v4680 = vmul.f32 %v470, %v4222
      %v4681 = vmul.f32 %v471, %v4226
      %v4682 = vmul.f32 %v472, %v4226
      %v4683 = vmul.f32 %v473, %v4230
      %v4684 = vmul.f32 %v474, %v4230
      %v4685 = vmul.f32 %v475, %v4234
      %v4686 = vmul.f32 %v476, %v4234
      %v4687 = vmul.f32 %v477, %v4238
      %v4688 = vmul.f32 %v478, %v4238
      %v4689 = vmul.f32 %v479, %v4242
      %v4690 = vmul.f32 %v480, %v4242
      %v4691 = vmul.f32 %v481, %v4246
      %v4692 = vmul.f32 %v482, %v4246
      %v4693 = vmul.f32 %v483, %v4253
      %v4694 = vmul.f32 %v484, %v4253
      %v4695 = vmul.f32 %v485, %v4257
      %v4696 = vmul.f32 %v486, %v4257
      %v4697 = vmul.f32 %v487, %v4261
      %v4698 = vmul.f32 %v488, %v4261
      %v4699 = vmul.f32 %v489, %v4265
      %v4700 = vmul.f32 %v490, %v4265
      %v4701 = vmul.f32 %v491, %v4269
      %v4702 = vmul.f32 %v492, %v4269
      %v4703 = vmul.f32 %v493, %v4273
      %v4704 = vmul.f32 %v494, %v4273
      %v4705 = vmul.f32 %v495, %v4277
      %v4706 = vmul.f32 %v496, %v4277
      %v4707 = vmul.f32 %v497, %v4281
      %v4708 = vmul.f32 %v498, %v4281
      %v4709 = vmul.f32 %v499, %v4288
      %v4710 = vmul.f32 %v500, %v4288
      %v4711 = vmul.f32 %v501, %v4292
      %v4712 = vmul.f32 %v502, %v4292
      %v4713 = vmul.f32 %v503, %v4296
      %v4714 = vmul.f32 %v504, %v4296
      %v4715 = vmul.f32 %v505, %v4300
      %v4716 = vmul.f32 %v506, %v4300
      %v4717 = vmul.f32 %v507, %v4304
      %v4718 = vmul.f32 %v508, %v4304
      %v4719 = vmul.f32 %v509, %v4308
      %v4720 = vmul.f32 %v510, %v4308
      %v4721 = vmul.f32 %v511, %v4312
      %v4722 = vmul.f32 %v512, %v4312
      %v4723 = vmul.f32 %v513, %v4316
      %v4724 = vmul.f32 %v514, %v4316
      %v4725 = vadd.f32 %v4597, %v4323
      %v4726 = vadd.f32 %v4598, %v4323
      %v4727 = vadd.f32 %v4599, %v4327
      %v4728 = vadd.f32 %v4600, %v4327
      %v4729 = vadd.f32 %v4601, %v4331
      %v4730 = vadd.f32 %v4602, %v4331
      %v4731 = vadd.f32 %v4603, %v4335
      %v4732 = vadd.f32 %v4604, %v4335
      %v4733 = vadd.f32 %v4605, %v4339
      %v4734 = vadd.f32 %v4606, %v4339
      %v4735 = vadd.f32 %v4607, %v4343
      %v4736 = vadd.f32 %v4608, %v4343
      %v4737 = vadd.f32 %v4609, %v4347
      %v4738 = vadd.f32 %v4610, %v4347
      %v4739 = vadd.f32 %v4611, %v4351
      %v4740 = vadd.f32 %v4612, %v4351
      %v4741 = vadd.f32 %v4613, %v4358
      %v4742 = vadd.f32 %v4614, %v4358
      %v4743 = vadd.f32 %v4615, %v4362
      %v4744 = vadd.f32 %v4616, %v4362
      %v4745 = vadd.f32 %v4617, %v4366
      %v4746 = vadd.f32 %v4618, %v4366
      %v4747 = vadd.f32 %v4619, %v4370
      %v4748 = vadd.f32 %v4620, %v4370
      %v4749 = vadd.f32 %v4621, %v4374
      %v4750 = vadd.f32 %v4622, %v4374
      %v4751 = vadd.f32 %v4623, %v4378
      %v4752 = vadd.f32 %v4624, %v4378
      %v4753 = vadd.f32 %v4625, %v4382
      %v4754 = vadd.f32 %v4626, %v4382
      %v4755 = vadd.f32 %v4627, %v4386
      %v4756 = vadd.f32 %v4628, %v4386
      %v4757 = vadd.f32 %v4629, %v4393
      %v4758 = vadd.f32 %v4630, %v4393
      %v4759 = vadd.f32 %v4631, %v4397
      %v4760 = vadd.f32 %v4632, %v4397
      %v4761 = vadd.f32 %v4633, %v4401
      %v4762 = vadd.f32 %v4634, %v4401
      %v4763 = vadd.f32 %v4635, %v4405
      %v4764 = vadd.f32 %v4636, %v4405
      %v4765 = vadd.f32 %v4637, %v4409
      %v4766 = vadd.f32 %v4638, %v4409
      %v4767 = vadd.f32 %v4639, %v4413
      %v4768 = vadd.f32 %v4640, %v4413
      %v4769 = vadd.f32 %v4641, %v4417
      %v4770 = vadd.f32 %v4642, %v4417
      %v4771 = vadd.f32 %v4643, %v4421
      %v4772 = vadd.f32 %v4644, %v4421
      %v4773 = vadd.f32 %v4645, %v4428
      %v4774 = vadd.f32 %v4646, %v4428
      %v4775 = vadd.f32 %v4647, %v4432
      %v4776 = vadd.f32 %v4648, %v4432
      %v4777 = vadd.f32 %v4649, %v4436
      %v4778 = vadd.f32 %v4650, %v4436
      %v4779 = vadd.f32 %v4651, %v4440
      %v4780 = vadd.f32 %v4652, %v4440
      %v4781 = vadd.f32 %v4653, %v4444
      %v4782 = vadd.f32 %v4654, %v4444
      %v4783 = vadd.f32 %v4655, %v4448
      %v4784 = vadd.f32 %v4656, %v4448
      %v4785 = vadd.f32 %v4657, %v4452
      %v4786 = vadd.f32 %v4658, %v4452
      %v4787 = vadd.f32 %v4659, %v4456
      %v4788 = vadd.f32 %v4660, %v4456
      %v4789 = vadd.f32 %v4661, %v4463
      %v4790 = vadd.f32 %v4662, %v4463
      %v4791 = vadd.f32 %v4663, %v4467
      %v4792 = vadd.f32 %v4664, %v4467
      %v4793 = vadd.f32 %v4665, %v4471
      %v4794 = vadd.f32 %v4666, %v4471
      %v4795 = vadd.f32 %v4667, %v4475
      %v4796 = vadd.f32 %v4668, %v4475
      %v4797 = vadd.f32 %v4669, %v4479
      %v4798 = vadd.f32 %v4670, %v4479
      %v4799 = vadd.f32 %v4671, %v4483
      %v4800 = vadd.f32 %v4672, %v4483
      %v4801 = vadd.f32 %v4673, %v4487
      %v4802 = vadd.f32 %v4674, %v4487
      %v4803 = vadd.f32 %v4675, %v4491
      %v4804 = vadd.f32 %v4676, %v4491
      %v4805 = vadd.f32 %v4677, %v4498
      %v4806 = vadd.f32 %v4678, %v4498
      %v4807 = vadd.f32 %v4679, %v4502
      %v4808 = vadd.f32 %v4680, %v4502
      %v4809 = vadd.f32 %v4681, %v4506
      %v4810 = vadd.f32 %v4682, %v4506
      %v4811 = vadd.f32 %v4683, %v4510
      %v4812 = vadd.f32 %v4684, %v4510
      %v4813 = vadd.f32 %v4685, %v4514
      %v4814 = vadd.f32 %v4686, %v4514
      %v4815 = vadd.f32 %v4687, %v4518
      %v4816 = vadd.f32 %v4688, %v4518
      %v4817 = vadd.f32 %v4689, %v4522
      %v4818 = vadd.f32 %v4690, %v4522
      %v4819 = vadd.f32 %v4691, %v4526
      %v4820 = vadd.f32 %v4692, %v4526
      %v4821 = vadd.f32 %v4693, %v4533
      %v4822 = vadd.f32 %v4694, %v4533
      %v4823 = vadd.f32 %v4695, %v4537
      %v4824 = vadd.f32 %v4696, %v4537
      %v4825 = vadd.f32 %v4697, %v4541
      %v4826 = vadd.f32 %v4698, %v4541
      %v4827 = vadd.f32 %v4699, %v4545
      %v4828 = vadd.f32 %v4700, %v4545
      %v4829 = vadd.f32 %v4701, %v4549
      %v4830 = vadd.f32 %v4702, %v4549
      %v4831 = vadd.f32 %v4703, %v4553
      %v4832 = vadd.f32 %v4704, %v4553
      %v4833 = vadd.f32 %v4705, %v4557
      %v4834 = vadd.f32 %v4706, %v4557
      %v4835 = vadd.f32 %v4707, %v4561
      %v4836 = vadd.f32 %v4708, %v4561
      %v4837 = vadd.f32 %v4709, %v4568
      %v4838 = vadd.f32 %v4710, %v4568
      %v4839 = vadd.f32 %v4711, %v4572
      %v4840 = vadd.f32 %v4712, %v4572
      %v4841 = vadd.f32 %v4713, %v4576
      %v4842 = vadd.f32 %v4714, %v4576
      %v4843 = vadd.f32 %v4715, %v4580
      %v4844 = vadd.f32 %v4716, %v4580
      %v4845 = vadd.f32 %v4717, %v4584
      %v4846 = vadd.f32 %v4718, %v4584
      %v4847 = vadd.f32 %v4719, %v4588
      %v4848 = vadd.f32 %v4720, %v4588
      %v4849 = vadd.f32 %v4721, %v4592
      %v4850 = vadd.f32 %v4722, %v4592
      %v4851 = vadd.f32 %v4723, %v4596
      %v4852 = vadd.f32 %v4724, %v4596
      %v4853 = vmax.f32 %v4725, 0.0
      %v4854 = vmax.f32 %v4726, 0.0
      %v4855 = vmax.f32 %v4727, 0.0
      %v4856 = vmax.f32 %v4728, 0.0
      %v4857 = vmax.f32 %v4729, 0.0
      %v4858 = vmax.f32 %v4730, 0.0
      %v4859 = vmax.f32 %v4731, 0.0
      %v4860 = vmax.f32 %v4732, 0.0
      %v4861 = vmax.f32 %v4733, 0.0
      %v4862 = vmax.f32 %v4734, 0.0
      %v4863 = vmax.f32 %v4735, 0.0
      %v4864 = vmax.f32 %v4736, 0.0
      %v4865 = vmax.f32 %v4737, 0.0
      %v4866 = vmax.f32 %v4738, 0.0
      %v4867 = vmax.f32 %v4739, 0.0
      %v4868 = vmax.f32 %v4740, 0.0
      %v4869 = vmax.f32 %v4741, 0.0
      %v4870 = vmax.f32 %v4742, 0.0
      %v4871 = vmax.f32 %v4743, 0.0
      %v4872 = vmax.f32 %v4744, 0.0
      %v4873 = vmax.f32 %v4745, 0.0
      %v4874 = vmax.f32 %v4746, 0.0
      %v4875 = vmax.f32 %v4747, 0.0
      %v4876 = vmax.f32 %v4748, 0.0
      %v4877 = vmax.f32 %v4749, 0.0
      %v4878 = vmax.f32 %v4750, 0.0
      %v4879 = vmax.f32 %v4751, 0.0
      %v4880 = vmax.f32 %v4752, 0.0
      %v4881 = vmax.f32 %v4753, 0.0
      %v4882 = vmax.f32 %v4754, 0.0
      %v4883 = vmax.f32 %v4755, 0.0
      %v4884 = vmax.f32 %v4756, 0.0
      %v4885 = vmax.f32 %v4757, 0.0
      %v4886 = vmax.f32 %v4758, 0.0
      %v4887 = vmax.f32 %v4759, 0.0
      %v4888 = vmax.f32 %v4760, 0.0
      %v4889 = vmax.f32 %v4761, 0.0
      %v4890 = vmax.f32 %v4762, 0.0
      %v4891 = vmax.f32 %v4763, 0.0
      %v4892 = vmax.f32 %v4764, 0.0
      %v4893 = vmax.f32 %v4765, 0.0
      %v4894 = vmax.f32 %v4766, 0.0
      %v4895 = vmax.f32 %v4767, 0.0
      %v4896 = vmax.f32 %v4768, 0.0
      %v4897 = vmax.f32 %v4769, 0.0
      %v4898 = vmax.f32 %v4770, 0.0
      %v4899 = vmax.f32 %v4771, 0.0
      %v4900 = vmax.f32 %v4772, 0.0
      %v4901 = vmax.f32 %v4773, 0.0
      %v4902 = vmax.f32 %v4774, 0.0
      %v4903 = vmax.f32 %v4775, 0.0
      %v4904 = vmax.f32 %v4776, 0.0
      %v4905 = vmax.f32 %v4777, 0.0
      %v4906 = vmax.f32 %v4778, 0.0
      %v4907 = vmax.f32 %v4779, 0.0
      %v4908 = vmax.f32 %v4780, 0.0
      %v4909 = vmax.f32 %v4781, 0.0
      %v4910 = vmax.f32 %v4782, 0.0
      %v4911 = vmax.f32 %v4783, 0.0
      %v4912 = vmax.f32 %v4784, 0.0
      %v4913 = vmax.f32 %v4785, 0.0
      %v4914 = vmax.f32 %v4786, 0.0
      %v4915 = vmax.f32 %v4787, 0.0
      %v4916 = vmax.f32 %v4788, 0.0
      %v4917 = vmax.f32 %v4789, 0.0
      %v4918 = vmax.f32 %v4790, 0.0
      %v4919 = vmax.f32 %v4791, 0.0
      %v4920 = vmax.f32 %v4792, 0.0
      %v4921 = vmax.f32 %v4793, 0.0
      %v4922 = vmax.f32 %v4794, 0.0
      %v4923 = vmax.f32 %v4795, 0.0
      %v4924 = vmax.f32 %v4796, 0.0
      %v4925 = vmax.f32 %v4797, 0.0
      %v4926 = vmax.f32 %v4798, 0.0
      %v4927 = vmax.f32 %v4799, 0.0
      %v4928 = vmax.f32 %v4800, 0.0
      %v4929 = vmax.f32 %v4801, 0.0
      %v4930 = vmax.f32 %v4802, 0.0
      %v4931 = vmax.f32 %v4803, 0.0
      %v4932 = vmax.f32 %v4804, 0.0
      %v4933 = vmax.f32 %v4805, 0.0
      %v4934 = vmax.f32 %v4806, 0.0
      %v4935 = vmax.f32 %v4807, 0.0
      %v4936 = vmax.f32 %v4808, 0.0
      %v4937 = vmax.f32 %v4809, 0.0
      %v4938 = vmax.f32 %v4810, 0.0
      %v4939 = vmax.f32 %v4811, 0.0
      %v4940 = vmax.f32 %v4812, 0.0
      %v4941 = vmax.f32 %v4813, 0.0
      %v4942 = vmax.f32 %v4814, 0.0
      %v4943 = vmax.f32 %v4815, 0.0
      %v4944 = vmax.f32 %v4816, 0.0
      %v4945 = vmax.f32 %v4817, 0.0
      %v4946 = vmax.f32 %v4818, 0.0
      %v4947 = vmax.f32 %v4819, 0.0
      %v4948 = vmax.f32 %v4820, 0.0
      %v4949 = vmax.f32 %v4821, 0.0
      %v4950 = vmax.f32 %v4822, 0.0
      %v4951 = vmax.f32 %v4823, 0.0
      %v4952 = vmax.f32 %v4824, 0.0
      %v4953 = vmax.f32 %v4825, 0.0
      %v4954 = vmax.f32 %v4826, 0.0
      %v4955 = vmax.f32 %v4827, 0.0
      %v4956 = vmax.f32 %v4828, 0.0
      %v4957 = vmax.f32 %v4829, 0.0
      %v4958 = vmax.f32 %v4830, 0.0
      %v4959 = vmax.f32 %v4831, 0.0
      %v4960 = vmax.f32 %v4832, 0.0
      %v4961 = vmax.f32 %v4833, 0.0
      %v4962 = vmax.f32 %v4834, 0.0
      %v4963 = vmax.f32 %v4835, 0.0
      %v4964 = vmax.f32 %v4836, 0.0
      %v4965 = vmax.f32 %v4837, 0.0
      %v4966 = vmax.f32 %v4838, 0.0
      %v4967 = vmax.f32 %v4839, 0.0
      %v4968 = vmax.f32 %v4840, 0.0
      %v4969 = vmax.f32 %v4841, 0.0
      %v4970 = vmax.f32 %v4842, 0.0
      %v4971 = vmax.f32 %v4843, 0.0
      %v4972 = vmax.f32 %v4844, 0.0
      %v4973 = vmax.f32 %v4845, 0.0
      %v4974 = vmax.f32 %v4846, 0.0
      %v4975 = vmax.f32 %v4847, 0.0
      %v4976 = vmax.f32 %v4848, 0.0
      %v4977 = vmax.f32 %v4849, 0.0
      %v4978 = vmax.f32 %v4850, 0.0
      %v4979 = vmax.f32 %v4851, 0.0
      %v4980 = vmax.f32 %v4852, 0.0
      %4981 = vst [vmem:[%s386] sm:$0xff] %v4853
      %4982 = vst [vmem:[%s386 + $0x8] sm:$0xff] %v4854
      %4983 = vst [vmem:[%s386 + $0x10] sm:$0xff] %v4855
      %4984 = vst [vmem:[%s386 + $0x18] sm:$0xff] %v4856
      %4985 = vst [vmem:[%s386 + $0x20] sm:$0xff] %v4857
      %4986 = vst [vmem:[%s386 + $0x28] sm:$0xff] %v4858
      %4987 = vst [vmem:[%s386 + $0x30] sm:$0xff] %v4859
      %4988 = vst [vmem:[%s386 + $0x38] sm:$0xff] %v4860
      %4989 = vst [vmem:[%s386 + $0x40] sm:$0xff] %v4861
      %4990 = vst [vmem:[%s386 + $0x48] sm:$0xff] %v4862
      %4991 = vst [vmem:[%s386 + $0x50] sm:$0xff] %v4863
      %4992 = vst [vmem:[%s386 + $0x58] sm:$0xff] %v4864
      %4993 = vst [vmem:[%s386 + $0x60] sm:$0xff] %v4865
      %4994 = vst [vmem:[%s386 + $0x68] sm:$0xff] %v4866
      %4995 = vst [vmem:[%s386 + $0x70] sm:$0xff] %v4867
      %4996 = vst [vmem:[%s386 + $0x78] sm:$0xff] %v4868
      %4997 = vst [vmem:[%s386 + $0x80] sm:$0xff] %v4869
      %4998 = vst [vmem:[%s386 + $0x88] sm:$0xff] %v4870
      %4999 = vst [vmem:[%s386 + $0x90] sm:$0xff] %v4871
      %5000 = vst [vmem:[%s386 + $0x98] sm:$0xff] %v4872
      %5001 = vst [vmem:[%s386 + $0xa0] sm:$0xff] %v4873
      %5002 = vst [vmem:[%s386 + $0xa8] sm:$0xff] %v4874
      %5003 = vst [vmem:[%s386 + $0xb0] sm:$0xff] %v4875
      %5004 = vst [vmem:[%s386 + $0xb8] sm:$0xff] %v4876
      %5005 = vst [vmem:[%s386 + $0xc0] sm:$0xff] %v4877
      %5006 = vst [vmem:[%s386 + $0xc8] sm:$0xff] %v4878
      %5007 = vst [vmem:[%s386 + $0xd0] sm:$0xff] %v4879
      %5008 = vst [vmem:[%s386 + $0xd8] sm:$0xff] %v4880
      %5009 = vst [vmem:[%s386 + $0xe0] sm:$0xff] %v4881
      %5010 = vst [vmem:[%s386 + $0xe8] sm:$0xff] %v4882
      %5011 = vst [vmem:[%s386 + $0xf0] sm:$0xff] %v4883
      %5012 = vst [vmem:[%s386 + $0xf8] sm:$0xff] %v4884
      %5013 = vst [vmem:[%s386 + $0x100] sm:$0xff] %v4885
      %5014 = vst [vmem:[%s386 + $0x108] sm:$0xff] %v4886
      %5015 = vst [vmem:[%s386 + $0x110] sm:$0xff] %v4887
      %5016 = vst [vmem:[%s386 + $0x118] sm:$0xff] %v4888
      %5017 = vst [vmem:[%s386 + $0x120] sm:$0xff] %v4889
      %5018 = vst [vmem:[%s386 + $0x128] sm:$0xff] %v4890
      %5019 = vst [vmem:[%s386 + $0x130] sm:$0xff] %v4891
      %5020 = vst [vmem:[%s386 + $0x138] sm:$0xff] %v4892
      %5021 = vst [vmem:[%s386 + $0x140] sm:$0xff] %v4893
      %5022 = vst [vmem:[%s386 + $0x148] sm:$0xff] %v4894
      %5023 = vst [vmem:[%s386 + $0x150] sm:$0xff] %v4895
      %5024 = vst [vmem:[%s386 + $0x158] sm:$0xff] %v4896
      %5025 = vst [vmem:[%s386 + $0x160] sm:$0xff] %v4897
      %5026 = vst [vmem:[%s386 + $0x168] sm:$0xff] %v4898
      %5027 = vst [vmem:[%s386 + $0x170] sm:$0xff] %v4899
      %5028 = vst [vmem:[%s386 + $0x178] sm:$0xff] %v4900
      %5029 = vst [vmem:[%s386 + $0x180] sm:$0xff] %v4901
      %5030 = vst [vmem:[%s386 + $0x188] sm:$0xff] %v4902
      %5031 = vst [vmem:[%s386 + $0x190] sm:$0xff] %v4903
      %5032 = vst [vmem:[%s386 + $0x198] sm:$0xff] %v4904
      %5033 = vst [vmem:[%s386 + $0x1a0] sm:$0xff] %v4905
      %5034 = vst [vmem:[%s386 + $0x1a8] sm:$0xff] %v4906
      %5035 = vst [vmem:[%s386 + $0x1b0] sm:$0xff] %v4907
      %5036 = vst [vmem:[%s386 + $0x1b8] sm:$0xff] %v4908
      %5037 = vst [vmem:[%s386 + $0x1c0] sm:$0xff] %v4909
      %5038 = vst [vmem:[%s386 + $0x1c8] sm:$0xff] %v4910
      %5039 = vst [vmem:[%s386 + $0x1d0] sm:$0xff] %v4911
      %5040 = vst [vmem:[%s386 + $0x1d8] sm:$0xff] %v4912
      %5041 = vst [vmem:[%s386 + $0x1e0] sm:$0xff] %v4913
      %5042 = vst [vmem:[%s386 + $0x1e8] sm:$0xff] %v4914
      %5043 = vst [vmem:[%s386 + $0x1f0] sm:$0xff] %v4915
      %5044 = vst [vmem:[%s386 + $0x1f8] sm:$0xff] %v4916
      %5045 = vst [vmem:[%s386 + $0x200] sm:$0xff] %v4917
      %5046 = vst [vmem:[%s386 + $0x208] sm:$0xff] %v4918
      %5047 = vst [vmem:[%s386 + $0x210] sm:$0xff] %v4919
      %5048 = vst [vmem:[%s386 + $0x218] sm:$0xff] %v4920
      %5049 = vst [vmem:[%s386 + $0x220] sm:$0xff] %v4921
      %5050 = vst [vmem:[%s386 + $0x228] sm:$0xff] %v4922
      %5051 = vst [vmem:[%s386 + $0x230] sm:$0xff] %v4923
      %5052 = vst [vmem:[%s386 + $0x238] sm:$0xff] %v4924
      %5053 = vst [vmem:[%s386 + $0x240] sm:$0xff] %v4925
      %5054 = vst [vmem:[%s386 + $0x248] sm:$0xff] %v4926
      %5055 = vst [vmem:[%s386 + $0x250] sm:$0xff] %v4927
      %5056 = vst [vmem:[%s386 + $0x258] sm:$0xff] %v4928
      %5057 = vst [vmem:[%s386 + $0x260] sm:$0xff] %v4929
      %5058 = vst [vmem:[%s386 + $0x268] sm:$0xff] %v4930
      %5059 = vst [vmem:[%s386 + $0x270] sm:$0xff] %v4931
      %5060 = vst [vmem:[%s386 + $0x278] sm:$0xff] %v4932
      %5061 = vst [vmem:[%s386 + $0x280] sm:$0xff] %v4933
      %5062 = vst [vmem:[%s386 + $0x288] sm:$0xff] %v4934
      %5063 = vst [vmem:[%s386 + $0x290] sm:$0xff] %v4935
      %5064 = vst [vmem:[%s386 + $0x298] sm:$0xff] %v4936
      %5065 = vst [vmem:[%s386 + $0x2a0] sm:$0xff] %v4937
      %5066 = vst [vmem:[%s386 + $0x2a8] sm:$0xff] %v4938
      %5067 = vst [vmem:[%s386 + $0x2b0] sm:$0xff] %v4939
      %5068 = vst [vmem:[%s386 + $0x2b8] sm:$0xff] %v4940
      %5069 = vst [vmem:[%s386 + $0x2c0] sm:$0xff] %v4941
      %5070 = vst [vmem:[%s386 + $0x2c8] sm:$0xff] %v4942
      %5071 = vst [vmem:[%s386 + $0x2d0] sm:$0xff] %v4943
      %5072 = vst [vmem:[%s386 + $0x2d8] sm:$0xff] %v4944
      %5073 = vst [vmem:[%s386 + $0x2e0] sm:$0xff] %v4945
      %5074 = vst [vmem:[%s386 + $0x2e8] sm:$0xff] %v4946
      %5075 = vst [vmem:[%s386 + $0x2f0] sm:$0xff] %v4947
      %5076 = vst [vmem:[%s386 + $0x2f8] sm:$0xff] %v4948
      %5077 = vst [vmem:[%s386 + $0x300] sm:$0xff] %v4949
      %5078 = vst [vmem:[%s386 + $0x308] sm:$0xff] %v4950
      %5079 = vst [vmem:[%s386 + $0x310] sm:$0xff] %v4951
      %5080 = vst [vmem:[%s386 + $0x318] sm:$0xff] %v4952
      %5081 = vst [vmem:[%s386 + $0x320] sm:$0xff] %v4953
      %5082 = vst [vmem:[%s386 + $0x328] sm:$0xff] %v4954
      %5083 = vst [vmem:[%s386 + $0x330] sm:$0xff] %v4955
      %5084 = vst [vmem:[%s386 + $0x338] sm:$0xff] %v4956
      %5085 = vst [vmem:[%s386 + $0x340] sm:$0xff] %v4957
      %5086 = vst [vmem:[%s386 + $0x348] sm:$0xff] %v4958
      %5087 = vst [vmem:[%s386 + $0x350] sm:$0xff] %v4959
      %5088 = vst [vmem:[%s386 + $0x358] sm:$0xff] %v4960
      %5089 = vst [vmem:[%s386 + $0x360] sm:$0xff] %v4961
      %5090 = vst [vmem:[%s386 + $0x368] sm:$0xff] %v4962
      %5091 = vst [vmem:[%s386 + $0x370] sm:$0xff] %v4963
      %5092 = vst [vmem:[%s386 + $0x378] sm:$0xff] %v4964
      %5093 = vst [vmem:[%s386 + $0x380] sm:$0xff] %v4965
      %5094 = vst [vmem:[%s386 + $0x388] sm:$0xff] %v4966
      %5095 = vst [vmem:[%s386 + $0x390] sm:$0xff] %v4967
      %5096 = vst [vmem:[%s386 + $0x398] sm:$0xff] %v4968
      %5097 = vst [vmem:[%s386 + $0x3a0] sm:$0xff] %v4969
      %5098 = vst [vmem:[%s386 + $0x3a8] sm:$0xff] %v4970
      %5099 = vst [vmem:[%s386 + $0x3b0] sm:$0xff] %v4971
      %5100 = vst [vmem:[%s386 + $0x3b8] sm:$0xff] %v4972
      %5101 = vst [vmem:[%s386 + $0x3c0] sm:$0xff] %v4973
      %5102 = vst [vmem:[%s386 + $0x3c8] sm:$0xff] %v4974
      %5103 = vst [vmem:[%s386 + $0x3d0] sm:$0xff] %v4975
      %5104 = vst [vmem:[%s386 + $0x3d8] sm:$0xff] %v4976
      %5105 = vst [vmem:[%s386 + $0x3e0] sm:$0xff] %v4977
      %5106 = vst [vmem:[%s386 + $0x3e8] sm:$0xff] %v4978
      %5107 = vst [vmem:[%s386 + $0x3f0] sm:$0xff] %v4979
      %5108 = vst [vmem:[%s386 + $0x3f8] sm:$0xff] %v4980
      %p5109 = scmp.lt.s32.totalorder %s22, 1
      %s5110 = scalar_select %p5109, %s22, 1
      %s5111 = smul.addr %s5110, 128
      %s5112 = smul.addr %s5111, 8
      %s5113 = scalar_lea.vmem %s11, %s5112
      // Predicated region
      $region65: #{tokenwise_channel_attn_block.1} parent=63 // pred_check
        %p5114 = pneg %p276
      $region66: #{tokenwise_channel_attn_block.1} parent=63 // pred_check_branch
        %5116 = sbr.rel (%p5114) target = $region68
      $region67: #{tokenwise_channel_attn_block.1} parent=63 // pred_region
        _
      $region68: #{tokenwise_channel_attn_block.1} parent=63 // pred_fallthru
        _
    $region64: #{tokenwise_channel_attn_block.1} parent=5 // pred_fallthru
      _
    %p5117 = scmp.le.s32.totalorder 2, %s17
    // Predicated region
    $region69: #{tokenwise_channel_attn_block.1} parent=5 // pred_check
      %p5118 = pneg %p5117
    $region70: #{tokenwise_channel_attn_block.1} parent=5 // pred_check_branch
      %5120 = sbr.rel (%p5118) target = $region72
    $region71: #{tokenwise_channel_attn_block.1} parent=5 // pred_region
      %s5121 = ssub.s32 %s17, 2
      // Predicated region
      $region73: #{tokenwise_channel_attn_block.1} parent=71 // pred_check
        %p5122 = pneg %p282
      $region74: #{tokenwise_channel_attn_block.1} parent=71 // pred_check_branch
        %5124 = sbr.rel (%p5122) target = $region76
      $region75: #{tokenwise_channel_attn_block.1} parent=71 // pred_region
        %p5125 = scmp.lt.s32.totalorder %s23, 1
        %s5126 = scalar_select %p5125, %s23, 1
        %s5127 = smul.addr %s5126, 128
        %s5128 = smul.addr %s5127, 8
        %s5129 = scalar_lea.vmem %s11, %s5128
      $region76: #{tokenwise_channel_attn_block.1} parent=71 // pred_fallthru
        _
    $region72: #{tokenwise_channel_attn_block.1} parent=5 // pred_fallthru
      _
  $region6: #{tokenwise_channel_attn_block.1} parent=0 // loop_footer
    %s21 = sadd.s32 1, %s17
  $region7: #{tokenwise_channel_attn_block.1} parent=0 // loop_footer_branch
    %16 = sbr.rel target = $region3
  $region8: #{tokenwise_channel_attn_block.1} parent=0 // loop_exit
    _

</llo_original>
